<compile_context>
chip_gen: v5e
topology: v5e:2x2
jax: 0.10.0
libtpu: 0.0.40
codegen_flags: <defaults>
</compile_context>

<pallas_src>
import functools

import jax
import jax.numpy as jnp
from jax import lax
from jax.experimental import pallas as pl
from jax.experimental.pallas import tpu as pltpu


# ----------------------------------------------------------------------------
# Pallas kernel: the entire DualRes2d block for one batch block per grid step.
# ----------------------------------------------------------------------------
def _dualres_kernel(x_ref, a1_ref, a2_ref, aff1_ref, aff2_ref, o_ref, rows_ref):
    """Fused BN->PReLU->conv->BN->PReLU->conv->(+x).

    x_ref, o_ref : (NB, H, W*C)   f32, lane-dense activations.
    a1/a2_ref    : (3, W*C, W*C)  bf16 block-banded conv weights (one matrix per
                   vertical tap; horizontal taps + horizontal zero pad folded in).
    aff1/aff2_ref: (3, 1, W*C)    f32 rows = [BN scale, BN shift, PReLU slope],
                   per-channel values tiled along W so they broadcast lane-dense.
    rows_ref     : (NB, H+2, W*C) bf16 scratch; rows 0 and H+1 are the vertical
                   zero padding, rows 1..H hold the bf16 activation.
    """
    NB, H, WC = x_ref.shape

    # Re-zero only the two padding rows, every step (cheap), so correctness does
    # not depend on scratch state surviving megacore grid partitioning.
    zrow = jnp.zeros((NB, 1, WC), rows_ref.dtype)
    rows_ref[:, pl.ds(0, 1), :] = zrow
    rows_ref[:, pl.ds(H + 1, 1), :] = zrow

    def bn_prelu(v, aff_ref):
        h = v * aff_ref[0] + aff_ref[1]                 # (NB,H,WC) * (1,WC)
        return jnp.where(h >= 0.0, h, aff_ref[2] * h)   # PReLU

    def conv3x3(h, a_ref):
        # Single f32->bf16 cast per conv, straight into the row-halo buffer.
        rows_ref[:, pl.ds(1, H), :] = h.astype(jnp.bfloat16)
        # 3 vertical taps -> 3 deep (K = W*C) MXU matmuls, f32 accumulation.
        lhs0 = rows_ref[:, pl.ds(0, H), :].reshape(NB * H, WC)
        acc = jnp.dot(lhs0, a_ref[0], preferred_element_type=jnp.float32)
        for di in range(1, 3):
            lhs = rows_ref[:, pl.ds(di, H), :].reshape(NB * H, WC)
            acc = acc + jnp.dot(lhs, a_ref[di],
                                preferred_element_type=jnp.float32)
        return acc.reshape(NB, H, WC)

    h1 = bn_prelu(x_ref[...], aff1_ref)
    y1 = conv3x3(h1, a1_ref)
    # Dropout(0.2) is the identity at inference time.
    h2 = bn_prelu(y1, aff2_ref)
    y2 = conv3x3(h2, a2_ref)
    o_ref[...] = x_ref[...] + y2        # re-read x from VMEM (residual add)


# ----------------------------------------------------------------------------
# Parameter folding + launch wrapper.
# ----------------------------------------------------------------------------
def _pick_batch_block(n, h, wc):
    """Largest divisor of n that keeps >=2 grid blocks (two v7x TensorCores)
    and a modest per-block activation footprint (weights dominate VMEM)."""
    per_image = h * wc * 4
    cap = max(1, (2 << 20) // max(per_image, 1))
    best = 1
    for d in range(1, n + 1):
        if n % d == 0 and d <= cap and (n // d >= 2 or n == 1):
            best = d
    return best


def _fold_affine(bn, prelu_a, w, c, eps):
    """Eval-mode BatchNorm + PReLU -> lane-dense per-channel rows (3, 1, W*C)."""
    scale = bn["weight"] * lax.rsqrt(bn["running_var"] + eps)
    shift = bn["bias"] - bn["running_mean"] * scale
    slope = jnp.broadcast_to(prelu_a[0], (c,))
    rows = jnp.stack([jnp.tile(scale, w), jnp.tile(shift, w), jnp.tile(slope, w)])
    return rows.reshape(3, 1, w * c).astype(jnp.float32)


def _fold_weight_banded(w_oihw, w, c):
    """PyTorch (Cout, Cin, 3, 3) conv weight -> (3, W*C, W*C) bf16 block-banded
    matrices A[di] with A[di][ws*C+ci, wd*C+co] = w[co, ci, di, ws-wd+1];
    out-of-range horizontal taps are simply absent (zero padding along W)."""
    wt = jnp.transpose(w_oihw, (2, 3, 1, 0)).astype(jnp.float32)  # (3,3,Cin,Cout)
    mats = []
    for di in range(3):
        a = jnp.zeros((w * c, w * c), jnp.float32)
        for dj in range(3):
            off = dj - 1                      # input col = output col + off
            band = jnp.eye(w, w, k=-off, dtype=jnp.float32)
            a = a + jnp.kron(band, wt[di, dj])
        mats.append(a)
    return jnp.stack(mats).astype(jnp.bfloat16)


def dualres_forward(x_nchw, params, eps=1e-5):
    # NCHW -> NHWC -> (N, H, W*C): channels on the fast (lane) axis.  Accepting
    # / returning NHWC at the module boundary would drop these two wrapper
    # transposes (one extra HBM round trip each); kept to match the PyTorch
    # NCHW interface.
    x = jnp.transpose(x_nchw, (0, 2, 3, 1)).astype(jnp.float32)
    n, h, w, c = x.shape
    wc = w * c
    x = x.reshape(n, h, wc)                 # free reshape (contiguous dims merge)

    aff1 = _fold_affine(params["bn1"], params["prelu1"], w, c, eps)
    aff2 = _fold_affine(params["bn2"], params["prelu2"], w, c, eps)
    a1 = _fold_weight_banded(params["conv1"], w, c)
    a2 = _fold_weight_banded(params["conv2"], w, c)

    nb = _pick_batch_block(n, h, wc)
    grid = (n // nb,)

    out = pl.pallas_call(
        _dualres_kernel,
        out_shape=jax.ShapeDtypeStruct((n, h, wc), jnp.float32),
        grid=grid,
        in_specs=[
            pl.BlockSpec((nb, h, wc), lambda i: (i, 0, 0)),
            pl.BlockSpec((3, wc, wc), lambda i: (0, 0, 0)),
            pl.BlockSpec((3, wc, wc), lambda i: (0, 0, 0)),
            pl.BlockSpec((3, 1, wc), lambda i: (0, 0, 0)),
            pl.BlockSpec((3, 1, wc), lambda i: (0, 0, 0)),
        ],
        out_specs=pl.BlockSpec((nb, h, wc), lambda i: (i, 0, 0)),
        scratch_shapes=[pltpu.VMEM((nb, h + 2, wc), jnp.bfloat16)],
        compiler_params=pltpu.CompilerParams(
            dimension_semantics=("parallel",)),
    )(x, a1, a2, aff1, aff2)

    return jnp.transpose(out.reshape(n, h, w, c), (0, 3, 1, 2))   # NHWC->NCHW


# ----------------------------------------------------------------------------
# Pure-JAX (XLA) reference for correctness checking.
# ----------------------------------------------------------------------------
def dualres_reference(x_nchw, params, eps=1e-5):
    def bn_prelu(v, bn, prelu_a):
        scale = bn["weight"] * lax.rsqrt(bn["running_var"] + eps)
        shift = bn["bias"] - bn["running_mean"] * scale
        h = v * scale.reshape(1, -1, 1, 1) + shift.reshape(1, -1, 1, 1)
        return jnp.where(h >= 0.0, h, prelu_a[0] * h)

    def conv(v, w):
        return lax.conv_general_dilated(
            v, w, window_strides=(1, 1), padding=((1, 1), (1, 1)),
            dimension_numbers=("NCHW", "OIHW", "NCHW"))

    h = bn_prelu(x_nchw, params["bn1"], params["prelu1"])
    h = conv(h, params["conv1"])
    h = bn_prelu(h, params["bn2"], params["prelu2"])   # dropout = identity (eval)
    h = conv(h, params["conv2"])
    return x_nchw + h


# ----------------------------------------------------------------------------
# Deterministic parameter initialization (shapes match the PyTorch module).
# ----------------------------------------------------------------------------
def init_params(key, in_size):
    ks = jax.random.split(key, 4)

    def conv_w(k):
        return jax.random.normal(k, (in_size, in_size, 3, 3), jnp.float32) \
            / jnp.sqrt(9.0 * in_size)

    def bn_p(k):
        kg, kb, km, kv = jax.random.split(k, 4)
        return dict(
            weight=1.0 + 0.1 * jax.random.normal(kg, (in_size,), jnp.float32),
            bias=0.1 * jax.random.normal(kb, (in_size,), jnp.float32),
            running_mean=0.1 * jax.random.normal(km, (in_size,), jnp.float32),
            running_var=jax.random.uniform(kv, (in_size,), jnp.float32,
                                           0.5, 1.5),
        )

    return dict(
        bn1=bn_p(ks[0]),
        prelu1=jnp.full((1,), 0.25, jnp.float32),   # nn.PReLU() default init
        conv1=conv_w(ks[1]),
        bn2=bn_p(ks[2]),
        prelu2=jnp.full((1,), 0.25, jnp.float32),
        conv2=conv_w(ks[3]),
    )


if __name__ == "__main__":
    key = jax.random.PRNGKey(0)
    pkey, xkey = jax.random.split(key)

    in_size, H, W, batch = 32, 16, 16, 2
    params = init_params(pkey, in_size)
    x = jax.random.normal(xkey, (batch, in_size, H, W), jnp.float32)

    fwd = jax.jit(functools.partial(dualres_forward, params=params))
    out = fwd(x)
    jax.block_until_ready(out)

    assert out.shape == (batch, in_size, H, W), out.shape
    assert bool(jnp.all(jnp.isfinite(out)))

    # Correctness vs fp32 XLA reference (loose tolerance: the kernel's conv
    # operands are bf16 with f32 accumulation).
    ref = dualres_reference(x, params)
    max_err = float(jnp.max(jnp.abs(out - ref)))
    assert max_err < 0.15, f"max abs error {max_err}"

    # TODO(synk): training-mode BatchNorm (batch stats + running-stat updates)
    # and stochastic Dropout are not implemented; eval-mode semantics only.
    print("KERNEL_OK")
</pallas_src>

<mosaic_0001>
module attributes {stable_mosaic.version = 11 : i64} {
  func.func @_dualres_kernel(%arg0: i32, %arg1: memref<1x16x512xf32, #tpu.memory_space<vmem>>, %arg2: memref<3x512x512xbf16, #tpu.memory_space<vmem>>, %arg3: memref<3x512x512xbf16, #tpu.memory_space<vmem>>, %arg4: memref<3x1x512xf32, #tpu.memory_space<vmem>>, %arg5: memref<3x1x512xf32, #tpu.memory_space<vmem>>, %arg6: memref<1x16x512xf32, #tpu.memory_space<vmem>>, %arg7: memref<1x18x512xbf16, #tpu.memory_space<vmem>>) attributes {dimension_semantics = [#tpu.dimension_semantics<parallel>], iteration_bounds = array<i64: 2>, scalar_prefetch = 0 : i64, scratch_operands = 1 : i64, tpu.core_type = #tpu.core_type<tc>, window_params = [{transform_indices = @transform_0, window_bounds = array<i64: 1, 16, 512>}, {pipeline_mode = #tpu.pipeline_mode<synchronous>, transform_indices = @transform_1, window_bounds = array<i64: 3, 512, 512>}, {pipeline_mode = #tpu.pipeline_mode<synchronous>, transform_indices = @transform_2, window_bounds = array<i64: 3, 512, 512>}, {pipeline_mode = #tpu.pipeline_mode<synchronous>, transform_indices = @transform_3, window_bounds = array<i64: 3, 1, 512>}, {pipeline_mode = #tpu.pipeline_mode<synchronous>, transform_indices = @transform_4, window_bounds = array<i64: 3, 1, 512>}, {transform_indices = @transform_5, window_bounds = array<i64: 1, 16, 512>}]} {
    %cst = arith.constant 0.000000e+00 : bf16
    %0 = vector.broadcast %cst : bf16 to vector<1x1x512xbf16>
    %c0 = arith.constant 0 : index
    %c0_0 = arith.constant 0 : index
    %c0_1 = arith.constant 0 : index
    %1 = vector.load %arg7[%c0, %c0_0, %c0_1] : memref<1x18x512xbf16, #tpu.memory_space<vmem>>, vector<1x1x512xbf16>
    tpu.vector_store %arg7[%c0, %c0_0, %c0_1], %0 {strides = array<i32>} : memref<1x18x512xbf16, #tpu.memory_space<vmem>>, vector<1x1x512xbf16>,
    %c0_2 = arith.constant 0 : index
    %c17 = arith.constant 17 : index
    %c0_3 = arith.constant 0 : index
    %2 = vector.load %arg7[%c0_2, %c17, %c0_3] : memref<1x18x512xbf16, #tpu.memory_space<vmem>>, vector<1x1x512xbf16>
    tpu.vector_store %arg7[%c0_2, %c17, %c0_3], %0 {strides = array<i32>} : memref<1x18x512xbf16, #tpu.memory_space<vmem>>, vector<1x1x512xbf16>,
    %c0_4 = arith.constant 0 : index
    %c0_5 = arith.constant 0 : index
    %c0_6 = arith.constant 0 : index
    %3 = vector.load %arg1[%c0_4, %c0_5, %c0_6] : memref<1x16x512xf32, #tpu.memory_space<vmem>>, vector<1x16x512xf32>
    %c0_7 = arith.constant 0 : index
    %c0_8 = arith.constant 0 : index
    %c0_9 = arith.constant 0 : index
    %4 = vector.load %arg4[%c0_7, %c0_8, %c0_9] : memref<3x1x512xf32, #tpu.memory_space<vmem>>, vector<1x1x512xf32>
    %5 = vector.shape_cast %4 : vector<1x1x512xf32> to vector<1x512xf32>
    %6 = vector.shape_cast %5 : vector<1x512xf32> to vector<1x1x512xf32>
    %7 = vector.broadcast %6 : vector<1x1x512xf32> to vector<1x16x512xf32>
    %8 = arith.mulf %3, %7 : vector<1x16x512xf32>
    %c1 = arith.constant 1 : index
    %c0_10 = arith.constant 0 : index
    %c0_11 = arith.constant 0 : index
    %9 = vector.load %arg4[%c1, %c0_10, %c0_11] : memref<3x1x512xf32, #tpu.memory_space<vmem>>, vector<1x1x512xf32>
    %10 = vector.shape_cast %9 : vector<1x1x512xf32> to vector<1x512xf32>
    %11 = vector.shape_cast %10 : vector<1x512xf32> to vector<1x1x512xf32>
    %12 = vector.broadcast %11 : vector<1x1x512xf32> to vector<1x16x512xf32>
    %13 = arith.addf %8, %12 : vector<1x16x512xf32>
    %cst_12 = arith.constant 0.000000e+00 : f32
    %14 = vector.broadcast %cst_12 : f32 to vector<1x16x512xf32>
    %15 = arith.cmpf oge, %13, %14 : vector<1x16x512xf32>
    %c2 = arith.constant 2 : index
    %c0_13 = arith.constant 0 : index
    %c0_14 = arith.constant 0 : index
    %16 = vector.load %arg4[%c2, %c0_13, %c0_14] : memref<3x1x512xf32, #tpu.memory_space<vmem>>, vector<1x1x512xf32>
    %17 = vector.shape_cast %16 : vector<1x1x512xf32> to vector<1x512xf32>
    %18 = vector.shape_cast %17 : vector<1x512xf32> to vector<1x1x512xf32>
    %19 = vector.broadcast %18 : vector<1x1x512xf32> to vector<1x16x512xf32>
    %20 = arith.mulf %19, %13 : vector<1x16x512xf32>
    %21 = arith.select %15, %13, %20 : vector<1x16x512xi1>, vector<1x16x512xf32>
    %22 = arith.truncf %21 : vector<1x16x512xf32> to vector<1x16x512xbf16>
    %c0_15 = arith.constant 0 : index
    %c1_16 = arith.constant 1 : index
    %c0_17 = arith.constant 0 : index
    %23 = vector.load %arg7[%c0_15, %c1_16, %c0_17] : memref<1x18x512xbf16, #tpu.memory_space<vmem>>, vector<1x16x512xbf16>
    tpu.vector_store %arg7[%c0_15, %c1_16, %c0_17], %22 {strides = array<i32>} : memref<1x18x512xbf16, #tpu.memory_space<vmem>>, vector<1x16x512xbf16>,
    %c0_18 = arith.constant 0 : index
    %c0_19 = arith.constant 0 : index
    %c0_20 = arith.constant 0 : index
    %24 = vector.load %arg7[%c0_18, %c0_19, %c0_20] : memref<1x18x512xbf16, #tpu.memory_space<vmem>>, vector<1x16x512xbf16>
    %25 = vector.shape_cast %24 : vector<1x16x512xbf16> to vector<16x512xbf16>
    %c0_21 = arith.constant 0 : index
    %c0_22 = arith.constant 0 : index
    %c0_23 = arith.constant 0 : index
    %26 = vector.load %arg2[%c0_21, %c0_22, %c0_23] : memref<3x512x512xbf16, #tpu.memory_space<vmem>>, vector<1x512x512xbf16>
    %27 = vector.shape_cast %26 : vector<1x512x512xbf16> to vector<512x512xbf16>
    %cst_24 = arith.constant dense<0.000000e+00> : vector<16x512xf32>
    %28 = tpu.matmul %25, %27, %cst_24 {dimension_numbers = #tpu.dot_dimension_numbers<[1], [0], [0], [1], [0, 0, 1, 1], [], []>} : vector<16x512xbf16>, vector<512x512xbf16>, vector<16x512xf32> -> vector<16x512xf32>
    %c0_25 = arith.constant 0 : index
    %c1_26 = arith.constant 1 : index
    %c0_27 = arith.constant 0 : index
    %29 = vector.load %arg7[%c0_25, %c1_26, %c0_27] : memref<1x18x512xbf16, #tpu.memory_space<vmem>>, vector<1x16x512xbf16>
    %30 = vector.shape_cast %29 : vector<1x16x512xbf16> to vector<16x512xbf16>
    %c1_28 = arith.constant 1 : index
    %c0_29 = arith.constant 0 : index
    %c0_30 = arith.constant 0 : index
    %31 = vector.load %arg2[%c1_28, %c0_29, %c0_30] : memref<3x512x512xbf16, #tpu.memory_space<vmem>>, vector<1x512x512xbf16>
    %32 = vector.shape_cast %31 : vector<1x512x512xbf16> to vector<512x512xbf16>
    %cst_31 = arith.constant dense<0.000000e+00> : vector<16x512xf32>
    %33 = tpu.matmul %30, %32, %cst_31 {dimension_numbers = #tpu.dot_dimension_numbers<[1], [0], [0], [1], [0, 0, 1, 1], [], []>} : vector<16x512xbf16>, vector<512x512xbf16>, vector<16x512xf32> -> vector<16x512xf32>
    %34 = arith.addf %28, %33 : vector<16x512xf32>
    %c0_32 = arith.constant 0 : index
    %c2_33 = arith.constant 2 : index
    %c0_34 = arith.constant 0 : index
    %35 = vector.load %arg7[%c0_32, %c2_33, %c0_34] : memref<1x18x512xbf16, #tpu.memory_space<vmem>>, vector<1x16x512xbf16>
    %36 = vector.shape_cast %35 : vector<1x16x512xbf16> to vector<16x512xbf16>
    %c2_35 = arith.constant 2 : index
    %c0_36 = arith.constant 0 : index
    %c0_37 = arith.constant 0 : index
    %37 = vector.load %arg2[%c2_35, %c0_36, %c0_37] : memref<3x512x512xbf16, #tpu.memory_space<vmem>>, vector<1x512x512xbf16>
    %38 = vector.shape_cast %37 : vector<1x512x512xbf16> to vector<512x512xbf16>
    %cst_38 = arith.constant dense<0.000000e+00> : vector<16x512xf32>
    %39 = tpu.matmul %36, %38, %cst_38 {dimension_numbers = #tpu.dot_dimension_numbers<[1], [0], [0], [1], [0, 0, 1, 1], [], []>} : vector<16x512xbf16>, vector<512x512xbf16>, vector<16x512xf32> -> vector<16x512xf32>
    %40 = arith.addf %34, %39 : vector<16x512xf32>
    %41 = vector.shape_cast %40 : vector<16x512xf32> to vector<1x16x512xf32>
    %c0_39 = arith.constant 0 : index
    %c0_40 = arith.constant 0 : index
    %c0_41 = arith.constant 0 : index
    %42 = vector.load %arg5[%c0_39, %c0_40, %c0_41] : memref<3x1x512xf32, #tpu.memory_space<vmem>>, vector<1x1x512xf32>
    %43 = vector.shape_cast %42 : vector<1x1x512xf32> to vector<1x512xf32>
    %44 = vector.shape_cast %43 : vector<1x512xf32> to vector<1x1x512xf32>
    %45 = vector.broadcast %44 : vector<1x1x512xf32> to vector<1x16x512xf32>
    %46 = arith.mulf %41, %45 : vector<1x16x512xf32>
    %c1_42 = arith.constant 1 : index
    %c0_43 = arith.constant 0 : index
    %c0_44 = arith.constant 0 : index
    %47 = vector.load %arg5[%c1_42, %c0_43, %c0_44] : memref<3x1x512xf32, #tpu.memory_space<vmem>>, vector<1x1x512xf32>
    %48 = vector.shape_cast %47 : vector<1x1x512xf32> to vector<1x512xf32>
    %49 = vector.shape_cast %48 : vector<1x512xf32> to vector<1x1x512xf32>
    %50 = vector.broadcast %49 : vector<1x1x512xf32> to vector<1x16x512xf32>
    %51 = arith.addf %46, %50 : vector<1x16x512xf32>
    %cst_45 = arith.constant 0.000000e+00 : f32
    %52 = vector.broadcast %cst_45 : f32 to vector<1x16x512xf32>
    %53 = arith.cmpf oge, %51, %52 : vector<1x16x512xf32>
    %c2_46 = arith.constant 2 : index
    %c0_47 = arith.constant 0 : index
    %c0_48 = arith.constant 0 : index
    %54 = vector.load %arg5[%c2_46, %c0_47, %c0_48] : memref<3x1x512xf32, #tpu.memory_space<vmem>>, vector<1x1x512xf32>
    %55 = vector.shape_cast %54 : vector<1x1x512xf32> to vector<1x512xf32>
    %56 = vector.shape_cast %55 : vector<1x512xf32> to vector<1x1x512xf32>
    %57 = vector.broadcast %56 : vector<1x1x512xf32> to vector<1x16x512xf32>
    %58 = arith.mulf %57, %51 : vector<1x16x512xf32>
    %59 = arith.select %53, %51, %58 : vector<1x16x512xi1>, vector<1x16x512xf32>
    %60 = arith.truncf %59 : vector<1x16x512xf32> to vector<1x16x512xbf16>
    %c0_49 = arith.constant 0 : index
    %c1_50 = arith.constant 1 : index
    %c0_51 = arith.constant 0 : index
    %61 = vector.load %arg7[%c0_49, %c1_50, %c0_51] : memref<1x18x512xbf16, #tpu.memory_space<vmem>>, vector<1x16x512xbf16>
    tpu.vector_store %arg7[%c0_49, %c1_50, %c0_51], %60 {strides = array<i32>} : memref<1x18x512xbf16, #tpu.memory_space<vmem>>, vector<1x16x512xbf16>,
    %c0_52 = arith.constant 0 : index
    %c0_53 = arith.constant 0 : index
    %c0_54 = arith.constant 0 : index
    %62 = vector.load %arg7[%c0_52, %c0_53, %c0_54] : memref<1x18x512xbf16, #tpu.memory_space<vmem>>, vector<1x16x512xbf16>
    %63 = vector.shape_cast %62 : vector<1x16x512xbf16> to vector<16x512xbf16>
    %c0_55 = arith.constant 0 : index
    %c0_56 = arith.constant 0 : index
    %c0_57 = arith.constant 0 : index
    %64 = vector.load %arg3[%c0_55, %c0_56, %c0_57] : memref<3x512x512xbf16, #tpu.memory_space<vmem>>, vector<1x512x512xbf16>
    %65 = vector.shape_cast %64 : vector<1x512x512xbf16> to vector<512x512xbf16>
    %cst_58 = arith.constant dense<0.000000e+00> : vector<16x512xf32>
    %66 = tpu.matmul %63, %65, %cst_58 {dimension_numbers = #tpu.dot_dimension_numbers<[1], [0], [0], [1], [0, 0, 1, 1], [], []>} : vector<16x512xbf16>, vector<512x512xbf16>, vector<16x512xf32> -> vector<16x512xf32>
    %c0_59 = arith.constant 0 : index
    %c1_60 = arith.constant 1 : index
    %c0_61 = arith.constant 0 : index
    %67 = vector.load %arg7[%c0_59, %c1_60, %c0_61] : memref<1x18x512xbf16, #tpu.memory_space<vmem>>, vector<1x16x512xbf16>
    %68 = vector.shape_cast %67 : vector<1x16x512xbf16> to vector<16x512xbf16>
    %c1_62 = arith.constant 1 : index
    %c0_63 = arith.constant 0 : index
    %c0_64 = arith.constant 0 : index
    %69 = vector.load %arg3[%c1_62, %c0_63, %c0_64] : memref<3x512x512xbf16, #tpu.memory_space<vmem>>, vector<1x512x512xbf16>
    %70 = vector.shape_cast %69 : vector<1x512x512xbf16> to vector<512x512xbf16>
    %cst_65 = arith.constant dense<0.000000e+00> : vector<16x512xf32>
    %71 = tpu.matmul %68, %70, %cst_65 {dimension_numbers = #tpu.dot_dimension_numbers<[1], [0], [0], [1], [0, 0, 1, 1], [], []>} : vector<16x512xbf16>, vector<512x512xbf16>, vector<16x512xf32> -> vector<16x512xf32>
    %72 = arith.addf %66, %71 : vector<16x512xf32>
    %c0_66 = arith.constant 0 : index
    %c2_67 = arith.constant 2 : index
    %c0_68 = arith.constant 0 : index
    %73 = vector.load %arg7[%c0_66, %c2_67, %c0_68] : memref<1x18x512xbf16, #tpu.memory_space<vmem>>, vector<1x16x512xbf16>
    %74 = vector.shape_cast %73 : vector<1x16x512xbf16> to vector<16x512xbf16>
    %c2_69 = arith.constant 2 : index
    %c0_70 = arith.constant 0 : index
    %c0_71 = arith.constant 0 : index
    %75 = vector.load %arg3[%c2_69, %c0_70, %c0_71] : memref<3x512x512xbf16, #tpu.memory_space<vmem>>, vector<1x512x512xbf16>
    %76 = vector.shape_cast %75 : vector<1x512x512xbf16> to vector<512x512xbf16>
    %cst_72 = arith.constant dense<0.000000e+00> : vector<16x512xf32>
    %77 = tpu.matmul %74, %76, %cst_72 {dimension_numbers = #tpu.dot_dimension_numbers<[1], [0], [0], [1], [0, 0, 1, 1], [], []>} : vector<16x512xbf16>, vector<512x512xbf16>, vector<16x512xf32> -> vector<16x512xf32>
    %78 = arith.addf %72, %77 : vector<16x512xf32>
    %79 = vector.shape_cast %78 : vector<16x512xf32> to vector<1x16x512xf32>
    %c0_73 = arith.constant 0 : index
    %c0_74 = arith.constant 0 : index
    %c0_75 = arith.constant 0 : index
    %80 = vector.load %arg1[%c0_73, %c0_74, %c0_75] : memref<1x16x512xf32, #tpu.memory_space<vmem>>, vector<1x16x512xf32>
    %81 = arith.addf %80, %79 : vector<1x16x512xf32>
    %c0_76 = arith.constant 0 : index
    %c0_77 = arith.constant 0 : index
    %c0_78 = arith.constant 0 : index
    %82 = vector.load %arg6[%c0_76, %c0_77, %c0_78] : memref<1x16x512xf32, #tpu.memory_space<vmem>>, vector<1x16x512xf32>
    tpu.vector_store %arg6[%c0_76, %c0_77, %c0_78], %81 {strides = array<i32>} : memref<1x16x512xf32, #tpu.memory_space<vmem>>, vector<1x16x512xf32>,
    return
  }
  func.func @transform_0(%arg0: i32) -> (i32, i32, i32) {
    %c0_i32 = arith.constant 0 : i32
    %c0_i32_0 = arith.constant 0 : i32
    %c0_i32_1 = arith.constant 0 : i32
    return %arg0, %c0_i32, %c0_i32_0 : i32, i32, i32
  }
  func.func @transform_1(%arg0: i32) -> (i32, i32, i32) {
    %c0_i32 = arith.constant 0 : i32
    %c0_i32_0 = arith.constant 0 : i32
    %c0_i32_1 = arith.constant 0 : i32
    %c0_i32_2 = arith.constant 0 : i32
    return %c0_i32, %c0_i32_0, %c0_i32_1 : i32, i32, i32
  }
  func.func @transform_2(%arg0: i32) -> (i32, i32, i32) {
    %c0_i32 = arith.constant 0 : i32
    %c0_i32_0 = arith.constant 0 : i32
    %c0_i32_1 = arith.constant 0 : i32
    %c0_i32_2 = arith.constant 0 : i32
    return %c0_i32, %c0_i32_0, %c0_i32_1 : i32, i32, i32
  }
  func.func @transform_3(%arg0: i32) -> (i32, i32, i32) {
    %c0_i32 = arith.constant 0 : i32
    %c0_i32_0 = arith.constant 0 : i32
    %c0_i32_1 = arith.constant 0 : i32
    %c0_i32_2 = arith.constant 0 : i32
    return %c0_i32, %c0_i32_0, %c0_i32_1 : i32, i32, i32
  }
  func.func @transform_4(%arg0: i32) -> (i32, i32, i32) {
    %c0_i32 = arith.constant 0 : i32
    %c0_i32_0 = arith.constant 0 : i32
    %c0_i32_1 = arith.constant 0 : i32
    %c0_i32_2 = arith.constant 0 : i32
    return %c0_i32, %c0_i32_0, %c0_i32_1 : i32, i32, i32
  }
  func.func @transform_5(%arg0: i32) -> (i32, i32, i32) {
    %c0_i32 = arith.constant 0 : i32
    %c0_i32_0 = arith.constant 0 : i32
    %c0_i32_1 = arith.constant 0 : i32
    return %arg0, %c0_i32, %c0_i32_0 : i32, i32, i32
  }
}

</mosaic_0001>

<llo_original>
// kernel: tile.18
$region0: #{tile.18}
  #allocation0 [shape = 's32[1]{0}', space=sflag, size = 0x4, scoped, tag = 'scoped memory for tile.18']
  %s0 = inlined_call_operand.vmem [shape: f32[32], index: 0, kind: input, shape index: {}]
  %s1 = inlined_call_operand.vmem [shape: f32[16,32], index: 1, kind: output, shape index: {}]
  // Predicated region
  $region2: #{tile.18} parent=0 // pred_check
    _
  $region3: #{tile.18} parent=0 // pred_check_branch
    %3 = sbr.rel (0) target = $region5
  $region4: #{tile.18} parent=0 // pred_region
    _
  $region5: #{tile.18} parent=0 // pred_fallthru
    _
  %v4 = vld [vmem:[%s0] ss:$0 sm:$0xff]
  %5 = vst [vmem:[%s1] sm:$0xff] %v4
  %s6 = scalar_lea.vmem %s1, 8
  %7 = vst [vmem:[%s6] sm:$0xff] %v4

// kernel: tile.22
$region0: #{tile.22}
  %s0 = inlined_call_operand.vmem [shape: f32[16,32], index: 0, kind: input, shape index: {}]
  %s1 = inlined_call_operand.vmem [shape: f32[1,512], index: 1, kind: output, shape index: {}]
  $region1: #{tile.22} parent=0
    #allocation0 [shape = 'u8[16384]{0}', space=vmem, size = 0x4000, scoped, tag = 'scoped mem for output reshape']
    %v2 = vld [vmem:[%s0] ss:$4 sm:$0xf]
    %vm3 = vcmask 261120
    %4 = vst.msk [vmem:[#allocation0] ss:$8 sm:$0xf] %vm3, %v2
    %s5 = scalar_lea.vmem %s0, 3
    %v6 = vld [vmem:[%s5] ss:$4 sm:$0xf]
    %7 = vrot.lane.b32.xlu0 %v6, 96
    %v8 = vpop.permute.xlu0 %7
    %vm9 = vcmask 1048320
    %10 = vst.msk [vmem:[#allocation0] ss:$8 sm:$0xf] %vm9, %v8
    %s11 = scalar_lea.vmem %s0, 2
    %v12 = vld [vmem:[%s11] ss:$4 sm:$0xf]
    %13 = vrot.lane.b32.xlu0 %v12, 64
    %v14 = vpop.permute.xlu0 %13
    %vm15 = vcmask 785920
    %16 = vst.msk [vmem:[#allocation0] ss:$8 sm:$0xf] %vm15, %v14
    %s17 = scalar_lea.vmem %s0, 1
    %v18 = vld [vmem:[%s17] ss:$4 sm:$0xf]
    %19 = vrot.lane.b32.xlu0 %v18, 32
    %v20 = vpop.permute.xlu0 %19
    %vm21 = vcmask 523520
    %22 = vst.msk [vmem:[#allocation0] ss:$8 sm:$0xf] %vm21, %v20
    %s24 = ssub.s32 2, 1
    %v25 = vld [vmem:[#allocation0] sm:%s24]
    %s27 = ssub.s32 2, 1
    %28 = vst [vmem:[%s1] sm:%s27] %v25
    %s29 = scalar_lea.vmem [#allocation0], 8
    %v30 = vld [vmem:[%s29] sm:%s24]
    %s32 = ssub.s32 2, 1
    %s33 = scalar_lea.vmem %s1, 1
    %34 = vst [vmem:[%s33] sm:%s32] %v30
    %s35 = scalar_lea.vmem [#allocation0], 16
    %v36 = vld [vmem:[%s35] sm:%s24]
    %s38 = ssub.s32 2, 1
    %s39 = scalar_lea.vmem %s1, 2
    %40 = vst [vmem:[%s39] sm:%s38] %v36
    %s41 = scalar_lea.vmem [#allocation0], 24
    %v42 = vld [vmem:[%s41] sm:%s24]
    %s44 = ssub.s32 2, 1
    %s45 = scalar_lea.vmem %s1, 3
    %46 = vst [vmem:[%s45] sm:%s44] %v42

// kernel: dualres_forward.1
$region0: #{dualres_forward.1}
  #allocation0 [shape = 'u32[]', space=smem, size = 0x4, offset = 0x4, fixed_abs, tag = 'smem constant byte address 0x4 - core index']
  #allocation1 [shape = 'u32[72,128]{1,0:T(1,128)}', space=vmem, size = 0x9000, scoped, tag = 'internal scratch']
  #allocation2 [shape = 'bf16[1,18,512]{2,1,0:T(8,128)(2,1)}', space=vmem, size = 0x6000, scoped, tag = 'scratch operand']
  %s0 = inlined_call_operand.vmem [shape: f32[2,16,512], index: 0, kind: input, shape index: {}]
  %s1 = inlined_call_operand.vmem [shape: bf16[3,512,512], index: 1, kind: input, shape index: {}]
  %s2 = inlined_call_operand.vmem [shape: bf16[3,512,512], index: 2, kind: input, shape index: {}]
  %s3 = inlined_call_operand.vmem [shape: f32[3,1,512], index: 3, kind: input, shape index: {}]
  %s4 = inlined_call_operand.vmem [shape: f32[3,1,512], index: 4, kind: input, shape index: {}]
  %s5 = inlined_call_operand.vmem [shape: f32[2,16,512], index: 5, kind: output, shape index: {}]
  %s6 = sld [smem:[#allocation0]]
  $region53: #{dualres_forward.1} parent=0
    _
  %s8 = ssub.s32 1, %s6
  %s9 = scalar_select 0, %s8, %s6
  loop: start=0, step=1, limit=4
  $region2: #{dualres_forward.1} parent=0 // loop_pre_header
    _
  $region3: #{dualres_forward.1} parent=0 // loop_header
    %s11 = sphi 0, %s15
    %p12 = scmp.ge.s32.totalorder %s11, 4
    %s21 = sphi 0, %s23
    %s24 = sphi 0, %s21
    %s25 = sphi 0, %s24
    %s41 = sphi 0, %s25
    %s45 = sphi 0, %s45
    %s47 = sphi 0, %s45
    %s48 = sphi 0, %s47
    %s62 = sphi 0, %s48
    %s66 = sphi 0, %s66
    %s68 = sphi 0, %s66
    %s69 = sphi 0, %s68
    %s83 = sphi 0, %s69
    %s87 = sphi 0, %s87
    %s89 = sphi 0, %s87
    %s90 = sphi 0, %s89
    %s104 = sphi 0, %s90
    %s108 = sphi 0, %s108
    %s110 = sphi 0, %s108
    %s111 = sphi 0, %s110
    %s125 = sphi 0, %s111
    %s131 = sphi 0, %s133
    %s134 = sphi 0, %s131
    %s135 = sphi 0, %s134
    %s151 = sphi 0, %s135
  $region4: #{dualres_forward.1} parent=0 // loop_header_branch
    %14 = sbr.rel (%p12) target = $region8
  $region5: #{dualres_forward.1} parent=0 // loop_body
    %s16 = ssub.s32 %s11, 1
    %s17 = ssub.s32 %s11, 2
    %s18 = sadd.s32 %s11, 1
    %s19 = ssub.s32 %s11, %s18
    %p20 = scmp.eq.s32.totalorder %s19, 0
    %s22 = sadd.s32 %s21, 1
    %s23 = scalar_select %p20, %s21, %s22
    %p26 = pneg %p20
    %p27 = scmp.eq.s32.totalorder %s11, 1
    %p28 = por %p26, %p27
    %p29 = scmp.ne.s32.totalorder %s21, %s24
    %p30 = scmp.eq.s32.totalorder %s11, 0
    %p31 = por %p29, %p30
    %p32 = scmp.ne.s32.totalorder %s21, %s24
    %p33 = scmp.eq.s32.totalorder %s16, 1
    %p34 = por %p32, %p33
    %p35 = scmp.ne.s32.totalorder %s24, %s25
    %p36 = scmp.eq.s32.totalorder %s16, 0
    %p37 = por %p35, %p36
    %p38 = scmp.ne.s32.totalorder %s24, %s25
    %p39 = scmp.eq.s32.totalorder %s17, 1
    %p40 = por %p38, %p39
    %p42 = scmp.ne.s32.totalorder %s25, %s41
    %p43 = scmp.eq.s32.totalorder %s17, 0
    %p44 = por %p42, %p43
    %s46 = sadd.s32 %s45, 1
    %p49 = scmp.eq.s32.totalorder %s11, 1
    %p50 = scmp.ne.s32.totalorder %s45, %s47
    %p51 = scmp.eq.s32.totalorder %s11, 0
    %p52 = por %p50, %p51
    %p53 = scmp.ne.s32.totalorder %s45, %s47
    %p54 = scmp.eq.s32.totalorder %s16, 1
    %p55 = por %p53, %p54
    %p56 = scmp.ne.s32.totalorder %s47, %s48
    %p57 = scmp.eq.s32.totalorder %s16, 0
    %p58 = por %p56, %p57
    %p59 = scmp.ne.s32.totalorder %s47, %s48
    %p60 = scmp.eq.s32.totalorder %s17, 1
    %p61 = por %p59, %p60
    %p63 = scmp.ne.s32.totalorder %s48, %s62
    %p64 = scmp.eq.s32.totalorder %s17, 0
    %p65 = por %p63, %p64
    %s67 = sadd.s32 %s66, 1
    %p70 = scmp.eq.s32.totalorder %s11, 1
    %p71 = scmp.ne.s32.totalorder %s66, %s68
    %p72 = scmp.eq.s32.totalorder %s11, 0
    %p73 = por %p71, %p72
    %p74 = scmp.ne.s32.totalorder %s66, %s68
    %p75 = scmp.eq.s32.totalorder %s16, 1
    %p76 = por %p74, %p75
    %p77 = scmp.ne.s32.totalorder %s68, %s69
    %p78 = scmp.eq.s32.totalorder %s16, 0
    %p79 = por %p77, %p78
    %p80 = scmp.ne.s32.totalorder %s68, %s69
    %p81 = scmp.eq.s32.totalorder %s17, 1
    %p82 = por %p80, %p81
    %p84 = scmp.ne.s32.totalorder %s69, %s83
    %p85 = scmp.eq.s32.totalorder %s17, 0
    %p86 = por %p84, %p85
    %s88 = sadd.s32 %s87, 1
    %p91 = scmp.eq.s32.totalorder %s11, 1
    %p92 = scmp.ne.s32.totalorder %s87, %s89
    %p93 = scmp.eq.s32.totalorder %s11, 0
    %p94 = por %p92, %p93
    %p95 = scmp.ne.s32.totalorder %s87, %s89
    %p96 = scmp.eq.s32.totalorder %s16, 1
    %p97 = por %p95, %p96
    %p98 = scmp.ne.s32.totalorder %s89, %s90
    %p99 = scmp.eq.s32.totalorder %s16, 0
    %p100 = por %p98, %p99
    %p101 = scmp.ne.s32.totalorder %s89, %s90
    %p102 = scmp.eq.s32.totalorder %s17, 1
    %p103 = por %p101, %p102
    %p105 = scmp.ne.s32.totalorder %s90, %s104
    %p106 = scmp.eq.s32.totalorder %s17, 0
    %p107 = por %p105, %p106
    %s109 = sadd.s32 %s108, 1
    %p112 = scmp.eq.s32.totalorder %s11, 1
    %p113 = scmp.ne.s32.totalorder %s108, %s110
    %p114 = scmp.eq.s32.totalorder %s11, 0
    %p115 = por %p113, %p114
    %p116 = scmp.ne.s32.totalorder %s108, %s110
    %p117 = scmp.eq.s32.totalorder %s16, 1
    %p118 = por %p116, %p117
    %p119 = scmp.ne.s32.totalorder %s110, %s111
    %p120 = scmp.eq.s32.totalorder %s16, 0
    %p121 = por %p119, %p120
    %p122 = scmp.ne.s32.totalorder %s110, %s111
    %p123 = scmp.eq.s32.totalorder %s17, 1
    %p124 = por %p122, %p123
    %p126 = scmp.ne.s32.totalorder %s111, %s125
    %p127 = scmp.eq.s32.totalorder %s17, 0
    %p128 = por %p126, %p127
    %s129 = ssub.s32 %s11, %s18
    %p130 = scmp.eq.s32.totalorder %s129, 0
    %s132 = sadd.s32 %s131, 1
    %s133 = scalar_select %p130, %s131, %s132
    %p136 = pneg %p130
    %p137 = scmp.eq.s32.totalorder %s11, 1
    %p138 = por %p136, %p137
    %p139 = scmp.ne.s32.totalorder %s131, %s134
    %p140 = scmp.eq.s32.totalorder %s11, 0
    %p141 = por %p139, %p140
    %p142 = scmp.ne.s32.totalorder %s131, %s134
    %p143 = scmp.eq.s32.totalorder %s16, 1
    %p144 = por %p142, %p143
    %p145 = scmp.ne.s32.totalorder %s134, %s135
    %p146 = scmp.eq.s32.totalorder %s16, 0
    %p147 = por %p145, %p146
    %p148 = scmp.ne.s32.totalorder %s134, %s135
    %p149 = scmp.eq.s32.totalorder %s17, 1
    %p150 = por %p148, %p149
    %p152 = scmp.ne.s32.totalorder %s135, %s151
    %p153 = scmp.eq.s32.totalorder %s17, 0
    %p154 = por %p152, %p153
    %p155 = scmp.le.s32.totalorder 1, %s11
    %p156 = scmp.lt.s32.totalorder %s11, 3
    %p157 = pnand %p155, %p156
    %p158 = pneg %p157
    // Predicated region
    $region9: #{dualres_forward.1} parent=5 // pred_check
      _
    $region10: #{dualres_forward.1} parent=5 // pred_check_branch
      %160 = sbr.rel (%p157) target = $region12
    $region11: #{dualres_forward.1} parent=5 // pred_region
      %s161 = ssub.s32 %s11, 1
      // Predicated region
      $region13: #{dualres_forward.1} parent=11 // pred_check
        %p162 = pneg %p58
      $region14: #{dualres_forward.1} parent=11 // pred_check_branch
        %164 = sbr.rel (%p162) target = $region16
      $region15: #{dualres_forward.1} parent=11 // pred_region
        _
      $region16: #{dualres_forward.1} parent=11 // pred_fallthru
        _
      // Predicated region
      $region17: #{dualres_forward.1} parent=11 // pred_check
        %p165 = pneg %p79
      $region18: #{dualres_forward.1} parent=11 // pred_check_branch
        %167 = sbr.rel (%p165) target = $region20
      $region19: #{dualres_forward.1} parent=11 // pred_region
        _
      $region20: #{dualres_forward.1} parent=11 // pred_fallthru
        _
      // Predicated region
      $region21: #{dualres_forward.1} parent=11 // pred_check
        %p168 = pneg %p100
      $region22: #{dualres_forward.1} parent=11 // pred_check_branch
        %170 = sbr.rel (%p168) target = $region24
      $region23: #{dualres_forward.1} parent=11 // pred_region
        _
      $region24: #{dualres_forward.1} parent=11 // pred_fallthru
        _
      // Predicated region
      $region25: #{dualres_forward.1} parent=11 // pred_check
        %p171 = pneg %p121
      $region26: #{dualres_forward.1} parent=11 // pred_check_branch
        %173 = sbr.rel (%p171) target = $region28
      $region27: #{dualres_forward.1} parent=11 // pred_region
        _
      $region28: #{dualres_forward.1} parent=11 // pred_fallthru
        _
    $region12: #{dualres_forward.1} parent=5 // pred_fallthru
      _
    %p174 = scmp.lt.s32.totalorder %s11, 2
    // Predicated region
    $region29: #{dualres_forward.1} parent=5 // pred_check
      %p175 = pneg %p174
    $region30: #{dualres_forward.1} parent=5 // pred_check_branch
      %177 = sbr.rel (%p175) target = $region32
    $region31: #{dualres_forward.1} parent=5 // pred_region
      // Predicated region
      $region33: #{dualres_forward.1} parent=31 // pred_check
        %p178 = pneg %p31
      $region34: #{dualres_forward.1} parent=31 // pred_check_branch
        %180 = sbr.rel (%p178) target = $region36
      $region35: #{dualres_forward.1} parent=31 // pred_region
        %p181 = scmp.lt.s32.totalorder %s11, 1
        %s182 = scalar_select %p181, %s11, 1
        %s183 = smul.addr %s182, 8
        %s184 = smul.addr %s183, 8
        %s185 = scalar_lea.vmem %s0, %s184
      $region36: #{dualres_forward.1} parent=31 // pred_fallthru
        _
    $region32: #{dualres_forward.1} parent=5 // pred_fallthru
      _
    %p186 = scmp.le.s32.totalorder 1, %s11
    %p187 = scmp.lt.s32.totalorder %s11, 3
    %p188 = pnand %p186, %p187
    %p189 = pneg %p188
    // Predicated region
    $region37: #{dualres_forward.1} parent=5 // pred_check
      _
    $region38: #{dualres_forward.1} parent=5 // pred_check_branch
      %191 = sbr.rel (%p188) target = $region40
    $region39: #{dualres_forward.1} parent=5 // pred_region
      %s192 = ssub.s32 %s11, 1
      %p193 = scmp.lt.s32.totalorder %s16, 1
      %s194 = scalar_select %p193, %s16, 1
      %s195 = smul.addr %s194, 8
      %s196 = smul.addr %s195, 8
      %s197 = scalar_lea.vmem %s0, %s196
      %p198 = pneg %p37
      %p199 = pneg %p34
      %p200 = pneg %p58
      %p201 = pneg %p55
      %p202 = pneg %p79
      %p203 = pneg %p76
      %p204 = pneg %p100
      %p205 = pneg %p97
      %p206 = pneg %p121
      %p207 = pneg %p118
      %p208 = pneg %p147
      %p209 = pneg %p144
      %p210 = scmp.lt.s32.totalorder %s16, 1
      %s211 = scalar_select %p210, %s16, 1
      %s212 = smul.addr %s211, 8
      %s213 = smul.addr %s212, 8
      %s214 = scalar_lea.vmem %s5, %s213
      %p215 = scmp.lt.s32.totalorder %s16, 1
      %s216 = scalar_select %p215, %s16, 1
      %s217 = smul.addr %s216, 8
      %s218 = smul.addr %s217, 8
      %s219 = scalar_lea.vmem %s0, %s218
      %p220 = scmp.lt.s32.totalorder %s16, 1
      %s221 = scalar_select %p220, %s16, 1
      %s222 = smul.addr %s221, 8
      %s223 = smul.addr %s222, 8
      %s224 = scalar_lea.vmem %s5, %s223
      %vm226 = vcmask 1040384
      %vm227 = vsmask.f32 256
      %vm228 = vmand %vm226, %vm227
      %vm229 = vcmask 1044484
      %vm230 = vsmask.f32 4352
      %vm231 = vmand %vm229, %vm230
      %vm232 = vmor %vm231, %vm228
      %v233 = vld [vmem:[#allocation2] sm:$0x11]
      %v234 = vsel %vm232, 0, %v233
      %235 = vst [vmem:[#allocation2] sm:$0x11] %v234
      %v236 = vld [vmem:[#allocation2 + $0x8] sm:$0x11]
      %v237 = vsel %vm232, 0, %v236
      %238 = vst [vmem:[#allocation2 + $0x8] sm:$0x11] %v237
      %vm239 = vsmask.f32 7938
      %vm240 = vmand %vm226, %vm239
      %vm241 = vsmask.f32 7954
      %vm242 = vmand %vm229, %vm241
      %vm243 = vmor %vm242, %vm240
      %v244 = vld [vmem:[#allocation2 + $0x20] sm:$0x11]
      %v245 = vsel %vm243, 0, %v244
      %246 = vst [vmem:[#allocation2 + $0x20] sm:$0x11] %v245
      %v247 = vld [vmem:[#allocation2 + $0x28] sm:$0x11]
      %v248 = vsel %vm243, 0, %v247
      %249 = vst [vmem:[#allocation2 + $0x28] sm:$0x11] %v248
      %v250 = vld [vmem:[%s219] sm:$0xff]
      %v251 = vld [vmem:[%s219 + $0x8] sm:$0xff]
      %v252 = vld [vmem:[%s219 + $0x10] sm:$0xff]
      %v253 = vld [vmem:[%s219 + $0x18] sm:$0xff]
      %v254 = vld [vmem:[%s219 + $0x20] sm:$0xff]
      %v255 = vld [vmem:[%s219 + $0x28] sm:$0xff]
      %v256 = vld [vmem:[%s219 + $0x30] sm:$0xff]
      %v257 = vld [vmem:[%s219 + $0x38] sm:$0xff]
      %v258 = vld [vmem:[%s3] sm:$0xf]
      %v260 = vperm.slane %v258, 0
      %v261 = vperm.slane %v258, 1
      %v262 = vperm.slane %v258, 2
      %v263 = vperm.slane %v258, 3
      %v268 = vmul.f32 %v250, %v260
      %v269 = vmul.f32 %v251, %v261
      %v270 = vmul.f32 %v252, %v262
      %v271 = vmul.f32 %v253, %v263
      %v272 = vmul.f32 %v254, %v260
      %v273 = vmul.f32 %v255, %v261
      %v274 = vmul.f32 %v256, %v262
      %v275 = vmul.f32 %v257, %v263
      %s276 = scalar_lea.vmem %s3, 4
      %v277 = vld [vmem:[%s276] sm:$0xf]
      %v279 = vperm.slane %v277, 0
      %v280 = vperm.slane %v277, 1
      %v281 = vperm.slane %v277, 2
      %v282 = vperm.slane %v277, 3
      %v287 = vadd.f32 %v268, %v279
      %v288 = vadd.f32 %v269, %v280
      %v289 = vadd.f32 %v270, %v281
      %v290 = vadd.f32 %v271, %v282
      %v291 = vadd.f32 %v272, %v279
      %v292 = vadd.f32 %v273, %v280
      %v293 = vadd.f32 %v274, %v281
      %v294 = vadd.f32 %v275, %v282
      %vm295 = vcmp.ge.f32.partialorder %v287, 0.0
      %vm296 = vcmp.ge.f32.partialorder %v288, 0.0
      %vm297 = vcmp.ge.f32.partialorder %v289, 0.0
      %vm298 = vcmp.ge.f32.partialorder %v290, 0.0
      %vm299 = vcmp.ge.f32.partialorder %v291, 0.0
      %vm300 = vcmp.ge.f32.partialorder %v292, 0.0
      %vm301 = vcmp.ge.f32.partialorder %v293, 0.0
      %vm302 = vcmp.ge.f32.partialorder %v294, 0.0
      %s303 = scalar_lea.vmem %s3, 8
      %v304 = vld [vmem:[%s303] sm:$0xf]
      %v306 = vperm.slane %v304, 0
      %v307 = vperm.slane %v304, 1
      %v308 = vperm.slane %v304, 2
      %v309 = vperm.slane %v304, 3
      %v314 = vmul.f32 %v306, %v287
      %v315 = vmul.f32 %v307, %v288
      %v316 = vmul.f32 %v308, %v289
      %v317 = vmul.f32 %v309, %v290
      %v318 = vmul.f32 %v306, %v291
      %v319 = vmul.f32 %v307, %v292
      %v320 = vmul.f32 %v308, %v293
      %v321 = vmul.f32 %v309, %v294
      %v322 = vsel %vm295, %v287, %v314
      %v323 = vsel %vm296, %v288, %v315
      %v324 = vsel %vm297, %v289, %v316
      %v325 = vsel %vm298, %v290, %v317
      %v326 = vsel %vm299, %v291, %v318
      %v327 = vsel %vm300, %v292, %v319
      %v328 = vsel %vm301, %v293, %v320
      %v329 = vsel %vm302, %v294, %v321
      %v330 = vpack.c.bf16 %v323, %v322
      %v331 = vpack.c.bf16 %v325, %v324
      %v332 = vpack.c.bf16 %v327, %v326
      %v333 = vpack.c.bf16 %v329, %v328
      %vm334 = vsmask.f32 4368
      %vm335 = vmor %vm227, %vm334
      %v337 = vshrl.u32 %v330, 16
      %v339 = vrot.slane %v337, 7
      %v340 = vshll.u32 %v330, 16
      %v342 = vor.u32 %v339, %v340
      %v344 = vshrl.u32 %v331, 16
      %v346 = vrot.slane %v344, 7
      %v347 = vshll.u32 %v331, 16
      %v349 = vor.u32 %v346, %v347
      %v350 = vrot.slane %v339, 4
      %v352 = vshrl.u32 %v332, 16
      %v354 = vrot.slane %v352, 7
      %v355 = vshll.u32 %v332, 16
      %v357 = vor.u32 %v354, %v355
      %v358 = vsel %vm335, %v350, %v357
      %v359 = vrot.slane %v346, 4
      %v361 = vshrl.u32 %v333, 16
      %v363 = vrot.slane %v361, 7
      %v364 = vshll.u32 %v333, 16
      %v366 = vor.u32 %v363, %v364
      %v367 = vsel %vm335, %v359, %v366
      %v368 = vrot.slane %v354, 4
      %v369 = vrot.slane %v363, 4
      %vm376 = vcmask 1043456
      %vm377 = vmand %vm376, %vm239
      %vm378 = vcmask 1047556
      %vm379 = vmand %vm378, %vm241
      %vm380 = vmor %vm379, %vm377
      %v381 = vld [vmem:[#allocation2] sm:$0xff]
      %v382 = vsel %vm380, %v342, %v381
      %383 = vst [vmem:[#allocation2] sm:$0xff] %v382
      %v384 = vld [vmem:[#allocation2 + $0x8] sm:$0xff]
      %v385 = vsel %vm380, %v349, %v384
      %386 = vst [vmem:[#allocation2 + $0x8] sm:$0xff] %v385
      %387 = vst [vmem:[#allocation2 + $0x10] sm:$0xff] %v358
      %388 = vst [vmem:[#allocation2 + $0x18] sm:$0xff] %v367
      %v389 = vld [vmem:[#allocation2 + $0x20] sm:$0x11]
      %v390 = vsel %vm232, %v368, %v389
      %391 = vst [vmem:[#allocation2 + $0x20] sm:$0x11] %v390
      %v392 = vld [vmem:[#allocation2 + $0x28] sm:$0x11]
      %v393 = vsel %vm232, %v369, %v392
      %394 = vst [vmem:[#allocation2 + $0x28] sm:$0x11] %v393
      %v395 = vld [vmem:[#allocation2] sm:$0xff]
      %v396 = vld [vmem:[#allocation2 + $0x8] sm:$0xff]
      %v397 = vld [vmem:[#allocation2 + $0x10] sm:$0xff]
      %v398 = vld [vmem:[#allocation2 + $0x18] sm:$0xff]
      %v399 = vld [vmem:[%s1] sm:$0xff]
      %v400 = vld [vmem:[%s1 + $0x8] sm:$0xff]
      %v401 = vld [vmem:[%s1 + $0x10] sm:$0xff]
      %v402 = vld [vmem:[%s1 + $0x18] sm:$0xff]
      %v403 = vld [vmem:[%s1 + $0x20] sm:$0xff]
      %v404 = vld [vmem:[%s1 + $0x28] sm:$0xff]
      %v405 = vld [vmem:[%s1 + $0x30] sm:$0xff]
      %v406 = vld [vmem:[%s1 + $0x38] sm:$0xff]
      %v407 = vld [vmem:[%s1 + $0x40] sm:$0xff]
      %v408 = vld [vmem:[%s1 + $0x48] sm:$0xff]
      %v409 = vld [vmem:[%s1 + $0x50] sm:$0xff]
      %v410 = vld [vmem:[%s1 + $0x58] sm:$0xff]
      %v411 = vld [vmem:[%s1 + $0x60] sm:$0xff]
      %v412 = vld [vmem:[%s1 + $0x68] sm:$0xff]
      %v413 = vld [vmem:[%s1 + $0x70] sm:$0xff]
      %v414 = vld [vmem:[%s1 + $0x78] sm:$0xff]
      %v415 = vld [vmem:[%s1 + $0x80] sm:$0xff]
      %v416 = vld [vmem:[%s1 + $0x88] sm:$0xff]
      %v417 = vld [vmem:[%s1 + $0x90] sm:$0xff]
      %v418 = vld [vmem:[%s1 + $0x98] sm:$0xff]
      %v419 = vld [vmem:[%s1 + $0xa0] sm:$0xff]
      %v420 = vld [vmem:[%s1 + $0xa8] sm:$0xff]
      %v421 = vld [vmem:[%s1 + $0xb0] sm:$0xff]
      %v422 = vld [vmem:[%s1 + $0xb8] sm:$0xff]
      %v423 = vld [vmem:[%s1 + $0xc0] sm:$0xff]
      %v424 = vld [vmem:[%s1 + $0xc8] sm:$0xff]
      %v425 = vld [vmem:[%s1 + $0xd0] sm:$0xff]
      %v426 = vld [vmem:[%s1 + $0xd8] sm:$0xff]
      %v427 = vld [vmem:[%s1 + $0xe0] sm:$0xff]
      %v428 = vld [vmem:[%s1 + $0xe8] sm:$0xff]
      %v429 = vld [vmem:[%s1 + $0xf0] sm:$0xff]
      %v430 = vld [vmem:[%s1 + $0xf8] sm:$0xff]
      %v431 = vld [vmem:[%s1 + $0x100] sm:$0xff]
      %v432 = vld [vmem:[%s1 + $0x108] sm:$0xff]
      %v433 = vld [vmem:[%s1 + $0x110] sm:$0xff]
      %v434 = vld [vmem:[%s1 + $0x118] sm:$0xff]
      %v435 = vld [vmem:[%s1 + $0x120] sm:$0xff]
      %v436 = vld [vmem:[%s1 + $0x128] sm:$0xff]
      %v437 = vld [vmem:[%s1 + $0x130] sm:$0xff]
      %v438 = vld [vmem:[%s1 + $0x138] sm:$0xff]
      %v439 = vld [vmem:[%s1 + $0x140] sm:$0xff]
      %v440 = vld [vmem:[%s1 + $0x148] sm:$0xff]
      %v441 = vld [vmem:[%s1 + $0x150] sm:$0xff]
      %v442 = vld [vmem:[%s1 + $0x158] sm:$0xff]
      %v443 = vld [vmem:[%s1 + $0x160] sm:$0xff]
      %v444 = vld [vmem:[%s1 + $0x168] sm:$0xff]
      %v445 = vld [vmem:[%s1 + $0x170] sm:$0xff]
      %v446 = vld [vmem:[%s1 + $0x178] sm:$0xff]
      %v447 = vld [vmem:[%s1 + $0x180] sm:$0xff]
      %v448 = vld [vmem:[%s1 + $0x188] sm:$0xff]
      %v449 = vld [vmem:[%s1 + $0x190] sm:$0xff]
      %v450 = vld [vmem:[%s1 + $0x198] sm:$0xff]
      %v451 = vld [vmem:[%s1 + $0x1a0] sm:$0xff]
      %v452 = vld [vmem:[%s1 + $0x1a8] sm:$0xff]
      %v453 = vld [vmem:[%s1 + $0x1b0] sm:$0xff]
      %v454 = vld [vmem:[%s1 + $0x1b8] sm:$0xff]
      %v455 = vld [vmem:[%s1 + $0x1c0] sm:$0xff]
      %v456 = vld [vmem:[%s1 + $0x1c8] sm:$0xff]
      %v457 = vld [vmem:[%s1 + $0x1d0] sm:$0xff]
      %v458 = vld [vmem:[%s1 + $0x1d8] sm:$0xff]
      %v459 = vld [vmem:[%s1 + $0x1e0] sm:$0xff]
      %v460 = vld [vmem:[%s1 + $0x1e8] sm:$0xff]
      %v461 = vld [vmem:[%s1 + $0x1f0] sm:$0xff]
      %v462 = vld [vmem:[%s1 + $0x1f8] sm:$0xff]
      %v463 = vld [vmem:[%s1 + $0x200] sm:$0xff]
      %v464 = vld [vmem:[%s1 + $0x208] sm:$0xff]
      %v465 = vld [vmem:[%s1 + $0x210] sm:$0xff]
      %v466 = vld [vmem:[%s1 + $0x218] sm:$0xff]
      %v467 = vld [vmem:[%s1 + $0x220] sm:$0xff]
      %v468 = vld [vmem:[%s1 + $0x228] sm:$0xff]
      %v469 = vld [vmem:[%s1 + $0x230] sm:$0xff]
      %v470 = vld [vmem:[%s1 + $0x238] sm:$0xff]
      %v471 = vld [vmem:[%s1 + $0x240] sm:$0xff]
      %v472 = vld [vmem:[%s1 + $0x248] sm:$0xff]
      %v473 = vld [vmem:[%s1 + $0x250] sm:$0xff]
      %v474 = vld [vmem:[%s1 + $0x258] sm:$0xff]
      %v475 = vld [vmem:[%s1 + $0x260] sm:$0xff]
      %v476 = vld [vmem:[%s1 + $0x268] sm:$0xff]
      %v477 = vld [vmem:[%s1 + $0x270] sm:$0xff]
      %v478 = vld [vmem:[%s1 + $0x278] sm:$0xff]
      %v479 = vld [vmem:[%s1 + $0x280] sm:$0xff]
      %v480 = vld [vmem:[%s1 + $0x288] sm:$0xff]
      %v481 = vld [vmem:[%s1 + $0x290] sm:$0xff]
      %v482 = vld [vmem:[%s1 + $0x298] sm:$0xff]
      %v483 = vld [vmem:[%s1 + $0x2a0] sm:$0xff]
      %v484 = vld [vmem:[%s1 + $0x2a8] sm:$0xff]
      %v485 = vld [vmem:[%s1 + $0x2b0] sm:$0xff]
      %v486 = vld [vmem:[%s1 + $0x2b8] sm:$0xff]
      %v487 = vld [vmem:[%s1 + $0x2c0] sm:$0xff]
      %v488 = vld [vmem:[%s1 + $0x2c8] sm:$0xff]
      %v489 = vld [vmem:[%s1 + $0x2d0] sm:$0xff]
      %v490 = vld [vmem:[%s1 + $0x2d8] sm:$0xff]
      %v491 = vld [vmem:[%s1 + $0x2e0] sm:$0xff]
      %v492 = vld [vmem:[%s1 + $0x2e8] sm:$0xff]
      %v493 = vld [vmem:[%s1 + $0x2f0] sm:$0xff]
      %v494 = vld [vmem:[%s1 + $0x2f8] sm:$0xff]
      %v495 = vld [vmem:[%s1 + $0x300] sm:$0xff]
      %v496 = vld [vmem:[%s1 + $0x308] sm:$0xff]
      %v497 = vld [vmem:[%s1 + $0x310] sm:$0xff]
      %v498 = vld [vmem:[%s1 + $0x318] sm:$0xff]
      %v499 = vld [vmem:[%s1 + $0x320] sm:$0xff]
      %v500 = vld [vmem:[%s1 + $0x328] sm:$0xff]
      %v501 = vld [vmem:[%s1 + $0x330] sm:$0xff]
      %v502 = vld [vmem:[%s1 + $0x338] sm:$0xff]
      %v503 = vld [vmem:[%s1 + $0x340] sm:$0xff]
      %v504 = vld [vmem:[%s1 + $0x348] sm:$0xff]
      %v505 = vld [vmem:[%s1 + $0x350] sm:$0xff]
      %v506 = vld [vmem:[%s1 + $0x358] sm:$0xff]
      %v507 = vld [vmem:[%s1 + $0x360] sm:$0xff]
      %v508 = vld [vmem:[%s1 + $0x368] sm:$0xff]
      %v509 = vld [vmem:[%s1 + $0x370] sm:$0xff]
      %v510 = vld [vmem:[%s1 + $0x378] sm:$0xff]
      %v511 = vld [vmem:[%s1 + $0x380] sm:$0xff]
      %v512 = vld [vmem:[%s1 + $0x388] sm:$0xff]
      %v513 = vld [vmem:[%s1 + $0x390] sm:$0xff]
      %v514 = vld [vmem:[%s1 + $0x398] sm:$0xff]
      %v515 = vld [vmem:[%s1 + $0x3a0] sm:$0xff]
      %v516 = vld [vmem:[%s1 + $0x3a8] sm:$0xff]
      %v517 = vld [vmem:[%s1 + $0x3b0] sm:$0xff]
      %v518 = vld [vmem:[%s1 + $0x3b8] sm:$0xff]
      %v519 = vld [vmem:[%s1 + $0x3c0] sm:$0xff]
      %v520 = vld [vmem:[%s1 + $0x3c8] sm:$0xff]
      %v521 = vld [vmem:[%s1 + $0x3d0] sm:$0xff]
      %v522 = vld [vmem:[%s1 + $0x3d8] sm:$0xff]
      %v523 = vld [vmem:[%s1 + $0x3e0] sm:$0xff]
      %v524 = vld [vmem:[%s1 + $0x3e8] sm:$0xff]
      %v525 = vld [vmem:[%s1 + $0x3f0] sm:$0xff]
      %v526 = vld [vmem:[%s1 + $0x3f8] sm:$0xff]
      %v527 = vld [vmem:[#allocation2 + $0x20] sm:$0x11]
      %v528 = vld [vmem:[#allocation2 + $0x28] sm:$0x11]
      %s529 = scalar_lea.vmem %s1, 1024
      %v530 = vld [vmem:[%s529] sm:$0xff]
      %v531 = vld [vmem:[%s529 + $0x8] sm:$0xff]
      %v532 = vld [vmem:[%s529 + $0x10] sm:$0xff]
      %v533 = vld [vmem:[%s529 + $0x18] sm:$0xff]
      %v534 = vld [vmem:[%s529 + $0x20] sm:$0xff]
      %v535 = vld [vmem:[%s529 + $0x28] sm:$0xff]
      %v536 = vld [vmem:[%s529 + $0x30] sm:$0xff]
      %v537 = vld [vmem:[%s529 + $0x38] sm:$0xff]
      %v538 = vld [vmem:[%s529 + $0x40] sm:$0xff]
      %v539 = vld [vmem:[%s529 + $0x48] sm:$0xff]
      %v540 = vld [vmem:[%s529 + $0x50] sm:$0xff]
      %v541 = vld [vmem:[%s529 + $0x58] sm:$0xff]
      %v542 = vld [vmem:[%s529 + $0x60] sm:$0xff]
      %v543 = vld [vmem:[%s529 + $0x68] sm:$0xff]
      %v544 = vld [vmem:[%s529 + $0x70] sm:$0xff]
      %v545 = vld [vmem:[%s529 + $0x78] sm:$0xff]
      %v546 = vld [vmem:[%s529 + $0x80] sm:$0xff]
      %v547 = vld [vmem:[%s529 + $0x88] sm:$0xff]
      %v548 = vld [vmem:[%s529 + $0x90] sm:$0xff]
      %v549 = vld [vmem:[%s529 + $0x98] sm:$0xff]
      %v550 = vld [vmem:[%s529 + $0xa0] sm:$0xff]
      %v551 = vld [vmem:[%s529 + $0xa8] sm:$0xff]
      %v552 = vld [vmem:[%s529 + $0xb0] sm:$0xff]
      %v553 = vld [vmem:[%s529 + $0xb8] sm:$0xff]
      %v554 = vld [vmem:[%s529 + $0xc0] sm:$0xff]
      %v555 = vld [vmem:[%s529 + $0xc8] sm:$0xff]
      %v556 = vld [vmem:[%s529 + $0xd0] sm:$0xff]
      %v557 = vld [vmem:[%s529 + $0xd8] sm:$0xff]
      %v558 = vld [vmem:[%s529 + $0xe0] sm:$0xff]
      %v559 = vld [vmem:[%s529 + $0xe8] sm:$0xff]
      %v560 = vld [vmem:[%s529 + $0xf0] sm:$0xff]
      %v561 = vld [vmem:[%s529 + $0xf8] sm:$0xff]
      %v562 = vld [vmem:[%s529 + $0x100] sm:$0xff]
      %v563 = vld [vmem:[%s529 + $0x108] sm:$0xff]
      %v564 = vld [vmem:[%s529 + $0x110] sm:$0xff]
      %v565 = vld [vmem:[%s529 + $0x118] sm:$0xff]
      %v566 = vld [vmem:[%s529 + $0x120] sm:$0xff]
      %v567 = vld [vmem:[%s529 + $0x128] sm:$0xff]
      %v568 = vld [vmem:[%s529 + $0x130] sm:$0xff]
      %v569 = vld [vmem:[%s529 + $0x138] sm:$0xff]
      %v570 = vld [vmem:[%s529 + $0x140] sm:$0xff]
      %v571 = vld [vmem:[%s529 + $0x148] sm:$0xff]
      %v572 = vld [vmem:[%s529 + $0x150] sm:$0xff]
      %v573 = vld [vmem:[%s529 + $0x158] sm:$0xff]
      %v574 = vld [vmem:[%s529 + $0x160] sm:$0xff]
      %v575 = vld [vmem:[%s529 + $0x168] sm:$0xff]
      %v576 = vld [vmem:[%s529 + $0x170] sm:$0xff]
      %v577 = vld [vmem:[%s529 + $0x178] sm:$0xff]
      %v578 = vld [vmem:[%s529 + $0x180] sm:$0xff]
      %v579 = vld [vmem:[%s529 + $0x188] sm:$0xff]
      %v580 = vld [vmem:[%s529 + $0x190] sm:$0xff]
      %v581 = vld [vmem:[%s529 + $0x198] sm:$0xff]
      %v582 = vld [vmem:[%s529 + $0x1a0] sm:$0xff]
      %v583 = vld [vmem:[%s529 + $0x1a8] sm:$0xff]
      %v584 = vld [vmem:[%s529 + $0x1b0] sm:$0xff]
      %v585 = vld [vmem:[%s529 + $0x1b8] sm:$0xff]
      %v586 = vld [vmem:[%s529 + $0x1c0] sm:$0xff]
      %v587 = vld [vmem:[%s529 + $0x1c8] sm:$0xff]
      %v588 = vld [vmem:[%s529 + $0x1d0] sm:$0xff]
      %v589 = vld [vmem:[%s529 + $0x1d8] sm:$0xff]
      %v590 = vld [vmem:[%s529 + $0x1e0] sm:$0xff]
      %v591 = vld [vmem:[%s529 + $0x1e8] sm:$0xff]
      %v592 = vld [vmem:[%s529 + $0x1f0] sm:$0xff]
      %v593 = vld [vmem:[%s529 + $0x1f8] sm:$0xff]
      %v594 = vld [vmem:[%s529 + $0x200] sm:$0xff]
      %v595 = vld [vmem:[%s529 + $0x208] sm:$0xff]
      %v596 = vld [vmem:[%s529 + $0x210] sm:$0xff]
      %v597 = vld [vmem:[%s529 + $0x218] sm:$0xff]
      %v598 = vld [vmem:[%s529 + $0x220] sm:$0xff]
      %v599 = vld [vmem:[%s529 + $0x228] sm:$0xff]
      %v600 = vld [vmem:[%s529 + $0x230] sm:$0xff]
      %v601 = vld [vmem:[%s529 + $0x238] sm:$0xff]
      %v602 = vld [vmem:[%s529 + $0x240] sm:$0xff]
      %v603 = vld [vmem:[%s529 + $0x248] sm:$0xff]
      %v604 = vld [vmem:[%s529 + $0x250] sm:$0xff]
      %v605 = vld [vmem:[%s529 + $0x258] sm:$0xff]
      %v606 = vld [vmem:[%s529 + $0x260] sm:$0xff]
      %v607 = vld [vmem:[%s529 + $0x268] sm:$0xff]
      %v608 = vld [vmem:[%s529 + $0x270] sm:$0xff]
      %v609 = vld [vmem:[%s529 + $0x278] sm:$0xff]
      %v610 = vld [vmem:[%s529 + $0x280] sm:$0xff]
      %v611 = vld [vmem:[%s529 + $0x288] sm:$0xff]
      %v612 = vld [vmem:[%s529 + $0x290] sm:$0xff]
      %v613 = vld [vmem:[%s529 + $0x298] sm:$0xff]
      %v614 = vld [vmem:[%s529 + $0x2a0] sm:$0xff]
      %v615 = vld [vmem:[%s529 + $0x2a8] sm:$0xff]
      %v616 = vld [vmem:[%s529 + $0x2b0] sm:$0xff]
      %v617 = vld [vmem:[%s529 + $0x2b8] sm:$0xff]
      %v618 = vld [vmem:[%s529 + $0x2c0] sm:$0xff]
      %v619 = vld [vmem:[%s529 + $0x2c8] sm:$0xff]
      %v620 = vld [vmem:[%s529 + $0x2d0] sm:$0xff]
      %v621 = vld [vmem:[%s529 + $0x2d8] sm:$0xff]
      %v622 = vld [vmem:[%s529 + $0x2e0] sm:$0xff]
      %v623 = vld [vmem:[%s529 + $0x2e8] sm:$0xff]
      %v624 = vld [vmem:[%s529 + $0x2f0] sm:$0xff]
      %v625 = vld [vmem:[%s529 + $0x2f8] sm:$0xff]
      %v626 = vld [vmem:[%s529 + $0x300] sm:$0xff]
      %v627 = vld [vmem:[%s529 + $0x308] sm:$0xff]
      %v628 = vld [vmem:[%s529 + $0x310] sm:$0xff]
      %v629 = vld [vmem:[%s529 + $0x318] sm:$0xff]
      %v630 = vld [vmem:[%s529 + $0x320] sm:$0xff]
      %v631 = vld [vmem:[%s529 + $0x328] sm:$0xff]
      %v632 = vld [vmem:[%s529 + $0x330] sm:$0xff]
      %v633 = vld [vmem:[%s529 + $0x338] sm:$0xff]
      %v634 = vld [vmem:[%s529 + $0x340] sm:$0xff]
      %v635 = vld [vmem:[%s529 + $0x348] sm:$0xff]
      %v636 = vld [vmem:[%s529 + $0x350] sm:$0xff]
      %v637 = vld [vmem:[%s529 + $0x358] sm:$0xff]
      %v638 = vld [vmem:[%s529 + $0x360] sm:$0xff]
      %v639 = vld [vmem:[%s529 + $0x368] sm:$0xff]
      %v640 = vld [vmem:[%s529 + $0x370] sm:$0xff]
      %v641 = vld [vmem:[%s529 + $0x378] sm:$0xff]
      %v642 = vld [vmem:[%s529 + $0x380] sm:$0xff]
      %v643 = vld [vmem:[%s529 + $0x388] sm:$0xff]
      %v644 = vld [vmem:[%s529 + $0x390] sm:$0xff]
      %v645 = vld [vmem:[%s529 + $0x398] sm:$0xff]
      %v646 = vld [vmem:[%s529 + $0x3a0] sm:$0xff]
      %v647 = vld [vmem:[%s529 + $0x3a8] sm:$0xff]
      %v648 = vld [vmem:[%s529 + $0x3b0] sm:$0xff]
      %v649 = vld [vmem:[%s529 + $0x3b8] sm:$0xff]
      %v650 = vld [vmem:[%s529 + $0x3c0] sm:$0xff]
      %v651 = vld [vmem:[%s529 + $0x3c8] sm:$0xff]
      %v652 = vld [vmem:[%s529 + $0x3d0] sm:$0xff]
      %v653 = vld [vmem:[%s529 + $0x3d8] sm:$0xff]
      %v654 = vld [vmem:[%s529 + $0x3e0] sm:$0xff]
      %v655 = vld [vmem:[%s529 + $0x3e8] sm:$0xff]
      %v656 = vld [vmem:[%s529 + $0x3f0] sm:$0xff]
      %v657 = vld [vmem:[%s529 + $0x3f8] sm:$0xff]
      %v664 = vunpack.c.l.b16 %v395
      %v665 = vunpack.c.h.b16 %v395
      %v666 = vunpack.c.l.b16 %v396
      %v667 = vunpack.c.h.b16 %v396
      %v668 = vunpack.c.l.b16 %v397
      %v669 = vunpack.c.h.b16 %v397
      %v670 = vunpack.c.l.b16 %v398
      %v671 = vunpack.c.h.b16 %v398
      %v672 = vunpack.c.l.b16 %v527
      %v673 = vunpack.c.h.b16 %v527
      %v674 = vunpack.c.l.b16 %v528
      %v675 = vunpack.c.h.b16 %v528
      %v676 = vpack.c.b16 %v668, %v664
      %v677 = vpack.c.b16 %v669, %v665
      %v678 = vpack.c.b16 %v670, %v666
      %v679 = vpack.c.b16 %v671, %v667
      %v680 = vpack.c.b16 %v672, %v672
      %v681 = vpack.c.b16 %v673, %v673
      %v682 = vpack.c.b16 %v674, %v674
      %v683 = vpack.c.b16 %v675, %v675
      %vm684 = vsmask.f32 7424
      %v686 = vshrl.u32 %v676, 16
      %v688 = vshll.u32 %v676, 16
      %v690 = vrot.slane %v688, 1
      %v691 = vor.u32 %v686, %v690
      %v693 = vshll.u32 %v680, 16
      %v695 = vrot.slane %v693, 1
      %v696 = vsel %vm684, %v691, %v695
      %v698 = vshrl.u32 %v677, 16
      %v700 = vshll.u32 %v677, 16
      %v702 = vrot.slane %v700, 1
      %v703 = vor.u32 %v698, %v702
      %v705 = vshll.u32 %v681, 16
      %v707 = vrot.slane %v705, 1
      %v708 = vsel %vm684, %v703, %v707
      %v710 = vshrl.u32 %v678, 16
      %v712 = vshll.u32 %v678, 16
      %v714 = vrot.slane %v712, 1
      %v715 = vor.u32 %v710, %v714
      %v717 = vshll.u32 %v682, 16
      %v719 = vrot.slane %v717, 1
      %v720 = vsel %vm684, %v715, %v719
      %v722 = vshrl.u32 %v679, 16
      %v724 = vshll.u32 %v679, 16
      %v726 = vrot.slane %v724, 1
      %v727 = vor.u32 %v722, %v726
      %v729 = vshll.u32 %v683, 16
      %v731 = vrot.slane %v729, 1
      %v732 = vsel %vm684, %v727, %v731
      %v865 = vunpack.c.l.b16 %v530
      %v866 = vunpack.c.h.b16 %v530
      %v867 = vunpack.c.l.b16 %v531
      %v868 = vunpack.c.h.b16 %v531
      %v869 = vunpack.c.l.b16 %v532
      %v870 = vunpack.c.h.b16 %v532
      %v871 = vunpack.c.l.b16 %v533
      %v872 = vunpack.c.h.b16 %v533
      %v873 = vunpack.c.l.b16 %v534
      %v874 = vunpack.c.h.b16 %v534
      %v875 = vunpack.c.l.b16 %v535
      %v876 = vunpack.c.h.b16 %v535
      %v877 = vunpack.c.l.b16 %v536
      %v878 = vunpack.c.h.b16 %v536
      %v879 = vunpack.c.l.b16 %v537
      %v880 = vunpack.c.h.b16 %v537
      %v881 = vunpack.c.l.b16 %v538
      %v882 = vunpack.c.h.b16 %v538
      %v883 = vunpack.c.l.b16 %v539
      %v884 = vunpack.c.h.b16 %v539
      %v885 = vunpack.c.l.b16 %v540
      %v886 = vunpack.c.h.b16 %v540
      %v887 = vunpack.c.l.b16 %v541
      %v888 = vunpack.c.h.b16 %v541
      %v889 = vunpack.c.l.b16 %v542
      %v890 = vunpack.c.h.b16 %v542
      %v891 = vunpack.c.l.b16 %v543
      %v892 = vunpack.c.h.b16 %v543
      %v893 = vunpack.c.l.b16 %v544
      %v894 = vunpack.c.h.b16 %v544
      %v895 = vunpack.c.l.b16 %v545
      %v896 = vunpack.c.h.b16 %v545
      %v897 = vunpack.c.l.b16 %v546
      %v898 = vunpack.c.h.b16 %v546
      %v899 = vunpack.c.l.b16 %v547
      %v900 = vunpack.c.h.b16 %v547
      %v901 = vunpack.c.l.b16 %v548
      %v902 = vunpack.c.h.b16 %v548
      %v903 = vunpack.c.l.b16 %v549
      %v904 = vunpack.c.h.b16 %v549
      %v905 = vunpack.c.l.b16 %v550
      %v906 = vunpack.c.h.b16 %v550
      %v907 = vunpack.c.l.b16 %v551
      %v908 = vunpack.c.h.b16 %v551
      %v909 = vunpack.c.l.b16 %v552
      %v910 = vunpack.c.h.b16 %v552
      %v911 = vunpack.c.l.b16 %v553
      %v912 = vunpack.c.h.b16 %v553
      %v913 = vunpack.c.l.b16 %v554
      %v914 = vunpack.c.h.b16 %v554
      %v915 = vunpack.c.l.b16 %v555
      %v916 = vunpack.c.h.b16 %v555
      %v917 = vunpack.c.l.b16 %v556
      %v918 = vunpack.c.h.b16 %v556
      %v919 = vunpack.c.l.b16 %v557
      %v920 = vunpack.c.h.b16 %v557
      %v921 = vunpack.c.l.b16 %v558
      %v922 = vunpack.c.h.b16 %v558
      %v923 = vunpack.c.l.b16 %v559
      %v924 = vunpack.c.h.b16 %v559
      %v925 = vunpack.c.l.b16 %v560
      %v926 = vunpack.c.h.b16 %v560
      %v927 = vunpack.c.l.b16 %v561
      %v928 = vunpack.c.h.b16 %v561
      %v929 = vunpack.c.l.b16 %v562
      %v930 = vunpack.c.h.b16 %v562
      %v931 = vunpack.c.l.b16 %v563
      %v932 = vunpack.c.h.b16 %v563
      %v933 = vunpack.c.l.b16 %v564
      %v934 = vunpack.c.h.b16 %v564
      %v935 = vunpack.c.l.b16 %v565
      %v936 = vunpack.c.h.b16 %v565
      %v937 = vunpack.c.l.b16 %v566
      %v938 = vunpack.c.h.b16 %v566
      %v939 = vunpack.c.l.b16 %v567
      %v940 = vunpack.c.h.b16 %v567
      %v941 = vunpack.c.l.b16 %v568
      %v942 = vunpack.c.h.b16 %v568
      %v943 = vunpack.c.l.b16 %v569
      %v944 = vunpack.c.h.b16 %v569
      %v945 = vunpack.c.l.b16 %v570
      %v946 = vunpack.c.h.b16 %v570
      %v947 = vunpack.c.l.b16 %v571
      %v948 = vunpack.c.h.b16 %v571
      %v949 = vunpack.c.l.b16 %v572
      %v950 = vunpack.c.h.b16 %v572
      %v951 = vunpack.c.l.b16 %v573
      %v952 = vunpack.c.h.b16 %v573
      %v953 = vunpack.c.l.b16 %v574
      %v954 = vunpack.c.h.b16 %v574
      %v955 = vunpack.c.l.b16 %v575
      %v956 = vunpack.c.h.b16 %v575
      %v957 = vunpack.c.l.b16 %v576
      %v958 = vunpack.c.h.b16 %v576
      %v959 = vunpack.c.l.b16 %v577
      %v960 = vunpack.c.h.b16 %v577
      %v961 = vunpack.c.l.b16 %v578
      %v962 = vunpack.c.h.b16 %v578
      %v963 = vunpack.c.l.b16 %v579
      %v964 = vunpack.c.h.b16 %v579
      %v965 = vunpack.c.l.b16 %v580
      %v966 = vunpack.c.h.b16 %v580
      %v967 = vunpack.c.l.b16 %v581
      %v968 = vunpack.c.h.b16 %v581
      %v969 = vunpack.c.l.b16 %v582
      %v970 = vunpack.c.h.b16 %v582
      %v971 = vunpack.c.l.b16 %v583
      %v972 = vunpack.c.h.b16 %v583
      %v973 = vunpack.c.l.b16 %v584
      %v974 = vunpack.c.h.b16 %v584
      %v975 = vunpack.c.l.b16 %v585
      %v976 = vunpack.c.h.b16 %v585
      %v977 = vunpack.c.l.b16 %v586
      %v978 = vunpack.c.h.b16 %v586
      %v979 = vunpack.c.l.b16 %v587
      %v980 = vunpack.c.h.b16 %v587
      %v981 = vunpack.c.l.b16 %v588
      %v982 = vunpack.c.h.b16 %v588
      %v983 = vunpack.c.l.b16 %v589
      %v984 = vunpack.c.h.b16 %v589
      %v985 = vunpack.c.l.b16 %v590
      %v986 = vunpack.c.h.b16 %v590
      %v987 = vunpack.c.l.b16 %v591
      %v988 = vunpack.c.h.b16 %v591
      %v989 = vunpack.c.l.b16 %v592
      %v990 = vunpack.c.h.b16 %v592
      %v991 = vunpack.c.l.b16 %v593
      %v992 = vunpack.c.h.b16 %v593
      %v993 = vunpack.c.l.b16 %v594
      %v994 = vunpack.c.h.b16 %v594
      %v995 = vunpack.c.l.b16 %v595
      %v996 = vunpack.c.h.b16 %v595
      %v997 = vunpack.c.l.b16 %v596
      %v998 = vunpack.c.h.b16 %v596
      %v999 = vunpack.c.l.b16 %v597
      %v1000 = vunpack.c.h.b16 %v597
      %v1001 = vunpack.c.l.b16 %v598
      %v1002 = vunpack.c.h.b16 %v598
      %v1003 = vunpack.c.l.b16 %v599
      %v1004 = vunpack.c.h.b16 %v599
      %v1005 = vunpack.c.l.b16 %v600
      %v1006 = vunpack.c.h.b16 %v600
      %v1007 = vunpack.c.l.b16 %v601
      %v1008 = vunpack.c.h.b16 %v601
      %v1009 = vunpack.c.l.b16 %v602
      %v1010 = vunpack.c.h.b16 %v602
      %v1011 = vunpack.c.l.b16 %v603
      %v1012 = vunpack.c.h.b16 %v603
      %v1013 = vunpack.c.l.b16 %v604
      %v1014 = vunpack.c.h.b16 %v604
      %v1015 = vunpack.c.l.b16 %v605
      %v1016 = vunpack.c.h.b16 %v605
      %v1017 = vunpack.c.l.b16 %v606
      %v1018 = vunpack.c.h.b16 %v606
      %v1019 = vunpack.c.l.b16 %v607
      %v1020 = vunpack.c.h.b16 %v607
      %v1021 = vunpack.c.l.b16 %v608
      %v1022 = vunpack.c.h.b16 %v608
      %v1023 = vunpack.c.l.b16 %v609
      %v1024 = vunpack.c.h.b16 %v609
      %v1025 = vunpack.c.l.b16 %v610
      %v1026 = vunpack.c.h.b16 %v610
      %v1027 = vunpack.c.l.b16 %v611
      %v1028 = vunpack.c.h.b16 %v611
      %v1029 = vunpack.c.l.b16 %v612
      %v1030 = vunpack.c.h.b16 %v612
      %v1031 = vunpack.c.l.b16 %v613
      %v1032 = vunpack.c.h.b16 %v613
      %v1033 = vunpack.c.l.b16 %v614
      %v1034 = vunpack.c.h.b16 %v614
      %v1035 = vunpack.c.l.b16 %v615
      %v1036 = vunpack.c.h.b16 %v615
      %v1037 = vunpack.c.l.b16 %v616
      %v1038 = vunpack.c.h.b16 %v616
      %v1039 = vunpack.c.l.b16 %v617
      %v1040 = vunpack.c.h.b16 %v617
      %v1041 = vunpack.c.l.b16 %v618
      %v1042 = vunpack.c.h.b16 %v618
      %v1043 = vunpack.c.l.b16 %v619
      %v1044 = vunpack.c.h.b16 %v619
      %v1045 = vunpack.c.l.b16 %v620
      %v1046 = vunpack.c.h.b16 %v620
      %v1047 = vunpack.c.l.b16 %v621
      %v1048 = vunpack.c.h.b16 %v621
      %v1049 = vunpack.c.l.b16 %v622
      %v1050 = vunpack.c.h.b16 %v622
      %v1051 = vunpack.c.l.b16 %v623
      %v1052 = vunpack.c.h.b16 %v623
      %v1053 = vunpack.c.l.b16 %v624
      %v1054 = vunpack.c.h.b16 %v624
      %v1055 = vunpack.c.l.b16 %v625
      %v1056 = vunpack.c.h.b16 %v625
      %v1057 = vunpack.c.l.b16 %v626
      %v1058 = vunpack.c.h.b16 %v626
      %v1059 = vunpack.c.l.b16 %v627
      %v1060 = vunpack.c.h.b16 %v627
      %v1061 = vunpack.c.l.b16 %v628
      %v1062 = vunpack.c.h.b16 %v628
      %v1063 = vunpack.c.l.b16 %v629
      %v1064 = vunpack.c.h.b16 %v629
      %v1065 = vunpack.c.l.b16 %v630
      %v1066 = vunpack.c.h.b16 %v630
      %v1067 = vunpack.c.l.b16 %v631
      %v1068 = vunpack.c.h.b16 %v631
      %v1069 = vunpack.c.l.b16 %v632
      %v1070 = vunpack.c.h.b16 %v632
      %v1071 = vunpack.c.l.b16 %v633
      %v1072 = vunpack.c.h.b16 %v633
      %v1073 = vunpack.c.l.b16 %v634
      %v1074 = vunpack.c.h.b16 %v634
      %v1075 = vunpack.c.l.b16 %v635
      %v1076 = vunpack.c.h.b16 %v635
      %v1077 = vunpack.c.l.b16 %v636
      %v1078 = vunpack.c.h.b16 %v636
      %v1079 = vunpack.c.l.b16 %v637
      %v1080 = vunpack.c.h.b16 %v637
      %v1081 = vunpack.c.l.b16 %v638
      %v1082 = vunpack.c.h.b16 %v638
      %v1083 = vunpack.c.l.b16 %v639
      %v1084 = vunpack.c.h.b16 %v639
      %v1085 = vunpack.c.l.b16 %v640
      %v1086 = vunpack.c.h.b16 %v640
      %v1087 = vunpack.c.l.b16 %v641
      %v1088 = vunpack.c.h.b16 %v641
      %v1089 = vunpack.c.l.b16 %v642
      %v1090 = vunpack.c.h.b16 %v642
      %v1091 = vunpack.c.l.b16 %v643
      %v1092 = vunpack.c.h.b16 %v643
      %v1093 = vunpack.c.l.b16 %v644
      %v1094 = vunpack.c.h.b16 %v644
      %v1095 = vunpack.c.l.b16 %v645
      %v1096 = vunpack.c.h.b16 %v645
      %v1097 = vunpack.c.l.b16 %v646
      %v1098 = vunpack.c.h.b16 %v646
      %v1099 = vunpack.c.l.b16 %v647
      %v1100 = vunpack.c.h.b16 %v647
      %v1101 = vunpack.c.l.b16 %v648
      %v1102 = vunpack.c.h.b16 %v648
      %v1103 = vunpack.c.l.b16 %v649
      %v1104 = vunpack.c.h.b16 %v649
      %v1105 = vunpack.c.l.b16 %v650
      %v1106 = vunpack.c.h.b16 %v650
      %v1107 = vunpack.c.l.b16 %v651
      %v1108 = vunpack.c.h.b16 %v651
      %v1109 = vunpack.c.l.b16 %v652
      %v1110 = vunpack.c.h.b16 %v652
      %v1111 = vunpack.c.l.b16 %v653
      %v1112 = vunpack.c.h.b16 %v653
      %v1113 = vunpack.c.l.b16 %v654
      %v1114 = vunpack.c.h.b16 %v654
      %v1115 = vunpack.c.l.b16 %v655
      %v1116 = vunpack.c.h.b16 %v655
      %v1117 = vunpack.c.l.b16 %v656
      %v1118 = vunpack.c.h.b16 %v656
      %v1119 = vunpack.c.l.b16 %v657
      %v1120 = vunpack.c.h.b16 %v657
      %v1121 = vpack.c.b16 %v869, %v865
      %v1122 = vpack.c.b16 %v870, %v866
      %v1123 = vpack.c.b16 %v871, %v867
      %v1124 = vpack.c.b16 %v872, %v868
      %v1125 = vpack.c.b16 %v877, %v873
      %v1126 = vpack.c.b16 %v878, %v874
      %v1127 = vpack.c.b16 %v879, %v875
      %v1128 = vpack.c.b16 %v880, %v876
      %v1129 = vpack.c.b16 %v885, %v881
      %v1130 = vpack.c.b16 %v886, %v882
      %v1131 = vpack.c.b16 %v887, %v883
      %v1132 = vpack.c.b16 %v888, %v884
      %v1133 = vpack.c.b16 %v893, %v889
      %v1134 = vpack.c.b16 %v894, %v890
      %v1135 = vpack.c.b16 %v895, %v891
      %v1136 = vpack.c.b16 %v896, %v892
      %v1137 = vpack.c.b16 %v901, %v897
      %v1138 = vpack.c.b16 %v902, %v898
      %v1139 = vpack.c.b16 %v903, %v899
      %v1140 = vpack.c.b16 %v904, %v900
      %v1141 = vpack.c.b16 %v909, %v905
      %v1142 = vpack.c.b16 %v910, %v906
      %v1143 = vpack.c.b16 %v911, %v907
      %v1144 = vpack.c.b16 %v912, %v908
      %v1145 = vpack.c.b16 %v917, %v913
      %v1146 = vpack.c.b16 %v918, %v914
      %v1147 = vpack.c.b16 %v919, %v915
      %v1148 = vpack.c.b16 %v920, %v916
      %v1149 = vpack.c.b16 %v925, %v921
      %v1150 = vpack.c.b16 %v926, %v922
      %v1151 = vpack.c.b16 %v927, %v923
      %v1152 = vpack.c.b16 %v928, %v924
      %v1153 = vpack.c.b16 %v933, %v929
      %v1154 = vpack.c.b16 %v934, %v930
      %v1155 = vpack.c.b16 %v935, %v931
      %v1156 = vpack.c.b16 %v936, %v932
      %v1157 = vpack.c.b16 %v941, %v937
      %v1158 = vpack.c.b16 %v942, %v938
      %v1159 = vpack.c.b16 %v943, %v939
      %v1160 = vpack.c.b16 %v944, %v940
      %v1161 = vpack.c.b16 %v949, %v945
      %v1162 = vpack.c.b16 %v950, %v946
      %v1163 = vpack.c.b16 %v951, %v947
      %v1164 = vpack.c.b16 %v952, %v948
      %v1165 = vpack.c.b16 %v957, %v953
      %v1166 = vpack.c.b16 %v958, %v954
      %v1167 = vpack.c.b16 %v959, %v955
      %v1168 = vpack.c.b16 %v960, %v956
      %v1169 = vpack.c.b16 %v965, %v961
      %v1170 = vpack.c.b16 %v966, %v962
      %v1171 = vpack.c.b16 %v967, %v963
      %v1172 = vpack.c.b16 %v968, %v964
      %v1173 = vpack.c.b16 %v973, %v969
      %v1174 = vpack.c.b16 %v974, %v970
      %v1175 = vpack.c.b16 %v975, %v971
      %v1176 = vpack.c.b16 %v976, %v972
      %v1177 = vpack.c.b16 %v981, %v977
      %v1178 = vpack.c.b16 %v982, %v978
      %v1179 = vpack.c.b16 %v983, %v979
      %v1180 = vpack.c.b16 %v984, %v980
      %v1181 = vpack.c.b16 %v989, %v985
      %v1182 = vpack.c.b16 %v990, %v986
      %v1183 = vpack.c.b16 %v991, %v987
      %v1184 = vpack.c.b16 %v992, %v988
      %v1185 = vpack.c.b16 %v997, %v993
      %v1186 = vpack.c.b16 %v998, %v994
      %v1187 = vpack.c.b16 %v999, %v995
      %v1188 = vpack.c.b16 %v1000, %v996
      %v1189 = vpack.c.b16 %v1005, %v1001
      %v1190 = vpack.c.b16 %v1006, %v1002
      %v1191 = vpack.c.b16 %v1007, %v1003
      %v1192 = vpack.c.b16 %v1008, %v1004
      %v1193 = vpack.c.b16 %v1013, %v1009
      %v1194 = vpack.c.b16 %v1014, %v1010
      %v1195 = vpack.c.b16 %v1015, %v1011
      %v1196 = vpack.c.b16 %v1016, %v1012
      %v1197 = vpack.c.b16 %v1021, %v1017
      %v1198 = vpack.c.b16 %v1022, %v1018
      %v1199 = vpack.c.b16 %v1023, %v1019
      %v1200 = vpack.c.b16 %v1024, %v1020
      %v1201 = vpack.c.b16 %v1029, %v1025
      %v1202 = vpack.c.b16 %v1030, %v1026
      %v1203 = vpack.c.b16 %v1031, %v1027
      %v1204 = vpack.c.b16 %v1032, %v1028
      %v1205 = vpack.c.b16 %v1037, %v1033
      %v1206 = vpack.c.b16 %v1038, %v1034
      %v1207 = vpack.c.b16 %v1039, %v1035
      %v1208 = vpack.c.b16 %v1040, %v1036
      %v1209 = vpack.c.b16 %v1045, %v1041
      %v1210 = vpack.c.b16 %v1046, %v1042
      %v1211 = vpack.c.b16 %v1047, %v1043
      %v1212 = vpack.c.b16 %v1048, %v1044
      %v1213 = vpack.c.b16 %v1053, %v1049
      %v1214 = vpack.c.b16 %v1054, %v1050
      %v1215 = vpack.c.b16 %v1055, %v1051
      %v1216 = vpack.c.b16 %v1056, %v1052
      %v1217 = vpack.c.b16 %v1061, %v1057
      %v1218 = vpack.c.b16 %v1062, %v1058
      %v1219 = vpack.c.b16 %v1063, %v1059
      %v1220 = vpack.c.b16 %v1064, %v1060
      %v1221 = vpack.c.b16 %v1069, %v1065
      %v1222 = vpack.c.b16 %v1070, %v1066
      %v1223 = vpack.c.b16 %v1071, %v1067
      %v1224 = vpack.c.b16 %v1072, %v1068
      %v1225 = vpack.c.b16 %v1077, %v1073
      %v1226 = vpack.c.b16 %v1078, %v1074
      %v1227 = vpack.c.b16 %v1079, %v1075
      %v1228 = vpack.c.b16 %v1080, %v1076
      %v1229 = vpack.c.b16 %v1085, %v1081
      %v1230 = vpack.c.b16 %v1086, %v1082
      %v1231 = vpack.c.b16 %v1087, %v1083
      %v1232 = vpack.c.b16 %v1088, %v1084
      %v1233 = vpack.c.b16 %v1093, %v1089
      %v1234 = vpack.c.b16 %v1094, %v1090
      %v1235 = vpack.c.b16 %v1095, %v1091
      %v1236 = vpack.c.b16 %v1096, %v1092
      %v1237 = vpack.c.b16 %v1101, %v1097
      %v1238 = vpack.c.b16 %v1102, %v1098
      %v1239 = vpack.c.b16 %v1103, %v1099
      %v1240 = vpack.c.b16 %v1104, %v1100
      %v1241 = vpack.c.b16 %v1109, %v1105
      %v1242 = vpack.c.b16 %v1110, %v1106
      %v1243 = vpack.c.b16 %v1111, %v1107
      %v1244 = vpack.c.b16 %v1112, %v1108
      %v1245 = vpack.c.b16 %v1117, %v1113
      %v1246 = vpack.c.b16 %v1118, %v1114
      %v1247 = vpack.c.b16 %v1119, %v1115
      %v1248 = vpack.c.b16 %v1120, %v1116
      %1377 = vmatpush.bf16.msra.mxu0 %v1149
      %1378 = vmatpush.bf16.msra.mxu0 %v1145
      %1379 = vmatpush.bf16.msra.mxu0 %v1141
      %1380 = vmatpush.bf16.msra.mxu0 %v1137
      %1381 = vmatpush.bf16.msra.mxu0 %v1133
      %1382 = vmatpush.bf16.msra.mxu0 %v1129
      %1383 = vmatpush.bf16.msra.mxu0 %v1125
      %1384 = vmatpush.bf16.msra.mxu0 %v1121
      %1385 = vmatmul.bf16.gmra.mxu0 %v696
      %v1386 = vpop.f32.mrf.mxu0
      %v1387 = vadd.f32 0.0, %v1386
      %v1388 = vpop.f32.mrf.mxu0
      %v1389 = vadd.f32 0.0, %v1388
      %1390 = vdwg.mxu0
      %1391 = vmatpush.bf16.msra.mxu0 %v1181
      %1392 = vmatpush.bf16.msra.mxu0 %v1177
      %1393 = vmatpush.bf16.msra.mxu0 %v1173
      %1394 = vmatpush.bf16.msra.mxu0 %v1169
      %1395 = vmatpush.bf16.msra.mxu0 %v1165
      %1396 = vmatpush.bf16.msra.mxu0 %v1161
      %1397 = vmatpush.bf16.msra.mxu0 %v1157
      %1398 = vmatpush.bf16.msra.mxu0 %v1153
      %1399 = vmatmul.bf16.gmra.mxu0 %v708
      %v1400 = vpop.f32.mrf.mxu0
      %v1401 = vadd.f32 %v1387, %v1400
      %v1402 = vpop.f32.mrf.mxu0
      %v1403 = vadd.f32 %v1389, %v1402
      %1404 = vdwg.mxu0
      %1405 = vmatpush.bf16.msra.mxu0 %v1213
      %1406 = vmatpush.bf16.msra.mxu0 %v1209
      %1407 = vmatpush.bf16.msra.mxu0 %v1205
      %1408 = vmatpush.bf16.msra.mxu0 %v1201
      %1409 = vmatpush.bf16.msra.mxu0 %v1197
      %1410 = vmatpush.bf16.msra.mxu0 %v1193
      %1411 = vmatpush.bf16.msra.mxu0 %v1189
      %1412 = vmatpush.bf16.msra.mxu0 %v1185
      %1413 = vmatmul.bf16.gmra.mxu0 %v720
      %v1414 = vpop.f32.mrf.mxu0
      %v1415 = vadd.f32 %v1401, %v1414
      %v1416 = vpop.f32.mrf.mxu0
      %v1417 = vadd.f32 %v1403, %v1416
      %1418 = vdwg.mxu0
      %1419 = vmatpush.bf16.msra.mxu0 %v1245
      %1420 = vmatpush.bf16.msra.mxu0 %v1241
      %1421 = vmatpush.bf16.msra.mxu0 %v1237
      %1422 = vmatpush.bf16.msra.mxu0 %v1233
      %1423 = vmatpush.bf16.msra.mxu0 %v1229
      %1424 = vmatpush.bf16.msra.mxu0 %v1225
      %1425 = vmatpush.bf16.msra.mxu0 %v1221
      %1426 = vmatpush.bf16.msra.mxu0 %v1217
      %1427 = vmatmul.bf16.gmra.mxu0 %v732
      %v1428 = vpop.f32.mrf.mxu0
      %v1429 = vadd.f32 %v1415, %v1428
      %v1430 = vpop.f32.mrf.mxu0
      %v1431 = vadd.f32 %v1417, %v1430
      %1432 = vdwg.mxu0
      %1433 = vmatpush.bf16.msra.mxu0 %v1150
      %1434 = vmatpush.bf16.msra.mxu0 %v1146
      %1435 = vmatpush.bf16.msra.mxu0 %v1142
      %1436 = vmatpush.bf16.msra.mxu0 %v1138
      %1437 = vmatpush.bf16.msra.mxu0 %v1134
      %1438 = vmatpush.bf16.msra.mxu0 %v1130
      %1439 = vmatpush.bf16.msra.mxu0 %v1126
      %1440 = vmatpush.bf16.msra.mxu0 %v1122
      %1441 = vmatmul.bf16.gmra.mxu0 %v696
      %v1442 = vpop.f32.mrf.mxu0
      %v1443 = vadd.f32 0.0, %v1442
      %v1444 = vpop.f32.mrf.mxu0
      %v1445 = vadd.f32 0.0, %v1444
      %1446 = vdwg.mxu0
      %1447 = vmatpush.bf16.msra.mxu0 %v1182
      %1448 = vmatpush.bf16.msra.mxu0 %v1178
      %1449 = vmatpush.bf16.msra.mxu0 %v1174
      %1450 = vmatpush.bf16.msra.mxu0 %v1170
      %1451 = vmatpush.bf16.msra.mxu0 %v1166
      %1452 = vmatpush.bf16.msra.mxu0 %v1162
      %1453 = vmatpush.bf16.msra.mxu0 %v1158
      %1454 = vmatpush.bf16.msra.mxu0 %v1154
      %1455 = vmatmul.bf16.gmra.mxu0 %v708
      %v1456 = vpop.f32.mrf.mxu0
      %v1457 = vadd.f32 %v1443, %v1456
      %v1458 = vpop.f32.mrf.mxu0
      %v1459 = vadd.f32 %v1445, %v1458
      %1460 = vdwg.mxu0
      %1461 = vmatpush.bf16.msra.mxu0 %v1214
      %1462 = vmatpush.bf16.msra.mxu0 %v1210
      %1463 = vmatpush.bf16.msra.mxu0 %v1206
      %1464 = vmatpush.bf16.msra.mxu0 %v1202
      %1465 = vmatpush.bf16.msra.mxu0 %v1198
      %1466 = vmatpush.bf16.msra.mxu0 %v1194
      %1467 = vmatpush.bf16.msra.mxu0 %v1190
      %1468 = vmatpush.bf16.msra.mxu0 %v1186
      %1469 = vmatmul.bf16.gmra.mxu0 %v720
      %v1470 = vpop.f32.mrf.mxu0
      %v1471 = vadd.f32 %v1457, %v1470
      %v1472 = vpop.f32.mrf.mxu0
      %v1473 = vadd.f32 %v1459, %v1472
      %1474 = vdwg.mxu0
      %1475 = vmatpush.bf16.msra.mxu0 %v1246
      %1476 = vmatpush.bf16.msra.mxu0 %v1242
      %1477 = vmatpush.bf16.msra.mxu0 %v1238
      %1478 = vmatpush.bf16.msra.mxu0 %v1234
      %1479 = vmatpush.bf16.msra.mxu0 %v1230
      %1480 = vmatpush.bf16.msra.mxu0 %v1226
      %1481 = vmatpush.bf16.msra.mxu0 %v1222
      %1482 = vmatpush.bf16.msra.mxu0 %v1218
      %1483 = vmatmul.bf16.gmra.mxu0 %v732
      %v1484 = vpop.f32.mrf.mxu0
      %v1485 = vadd.f32 %v1471, %v1484
      %v1486 = vpop.f32.mrf.mxu0
      %v1487 = vadd.f32 %v1473, %v1486
      %1488 = vdwg.mxu0
      %1489 = vmatpush.bf16.msra.mxu0 %v1151
      %1490 = vmatpush.bf16.msra.mxu0 %v1147
      %1491 = vmatpush.bf16.msra.mxu0 %v1143
      %1492 = vmatpush.bf16.msra.mxu0 %v1139
      %1493 = vmatpush.bf16.msra.mxu0 %v1135
      %1494 = vmatpush.bf16.msra.mxu0 %v1131
      %1495 = vmatpush.bf16.msra.mxu0 %v1127
      %1496 = vmatpush.bf16.msra.mxu0 %v1123
      %1497 = vmatmul.bf16.gmra.mxu0 %v696
      %v1498 = vpop.f32.mrf.mxu0
      %v1499 = vadd.f32 0.0, %v1498
      %v1500 = vpop.f32.mrf.mxu0
      %v1501 = vadd.f32 0.0, %v1500
      %1502 = vdwg.mxu0
      %1503 = vmatpush.bf16.msra.mxu0 %v1183
      %1504 = vmatpush.bf16.msra.mxu0 %v1179
      %1505 = vmatpush.bf16.msra.mxu0 %v1175
      %1506 = vmatpush.bf16.msra.mxu0 %v1171
      %1507 = vmatpush.bf16.msra.mxu0 %v1167
      %1508 = vmatpush.bf16.msra.mxu0 %v1163
      %1509 = vmatpush.bf16.msra.mxu0 %v1159
      %1510 = vmatpush.bf16.msra.mxu0 %v1155
      %1511 = vmatmul.bf16.gmra.mxu0 %v708
      %v1512 = vpop.f32.mrf.mxu0
      %v1513 = vadd.f32 %v1499, %v1512
      %v1514 = vpop.f32.mrf.mxu0
      %v1515 = vadd.f32 %v1501, %v1514
      %1516 = vdwg.mxu0
      %1517 = vmatpush.bf16.msra.mxu0 %v1215
      %1518 = vmatpush.bf16.msra.mxu0 %v1211
      %1519 = vmatpush.bf16.msra.mxu0 %v1207
      %1520 = vmatpush.bf16.msra.mxu0 %v1203
      %1521 = vmatpush.bf16.msra.mxu0 %v1199
      %1522 = vmatpush.bf16.msra.mxu0 %v1195
      %1523 = vmatpush.bf16.msra.mxu0 %v1191
      %1524 = vmatpush.bf16.msra.mxu0 %v1187
      %1525 = vmatmul.bf16.gmra.mxu0 %v720
      %v1526 = vpop.f32.mrf.mxu0
      %v1527 = vadd.f32 %v1513, %v1526
      %v1528 = vpop.f32.mrf.mxu0
      %v1529 = vadd.f32 %v1515, %v1528
      %1530 = vdwg.mxu0
      %1531 = vmatpush.bf16.msra.mxu0 %v1247
      %1532 = vmatpush.bf16.msra.mxu0 %v1243
      %1533 = vmatpush.bf16.msra.mxu0 %v1239
      %1534 = vmatpush.bf16.msra.mxu0 %v1235
      %1535 = vmatpush.bf16.msra.mxu0 %v1231
      %1536 = vmatpush.bf16.msra.mxu0 %v1227
      %1537 = vmatpush.bf16.msra.mxu0 %v1223
      %1538 = vmatpush.bf16.msra.mxu0 %v1219
      %1539 = vmatmul.bf16.gmra.mxu0 %v732
      %v1540 = vpop.f32.mrf.mxu0
      %v1541 = vadd.f32 %v1527, %v1540
      %v1542 = vpop.f32.mrf.mxu0
      %v1543 = vadd.f32 %v1529, %v1542
      %1544 = vdwg.mxu0
      %1545 = vmatpush.bf16.msra.mxu0 %v1152
      %1546 = vmatpush.bf16.msra.mxu0 %v1148
      %1547 = vmatpush.bf16.msra.mxu0 %v1144
      %1548 = vmatpush.bf16.msra.mxu0 %v1140
      %1549 = vmatpush.bf16.msra.mxu0 %v1136
      %1550 = vmatpush.bf16.msra.mxu0 %v1132
      %1551 = vmatpush.bf16.msra.mxu0 %v1128
      %1552 = vmatpush.bf16.msra.mxu0 %v1124
      %1553 = vmatmul.bf16.gmra.mxu0 %v696
      %v1554 = vpop.f32.mrf.mxu0
      %v1555 = vadd.f32 0.0, %v1554
      %v1556 = vpop.f32.mrf.mxu0
      %v1557 = vadd.f32 0.0, %v1556
      %1558 = vdwg.mxu0
      %1559 = vmatpush.bf16.msra.mxu0 %v1184
      %1560 = vmatpush.bf16.msra.mxu0 %v1180
      %1561 = vmatpush.bf16.msra.mxu0 %v1176
      %1562 = vmatpush.bf16.msra.mxu0 %v1172
      %1563 = vmatpush.bf16.msra.mxu0 %v1168
      %1564 = vmatpush.bf16.msra.mxu0 %v1164
      %1565 = vmatpush.bf16.msra.mxu0 %v1160
      %1566 = vmatpush.bf16.msra.mxu0 %v1156
      %1567 = vmatmul.bf16.gmra.mxu0 %v708
      %v1568 = vpop.f32.mrf.mxu0
      %v1569 = vadd.f32 %v1555, %v1568
      %v1570 = vpop.f32.mrf.mxu0
      %v1571 = vadd.f32 %v1557, %v1570
      %1572 = vdwg.mxu0
      %1573 = vmatpush.bf16.msra.mxu0 %v1216
      %1574 = vmatpush.bf16.msra.mxu0 %v1212
      %1575 = vmatpush.bf16.msra.mxu0 %v1208
      %1576 = vmatpush.bf16.msra.mxu0 %v1204
      %1577 = vmatpush.bf16.msra.mxu0 %v1200
      %1578 = vmatpush.bf16.msra.mxu0 %v1196
      %1579 = vmatpush.bf16.msra.mxu0 %v1192
      %1580 = vmatpush.bf16.msra.mxu0 %v1188
      %1581 = vmatmul.bf16.gmra.mxu0 %v720
      %v1582 = vpop.f32.mrf.mxu0
      %v1583 = vadd.f32 %v1569, %v1582
      %v1584 = vpop.f32.mrf.mxu0
      %v1585 = vadd.f32 %v1571, %v1584
      %1586 = vdwg.mxu0
      %1587 = vmatpush.bf16.msra.mxu0 %v1248
      %1588 = vmatpush.bf16.msra.mxu0 %v1244
      %1589 = vmatpush.bf16.msra.mxu0 %v1240
      %1590 = vmatpush.bf16.msra.mxu0 %v1236
      %1591 = vmatpush.bf16.msra.mxu0 %v1232
      %1592 = vmatpush.bf16.msra.mxu0 %v1228
      %1593 = vmatpush.bf16.msra.mxu0 %v1224
      %1594 = vmatpush.bf16.msra.mxu0 %v1220
      %1595 = vmatmul.bf16.gmra.mxu0 %v732
      %v1596 = vpop.f32.mrf.mxu0
      %v1597 = vadd.f32 %v1583, %v1596
      %v1598 = vpop.f32.mrf.mxu0
      %v1599 = vadd.f32 %v1585, %v1598
      %1600 = vdwg.mxu0
      %v1733 = vunpack.c.l.b16 %v399
      %v1734 = vunpack.c.h.b16 %v399
      %v1735 = vunpack.c.l.b16 %v400
      %v1736 = vunpack.c.h.b16 %v400
      %v1737 = vunpack.c.l.b16 %v401
      %v1738 = vunpack.c.h.b16 %v401
      %v1739 = vunpack.c.l.b16 %v402
      %v1740 = vunpack.c.h.b16 %v402
      %v1741 = vunpack.c.l.b16 %v403
      %v1742 = vunpack.c.h.b16 %v403
      %v1743 = vunpack.c.l.b16 %v404
      %v1744 = vunpack.c.h.b16 %v404
      %v1745 = vunpack.c.l.b16 %v405
      %v1746 = vunpack.c.h.b16 %v405
      %v1747 = vunpack.c.l.b16 %v406
      %v1748 = vunpack.c.h.b16 %v406
      %v1749 = vunpack.c.l.b16 %v407
      %v1750 = vunpack.c.h.b16 %v407
      %v1751 = vunpack.c.l.b16 %v408
      %v1752 = vunpack.c.h.b16 %v408
      %v1753 = vunpack.c.l.b16 %v409
      %v1754 = vunpack.c.h.b16 %v409
      %v1755 = vunpack.c.l.b16 %v410
      %v1756 = vunpack.c.h.b16 %v410
      %v1757 = vunpack.c.l.b16 %v411
      %v1758 = vunpack.c.h.b16 %v411
      %v1759 = vunpack.c.l.b16 %v412
      %v1760 = vunpack.c.h.b16 %v412
      %v1761 = vunpack.c.l.b16 %v413
      %v1762 = vunpack.c.h.b16 %v413
      %v1763 = vunpack.c.l.b16 %v414
      %v1764 = vunpack.c.h.b16 %v414
      %v1765 = vunpack.c.l.b16 %v415
      %v1766 = vunpack.c.h.b16 %v415
      %v1767 = vunpack.c.l.b16 %v416
      %v1768 = vunpack.c.h.b16 %v416
      %v1769 = vunpack.c.l.b16 %v417
      %v1770 = vunpack.c.h.b16 %v417
      %v1771 = vunpack.c.l.b16 %v418
      %v1772 = vunpack.c.h.b16 %v418
      %v1773 = vunpack.c.l.b16 %v419
      %v1774 = vunpack.c.h.b16 %v419
      %v1775 = vunpack.c.l.b16 %v420
      %v1776 = vunpack.c.h.b16 %v420
      %v1777 = vunpack.c.l.b16 %v421
      %v1778 = vunpack.c.h.b16 %v421
      %v1779 = vunpack.c.l.b16 %v422
      %v1780 = vunpack.c.h.b16 %v422
      %v1781 = vunpack.c.l.b16 %v423
      %v1782 = vunpack.c.h.b16 %v423
      %v1783 = vunpack.c.l.b16 %v424
      %v1784 = vunpack.c.h.b16 %v424
      %v1785 = vunpack.c.l.b16 %v425
      %v1786 = vunpack.c.h.b16 %v425
      %v1787 = vunpack.c.l.b16 %v426
      %v1788 = vunpack.c.h.b16 %v426
      %v1789 = vunpack.c.l.b16 %v427
      %v1790 = vunpack.c.h.b16 %v427
      %v1791 = vunpack.c.l.b16 %v428
      %v1792 = vunpack.c.h.b16 %v428
      %v1793 = vunpack.c.l.b16 %v429
      %v1794 = vunpack.c.h.b16 %v429
      %v1795 = vunpack.c.l.b16 %v430
      %v1796 = vunpack.c.h.b16 %v430
      %v1797 = vunpack.c.l.b16 %v431
      %v1798 = vunpack.c.h.b16 %v431
      %v1799 = vunpack.c.l.b16 %v432
      %v1800 = vunpack.c.h.b16 %v432
      %v1801 = vunpack.c.l.b16 %v433
      %v1802 = vunpack.c.h.b16 %v433
      %v1803 = vunpack.c.l.b16 %v434
      %v1804 = vunpack.c.h.b16 %v434
      %v1805 = vunpack.c.l.b16 %v435
      %v1806 = vunpack.c.h.b16 %v435
      %v1807 = vunpack.c.l.b16 %v436
      %v1808 = vunpack.c.h.b16 %v436
      %v1809 = vunpack.c.l.b16 %v437
      %v1810 = vunpack.c.h.b16 %v437
      %v1811 = vunpack.c.l.b16 %v438
      %v1812 = vunpack.c.h.b16 %v438
      %v1813 = vunpack.c.l.b16 %v439
      %v1814 = vunpack.c.h.b16 %v439
      %v1815 = vunpack.c.l.b16 %v440
      %v1816 = vunpack.c.h.b16 %v440
      %v1817 = vunpack.c.l.b16 %v441
      %v1818 = vunpack.c.h.b16 %v441
      %v1819 = vunpack.c.l.b16 %v442
      %v1820 = vunpack.c.h.b16 %v442
      %v1821 = vunpack.c.l.b16 %v443
      %v1822 = vunpack.c.h.b16 %v443
      %v1823 = vunpack.c.l.b16 %v444
      %v1824 = vunpack.c.h.b16 %v444
      %v1825 = vunpack.c.l.b16 %v445
      %v1826 = vunpack.c.h.b16 %v445
      %v1827 = vunpack.c.l.b16 %v446
      %v1828 = vunpack.c.h.b16 %v446
      %v1829 = vunpack.c.l.b16 %v447
      %v1830 = vunpack.c.h.b16 %v447
      %v1831 = vunpack.c.l.b16 %v448
      %v1832 = vunpack.c.h.b16 %v448
      %v1833 = vunpack.c.l.b16 %v449
      %v1834 = vunpack.c.h.b16 %v449
      %v1835 = vunpack.c.l.b16 %v450
      %v1836 = vunpack.c.h.b16 %v450
      %v1837 = vunpack.c.l.b16 %v451
      %v1838 = vunpack.c.h.b16 %v451
      %v1839 = vunpack.c.l.b16 %v452
      %v1840 = vunpack.c.h.b16 %v452
      %v1841 = vunpack.c.l.b16 %v453
      %v1842 = vunpack.c.h.b16 %v453
      %v1843 = vunpack.c.l.b16 %v454
      %v1844 = vunpack.c.h.b16 %v454
      %v1845 = vunpack.c.l.b16 %v455
      %v1846 = vunpack.c.h.b16 %v455
      %v1847 = vunpack.c.l.b16 %v456
      %v1848 = vunpack.c.h.b16 %v456
      %v1849 = vunpack.c.l.b16 %v457
      %v1850 = vunpack.c.h.b16 %v457
      %v1851 = vunpack.c.l.b16 %v458
      %v1852 = vunpack.c.h.b16 %v458
      %v1853 = vunpack.c.l.b16 %v459
      %v1854 = vunpack.c.h.b16 %v459
      %v1855 = vunpack.c.l.b16 %v460
      %v1856 = vunpack.c.h.b16 %v460
      %v1857 = vunpack.c.l.b16 %v461
      %v1858 = vunpack.c.h.b16 %v461
      %v1859 = vunpack.c.l.b16 %v462
      %v1860 = vunpack.c.h.b16 %v462
      %v1861 = vunpack.c.l.b16 %v463
      %v1862 = vunpack.c.h.b16 %v463
      %v1863 = vunpack.c.l.b16 %v464
      %v1864 = vunpack.c.h.b16 %v464
      %v1865 = vunpack.c.l.b16 %v465
      %v1866 = vunpack.c.h.b16 %v465
      %v1867 = vunpack.c.l.b16 %v466
      %v1868 = vunpack.c.h.b16 %v466
      %v1869 = vunpack.c.l.b16 %v467
      %v1870 = vunpack.c.h.b16 %v467
      %v1871 = vunpack.c.l.b16 %v468
      %v1872 = vunpack.c.h.b16 %v468
      %v1873 = vunpack.c.l.b16 %v469
      %v1874 = vunpack.c.h.b16 %v469
      %v1875 = vunpack.c.l.b16 %v470
      %v1876 = vunpack.c.h.b16 %v470
      %v1877 = vunpack.c.l.b16 %v471
      %v1878 = vunpack.c.h.b16 %v471
      %v1879 = vunpack.c.l.b16 %v472
      %v1880 = vunpack.c.h.b16 %v472
      %v1881 = vunpack.c.l.b16 %v473
      %v1882 = vunpack.c.h.b16 %v473
      %v1883 = vunpack.c.l.b16 %v474
      %v1884 = vunpack.c.h.b16 %v474
      %v1885 = vunpack.c.l.b16 %v475
      %v1886 = vunpack.c.h.b16 %v475
      %v1887 = vunpack.c.l.b16 %v476
      %v1888 = vunpack.c.h.b16 %v476
      %v1889 = vunpack.c.l.b16 %v477
      %v1890 = vunpack.c.h.b16 %v477
      %v1891 = vunpack.c.l.b16 %v478
      %v1892 = vunpack.c.h.b16 %v478
      %v1893 = vunpack.c.l.b16 %v479
      %v1894 = vunpack.c.h.b16 %v479
      %v1895 = vunpack.c.l.b16 %v480
      %v1896 = vunpack.c.h.b16 %v480
      %v1897 = vunpack.c.l.b16 %v481
      %v1898 = vunpack.c.h.b16 %v481
      %v1899 = vunpack.c.l.b16 %v482
      %v1900 = vunpack.c.h.b16 %v482
      %v1901 = vunpack.c.l.b16 %v483
      %v1902 = vunpack.c.h.b16 %v483
      %v1903 = vunpack.c.l.b16 %v484
      %v1904 = vunpack.c.h.b16 %v484
      %v1905 = vunpack.c.l.b16 %v485
      %v1906 = vunpack.c.h.b16 %v485
      %v1907 = vunpack.c.l.b16 %v486
      %v1908 = vunpack.c.h.b16 %v486
      %v1909 = vunpack.c.l.b16 %v487
      %v1910 = vunpack.c.h.b16 %v487
      %v1911 = vunpack.c.l.b16 %v488
      %v1912 = vunpack.c.h.b16 %v488
      %v1913 = vunpack.c.l.b16 %v489
      %v1914 = vunpack.c.h.b16 %v489
      %v1915 = vunpack.c.l.b16 %v490
      %v1916 = vunpack.c.h.b16 %v490
      %v1917 = vunpack.c.l.b16 %v491
      %v1918 = vunpack.c.h.b16 %v491
      %v1919 = vunpack.c.l.b16 %v492
      %v1920 = vunpack.c.h.b16 %v492
      %v1921 = vunpack.c.l.b16 %v493
      %v1922 = vunpack.c.h.b16 %v493
      %v1923 = vunpack.c.l.b16 %v494
      %v1924 = vunpack.c.h.b16 %v494
      %v1925 = vunpack.c.l.b16 %v495
      %v1926 = vunpack.c.h.b16 %v495
      %v1927 = vunpack.c.l.b16 %v496
      %v1928 = vunpack.c.h.b16 %v496
      %v1929 = vunpack.c.l.b16 %v497
      %v1930 = vunpack.c.h.b16 %v497
      %v1931 = vunpack.c.l.b16 %v498
      %v1932 = vunpack.c.h.b16 %v498
      %v1933 = vunpack.c.l.b16 %v499
      %v1934 = vunpack.c.h.b16 %v499
      %v1935 = vunpack.c.l.b16 %v500
      %v1936 = vunpack.c.h.b16 %v500
      %v1937 = vunpack.c.l.b16 %v501
      %v1938 = vunpack.c.h.b16 %v501
      %v1939 = vunpack.c.l.b16 %v502
      %v1940 = vunpack.c.h.b16 %v502
      %v1941 = vunpack.c.l.b16 %v503
      %v1942 = vunpack.c.h.b16 %v503
      %v1943 = vunpack.c.l.b16 %v504
      %v1944 = vunpack.c.h.b16 %v504
      %v1945 = vunpack.c.l.b16 %v505
      %v1946 = vunpack.c.h.b16 %v505
      %v1947 = vunpack.c.l.b16 %v506
      %v1948 = vunpack.c.h.b16 %v506
      %v1949 = vunpack.c.l.b16 %v507
      %v1950 = vunpack.c.h.b16 %v507
      %v1951 = vunpack.c.l.b16 %v508
      %v1952 = vunpack.c.h.b16 %v508
      %v1953 = vunpack.c.l.b16 %v509
      %v1954 = vunpack.c.h.b16 %v509
      %v1955 = vunpack.c.l.b16 %v510
      %v1956 = vunpack.c.h.b16 %v510
      %v1957 = vunpack.c.l.b16 %v511
      %v1958 = vunpack.c.h.b16 %v511
      %v1959 = vunpack.c.l.b16 %v512
      %v1960 = vunpack.c.h.b16 %v512
      %v1961 = vunpack.c.l.b16 %v513
      %v1962 = vunpack.c.h.b16 %v513
      %v1963 = vunpack.c.l.b16 %v514
      %v1964 = vunpack.c.h.b16 %v514
      %v1965 = vunpack.c.l.b16 %v515
      %v1966 = vunpack.c.h.b16 %v515
      %v1967 = vunpack.c.l.b16 %v516
      %v1968 = vunpack.c.h.b16 %v516
      %v1969 = vunpack.c.l.b16 %v517
      %v1970 = vunpack.c.h.b16 %v517
      %v1971 = vunpack.c.l.b16 %v518
      %v1972 = vunpack.c.h.b16 %v518
      %v1973 = vunpack.c.l.b16 %v519
      %v1974 = vunpack.c.h.b16 %v519
      %v1975 = vunpack.c.l.b16 %v520
      %v1976 = vunpack.c.h.b16 %v520
      %v1977 = vunpack.c.l.b16 %v521
      %v1978 = vunpack.c.h.b16 %v521
      %v1979 = vunpack.c.l.b16 %v522
      %v1980 = vunpack.c.h.b16 %v522
      %v1981 = vunpack.c.l.b16 %v523
      %v1982 = vunpack.c.h.b16 %v523
      %v1983 = vunpack.c.l.b16 %v524
      %v1984 = vunpack.c.h.b16 %v524
      %v1985 = vunpack.c.l.b16 %v525
      %v1986 = vunpack.c.h.b16 %v525
      %v1987 = vunpack.c.l.b16 %v526
      %v1988 = vunpack.c.h.b16 %v526
      %v1989 = vpack.c.b16 %v1737, %v1733
      %v1990 = vpack.c.b16 %v1738, %v1734
      %v1991 = vpack.c.b16 %v1739, %v1735
      %v1992 = vpack.c.b16 %v1740, %v1736
      %v1993 = vpack.c.b16 %v1745, %v1741
      %v1994 = vpack.c.b16 %v1746, %v1742
      %v1995 = vpack.c.b16 %v1747, %v1743
      %v1996 = vpack.c.b16 %v1748, %v1744
      %v1997 = vpack.c.b16 %v1753, %v1749
      %v1998 = vpack.c.b16 %v1754, %v1750
      %v1999 = vpack.c.b16 %v1755, %v1751
      %v2000 = vpack.c.b16 %v1756, %v1752
      %v2001 = vpack.c.b16 %v1761, %v1757
      %v2002 = vpack.c.b16 %v1762, %v1758
      %v2003 = vpack.c.b16 %v1763, %v1759
      %v2004 = vpack.c.b16 %v1764, %v1760
      %v2005 = vpack.c.b16 %v1769, %v1765
      %v2006 = vpack.c.b16 %v1770, %v1766
      %v2007 = vpack.c.b16 %v1771, %v1767
      %v2008 = vpack.c.b16 %v1772, %v1768
      %v2009 = vpack.c.b16 %v1777, %v1773
      %v2010 = vpack.c.b16 %v1778, %v1774
      %v2011 = vpack.c.b16 %v1779, %v1775
      %v2012 = vpack.c.b16 %v1780, %v1776
      %v2013 = vpack.c.b16 %v1785, %v1781
      %v2014 = vpack.c.b16 %v1786, %v1782
      %v2015 = vpack.c.b16 %v1787, %v1783
      %v2016 = vpack.c.b16 %v1788, %v1784
      %v2017 = vpack.c.b16 %v1793, %v1789
      %v2018 = vpack.c.b16 %v1794, %v1790
      %v2019 = vpack.c.b16 %v1795, %v1791
      %v2020 = vpack.c.b16 %v1796, %v1792
      %v2021 = vpack.c.b16 %v1801, %v1797
      %v2022 = vpack.c.b16 %v1802, %v1798
      %v2023 = vpack.c.b16 %v1803, %v1799
      %v2024 = vpack.c.b16 %v1804, %v1800
      %v2025 = vpack.c.b16 %v1809, %v1805
      %v2026 = vpack.c.b16 %v1810, %v1806
      %v2027 = vpack.c.b16 %v1811, %v1807
      %v2028 = vpack.c.b16 %v1812, %v1808
      %v2029 = vpack.c.b16 %v1817, %v1813
      %v2030 = vpack.c.b16 %v1818, %v1814
      %v2031 = vpack.c.b16 %v1819, %v1815
      %v2032 = vpack.c.b16 %v1820, %v1816
      %v2033 = vpack.c.b16 %v1825, %v1821
      %v2034 = vpack.c.b16 %v1826, %v1822
      %v2035 = vpack.c.b16 %v1827, %v1823
      %v2036 = vpack.c.b16 %v1828, %v1824
      %v2037 = vpack.c.b16 %v1833, %v1829
      %v2038 = vpack.c.b16 %v1834, %v1830
      %v2039 = vpack.c.b16 %v1835, %v1831
      %v2040 = vpack.c.b16 %v1836, %v1832
      %v2041 = vpack.c.b16 %v1841, %v1837
      %v2042 = vpack.c.b16 %v1842, %v1838
      %v2043 = vpack.c.b16 %v1843, %v1839
      %v2044 = vpack.c.b16 %v1844, %v1840
      %v2045 = vpack.c.b16 %v1849, %v1845
      %v2046 = vpack.c.b16 %v1850, %v1846
      %v2047 = vpack.c.b16 %v1851, %v1847
      %v2048 = vpack.c.b16 %v1852, %v1848
      %v2049 = vpack.c.b16 %v1857, %v1853
      %v2050 = vpack.c.b16 %v1858, %v1854
      %v2051 = vpack.c.b16 %v1859, %v1855
      %v2052 = vpack.c.b16 %v1860, %v1856
      %v2053 = vpack.c.b16 %v1865, %v1861
      %v2054 = vpack.c.b16 %v1866, %v1862
      %v2055 = vpack.c.b16 %v1867, %v1863
      %v2056 = vpack.c.b16 %v1868, %v1864
      %v2057 = vpack.c.b16 %v1873, %v1869
      %v2058 = vpack.c.b16 %v1874, %v1870
      %v2059 = vpack.c.b16 %v1875, %v1871
      %v2060 = vpack.c.b16 %v1876, %v1872
      %v2061 = vpack.c.b16 %v1881, %v1877
      %v2062 = vpack.c.b16 %v1882, %v1878
      %v2063 = vpack.c.b16 %v1883, %v1879
      %v2064 = vpack.c.b16 %v1884, %v1880
      %v2065 = vpack.c.b16 %v1889, %v1885
      %v2066 = vpack.c.b16 %v1890, %v1886
      %v2067 = vpack.c.b16 %v1891, %v1887
      %v2068 = vpack.c.b16 %v1892, %v1888
      %v2069 = vpack.c.b16 %v1897, %v1893
      %v2070 = vpack.c.b16 %v1898, %v1894
      %v2071 = vpack.c.b16 %v1899, %v1895
      %v2072 = vpack.c.b16 %v1900, %v1896
      %v2073 = vpack.c.b16 %v1905, %v1901
      %v2074 = vpack.c.b16 %v1906, %v1902
      %v2075 = vpack.c.b16 %v1907, %v1903
      %v2076 = vpack.c.b16 %v1908, %v1904
      %v2077 = vpack.c.b16 %v1913, %v1909
      %v2078 = vpack.c.b16 %v1914, %v1910
      %v2079 = vpack.c.b16 %v1915, %v1911
      %v2080 = vpack.c.b16 %v1916, %v1912
      %v2081 = vpack.c.b16 %v1921, %v1917
      %v2082 = vpack.c.b16 %v1922, %v1918
      %v2083 = vpack.c.b16 %v1923, %v1919
      %v2084 = vpack.c.b16 %v1924, %v1920
      %v2085 = vpack.c.b16 %v1929, %v1925
      %v2086 = vpack.c.b16 %v1930, %v1926
      %v2087 = vpack.c.b16 %v1931, %v1927
      %v2088 = vpack.c.b16 %v1932, %v1928
      %v2089 = vpack.c.b16 %v1937, %v1933
      %v2090 = vpack.c.b16 %v1938, %v1934
      %v2091 = vpack.c.b16 %v1939, %v1935
      %v2092 = vpack.c.b16 %v1940, %v1936
      %v2093 = vpack.c.b16 %v1945, %v1941
      %v2094 = vpack.c.b16 %v1946, %v1942
      %v2095 = vpack.c.b16 %v1947, %v1943
      %v2096 = vpack.c.b16 %v1948, %v1944
      %v2097 = vpack.c.b16 %v1953, %v1949
      %v2098 = vpack.c.b16 %v1954, %v1950
      %v2099 = vpack.c.b16 %v1955, %v1951
      %v2100 = vpack.c.b16 %v1956, %v1952
      %v2101 = vpack.c.b16 %v1961, %v1957
      %v2102 = vpack.c.b16 %v1962, %v1958
      %v2103 = vpack.c.b16 %v1963, %v1959
      %v2104 = vpack.c.b16 %v1964, %v1960
      %v2105 = vpack.c.b16 %v1969, %v1965
      %v2106 = vpack.c.b16 %v1970, %v1966
      %v2107 = vpack.c.b16 %v1971, %v1967
      %v2108 = vpack.c.b16 %v1972, %v1968
      %v2109 = vpack.c.b16 %v1977, %v1973
      %v2110 = vpack.c.b16 %v1978, %v1974
      %v2111 = vpack.c.b16 %v1979, %v1975
      %v2112 = vpack.c.b16 %v1980, %v1976
      %v2113 = vpack.c.b16 %v1985, %v1981
      %v2114 = vpack.c.b16 %v1986, %v1982
      %v2115 = vpack.c.b16 %v1987, %v1983
      %v2116 = vpack.c.b16 %v1988, %v1984
      %2245 = vmatpush.bf16.msra.mxu0 %v2017
      %2246 = vmatpush.bf16.msra.mxu0 %v2013
      %2247 = vmatpush.bf16.msra.mxu0 %v2009
      %2248 = vmatpush.bf16.msra.mxu0 %v2005
      %2249 = vmatpush.bf16.msra.mxu0 %v2001
      %2250 = vmatpush.bf16.msra.mxu0 %v1997
      %2251 = vmatpush.bf16.msra.mxu0 %v1993
      %2252 = vmatpush.bf16.msra.mxu0 %v1989
      %2253 = vmatmul.bf16.gmra.mxu0 %v676
      %v2254 = vpop.f32.mrf.mxu0
      %v2255 = vadd.f32 %v1429, %v2254
      %v2256 = vpop.f32.mrf.mxu0
      %v2257 = vadd.f32 %v1431, %v2256
      %2258 = vdwg.mxu0
      %2259 = vmatpush.bf16.msra.mxu0 %v2049
      %2260 = vmatpush.bf16.msra.mxu0 %v2045
      %2261 = vmatpush.bf16.msra.mxu0 %v2041
      %2262 = vmatpush.bf16.msra.mxu0 %v2037
      %2263 = vmatpush.bf16.msra.mxu0 %v2033
      %2264 = vmatpush.bf16.msra.mxu0 %v2029
      %2265 = vmatpush.bf16.msra.mxu0 %v2025
      %2266 = vmatpush.bf16.msra.mxu0 %v2021
      %2267 = vmatmul.bf16.gmra.mxu0 %v677
      %v2268 = vpop.f32.mrf.mxu0
      %v2269 = vadd.f32 %v2255, %v2268
      %v2270 = vpop.f32.mrf.mxu0
      %v2271 = vadd.f32 %v2257, %v2270
      %2272 = vdwg.mxu0
      %2273 = vmatpush.bf16.msra.mxu0 %v2081
      %2274 = vmatpush.bf16.msra.mxu0 %v2077
      %2275 = vmatpush.bf16.msra.mxu0 %v2073
      %2276 = vmatpush.bf16.msra.mxu0 %v2069
      %2277 = vmatpush.bf16.msra.mxu0 %v2065
      %2278 = vmatpush.bf16.msra.mxu0 %v2061
      %2279 = vmatpush.bf16.msra.mxu0 %v2057
      %2280 = vmatpush.bf16.msra.mxu0 %v2053
      %2281 = vmatmul.bf16.gmra.mxu0 %v678
      %v2282 = vpop.f32.mrf.mxu0
      %v2283 = vadd.f32 %v2269, %v2282
      %v2284 = vpop.f32.mrf.mxu0
      %v2285 = vadd.f32 %v2271, %v2284
      %2286 = vdwg.mxu0
      %2287 = vmatpush.bf16.msra.mxu0 %v2113
      %2288 = vmatpush.bf16.msra.mxu0 %v2109
      %2289 = vmatpush.bf16.msra.mxu0 %v2105
      %2290 = vmatpush.bf16.msra.mxu0 %v2101
      %2291 = vmatpush.bf16.msra.mxu0 %v2097
      %2292 = vmatpush.bf16.msra.mxu0 %v2093
      %2293 = vmatpush.bf16.msra.mxu0 %v2089
      %2294 = vmatpush.bf16.msra.mxu0 %v2085
      %2295 = vmatmul.bf16.gmra.mxu0 %v679
      %v2296 = vpop.f32.mrf.mxu0
      %v2297 = vadd.f32 %v2283, %v2296
      %v2298 = vpop.f32.mrf.mxu0
      %v2299 = vadd.f32 %v2285, %v2298
      %2300 = vdwg.mxu0
      %2301 = vmatpush.bf16.msra.mxu0 %v2018
      %2302 = vmatpush.bf16.msra.mxu0 %v2014
      %2303 = vmatpush.bf16.msra.mxu0 %v2010
      %2304 = vmatpush.bf16.msra.mxu0 %v2006
      %2305 = vmatpush.bf16.msra.mxu0 %v2002
      %2306 = vmatpush.bf16.msra.mxu0 %v1998
      %2307 = vmatpush.bf16.msra.mxu0 %v1994
      %2308 = vmatpush.bf16.msra.mxu0 %v1990
      %2309 = vmatmul.bf16.gmra.mxu0 %v676
      %v2310 = vpop.f32.mrf.mxu0
      %v2311 = vadd.f32 %v1485, %v2310
      %v2312 = vpop.f32.mrf.mxu0
      %v2313 = vadd.f32 %v1487, %v2312
      %2314 = vdwg.mxu0
      %2315 = vmatpush.bf16.msra.mxu0 %v2050
      %2316 = vmatpush.bf16.msra.mxu0 %v2046
      %2317 = vmatpush.bf16.msra.mxu0 %v2042
      %2318 = vmatpush.bf16.msra.mxu0 %v2038
      %2319 = vmatpush.bf16.msra.mxu0 %v2034
      %2320 = vmatpush.bf16.msra.mxu0 %v2030
      %2321 = vmatpush.bf16.msra.mxu0 %v2026
      %2322 = vmatpush.bf16.msra.mxu0 %v2022
      %2323 = vmatmul.bf16.gmra.mxu0 %v677
      %v2324 = vpop.f32.mrf.mxu0
      %v2325 = vadd.f32 %v2311, %v2324
      %v2326 = vpop.f32.mrf.mxu0
      %v2327 = vadd.f32 %v2313, %v2326
      %2328 = vdwg.mxu0
      %2329 = vmatpush.bf16.msra.mxu0 %v2082
      %2330 = vmatpush.bf16.msra.mxu0 %v2078
      %2331 = vmatpush.bf16.msra.mxu0 %v2074
      %2332 = vmatpush.bf16.msra.mxu0 %v2070
      %2333 = vmatpush.bf16.msra.mxu0 %v2066
      %2334 = vmatpush.bf16.msra.mxu0 %v2062
      %2335 = vmatpush.bf16.msra.mxu0 %v2058
      %2336 = vmatpush.bf16.msra.mxu0 %v2054
      %2337 = vmatmul.bf16.gmra.mxu0 %v678
      %v2338 = vpop.f32.mrf.mxu0
      %v2339 = vadd.f32 %v2325, %v2338
      %v2340 = vpop.f32.mrf.mxu0
      %v2341 = vadd.f32 %v2327, %v2340
      %2342 = vdwg.mxu0
      %2343 = vmatpush.bf16.msra.mxu0 %v2114
      %2344 = vmatpush.bf16.msra.mxu0 %v2110
      %2345 = vmatpush.bf16.msra.mxu0 %v2106
      %2346 = vmatpush.bf16.msra.mxu0 %v2102
      %2347 = vmatpush.bf16.msra.mxu0 %v2098
      %2348 = vmatpush.bf16.msra.mxu0 %v2094
      %2349 = vmatpush.bf16.msra.mxu0 %v2090
      %2350 = vmatpush.bf16.msra.mxu0 %v2086
      %2351 = vmatmul.bf16.gmra.mxu0 %v679
      %v2352 = vpop.f32.mrf.mxu0
      %v2353 = vadd.f32 %v2339, %v2352
      %v2354 = vpop.f32.mrf.mxu0
      %v2355 = vadd.f32 %v2341, %v2354
      %2356 = vdwg.mxu0
      %2357 = vmatpush.bf16.msra.mxu0 %v2019
      %2358 = vmatpush.bf16.msra.mxu0 %v2015
      %2359 = vmatpush.bf16.msra.mxu0 %v2011
      %2360 = vmatpush.bf16.msra.mxu0 %v2007
      %2361 = vmatpush.bf16.msra.mxu0 %v2003
      %2362 = vmatpush.bf16.msra.mxu0 %v1999
      %2363 = vmatpush.bf16.msra.mxu0 %v1995
      %2364 = vmatpush.bf16.msra.mxu0 %v1991
      %2365 = vmatmul.bf16.gmra.mxu0 %v676
      %v2366 = vpop.f32.mrf.mxu0
      %v2367 = vadd.f32 %v1541, %v2366
      %v2368 = vpop.f32.mrf.mxu0
      %v2369 = vadd.f32 %v1543, %v2368
      %2370 = vdwg.mxu0
      %2371 = vmatpush.bf16.msra.mxu0 %v2051
      %2372 = vmatpush.bf16.msra.mxu0 %v2047
      %2373 = vmatpush.bf16.msra.mxu0 %v2043
      %2374 = vmatpush.bf16.msra.mxu0 %v2039
      %2375 = vmatpush.bf16.msra.mxu0 %v2035
      %2376 = vmatpush.bf16.msra.mxu0 %v2031
      %2377 = vmatpush.bf16.msra.mxu0 %v2027
      %2378 = vmatpush.bf16.msra.mxu0 %v2023
      %2379 = vmatmul.bf16.gmra.mxu0 %v677
      %v2380 = vpop.f32.mrf.mxu0
      %v2381 = vadd.f32 %v2367, %v2380
      %v2382 = vpop.f32.mrf.mxu0
      %v2383 = vadd.f32 %v2369, %v2382
      %2384 = vdwg.mxu0
      %2385 = vmatpush.bf16.msra.mxu0 %v2083
      %2386 = vmatpush.bf16.msra.mxu0 %v2079
      %2387 = vmatpush.bf16.msra.mxu0 %v2075
      %2388 = vmatpush.bf16.msra.mxu0 %v2071
      %2389 = vmatpush.bf16.msra.mxu0 %v2067
      %2390 = vmatpush.bf16.msra.mxu0 %v2063
      %2391 = vmatpush.bf16.msra.mxu0 %v2059
      %2392 = vmatpush.bf16.msra.mxu0 %v2055
      %2393 = vmatmul.bf16.gmra.mxu0 %v678
      %v2394 = vpop.f32.mrf.mxu0
      %v2395 = vadd.f32 %v2381, %v2394
      %v2396 = vpop.f32.mrf.mxu0
      %v2397 = vadd.f32 %v2383, %v2396
      %2398 = vdwg.mxu0
      %2399 = vmatpush.bf16.msra.mxu0 %v2115
      %2400 = vmatpush.bf16.msra.mxu0 %v2111
      %2401 = vmatpush.bf16.msra.mxu0 %v2107
      %2402 = vmatpush.bf16.msra.mxu0 %v2103
      %2403 = vmatpush.bf16.msra.mxu0 %v2099
      %2404 = vmatpush.bf16.msra.mxu0 %v2095
      %2405 = vmatpush.bf16.msra.mxu0 %v2091
      %2406 = vmatpush.bf16.msra.mxu0 %v2087
      %2407 = vmatmul.bf16.gmra.mxu0 %v679
      %v2408 = vpop.f32.mrf.mxu0
      %v2409 = vadd.f32 %v2395, %v2408
      %v2410 = vpop.f32.mrf.mxu0
      %v2411 = vadd.f32 %v2397, %v2410
      %2412 = vdwg.mxu0
      %2413 = vmatpush.bf16.msra.mxu0 %v2020
      %2414 = vmatpush.bf16.msra.mxu0 %v2016
      %2415 = vmatpush.bf16.msra.mxu0 %v2012
      %2416 = vmatpush.bf16.msra.mxu0 %v2008
      %2417 = vmatpush.bf16.msra.mxu0 %v2004
      %2418 = vmatpush.bf16.msra.mxu0 %v2000
      %2419 = vmatpush.bf16.msra.mxu0 %v1996
      %2420 = vmatpush.bf16.msra.mxu0 %v1992
      %2421 = vmatmul.bf16.gmra.mxu0 %v676
      %v2422 = vpop.f32.mrf.mxu0
      %v2423 = vadd.f32 %v1597, %v2422
      %v2424 = vpop.f32.mrf.mxu0
      %v2425 = vadd.f32 %v1599, %v2424
      %2426 = vdwg.mxu0
      %2427 = vmatpush.bf16.msra.mxu0 %v2052
      %2428 = vmatpush.bf16.msra.mxu0 %v2048
      %2429 = vmatpush.bf16.msra.mxu0 %v2044
      %2430 = vmatpush.bf16.msra.mxu0 %v2040
      %2431 = vmatpush.bf16.msra.mxu0 %v2036
      %2432 = vmatpush.bf16.msra.mxu0 %v2032
      %2433 = vmatpush.bf16.msra.mxu0 %v2028
      %2434 = vmatpush.bf16.msra.mxu0 %v2024
      %2435 = vmatmul.bf16.gmra.mxu0 %v677
      %v2436 = vpop.f32.mrf.mxu0
      %v2437 = vadd.f32 %v2423, %v2436
      %v2438 = vpop.f32.mrf.mxu0
      %v2439 = vadd.f32 %v2425, %v2438
      %2440 = vdwg.mxu0
      %2441 = vmatpush.bf16.msra.mxu0 %v2084
      %2442 = vmatpush.bf16.msra.mxu0 %v2080
      %2443 = vmatpush.bf16.msra.mxu0 %v2076
      %2444 = vmatpush.bf16.msra.mxu0 %v2072
      %2445 = vmatpush.bf16.msra.mxu0 %v2068
      %2446 = vmatpush.bf16.msra.mxu0 %v2064
      %2447 = vmatpush.bf16.msra.mxu0 %v2060
      %2448 = vmatpush.bf16.msra.mxu0 %v2056
      %2449 = vmatmul.bf16.gmra.mxu0 %v678
      %v2450 = vpop.f32.mrf.mxu0
      %v2451 = vadd.f32 %v2437, %v2450
      %v2452 = vpop.f32.mrf.mxu0
      %v2453 = vadd.f32 %v2439, %v2452
      %2454 = vdwg.mxu0
      %2455 = vmatpush.bf16.msra.mxu0 %v2116
      %2456 = vmatpush.bf16.msra.mxu0 %v2112
      %2457 = vmatpush.bf16.msra.mxu0 %v2108
      %2458 = vmatpush.bf16.msra.mxu0 %v2104
      %2459 = vmatpush.bf16.msra.mxu0 %v2100
      %2460 = vmatpush.bf16.msra.mxu0 %v2096
      %2461 = vmatpush.bf16.msra.mxu0 %v2092
      %2462 = vmatpush.bf16.msra.mxu0 %v2088
      %2463 = vmatmul.bf16.gmra.mxu0 %v679
      %v2464 = vpop.f32.mrf.mxu0
      %v2465 = vadd.f32 %v2451, %v2464
      %v2466 = vpop.f32.mrf.mxu0
      %v2467 = vadd.f32 %v2453, %v2466
      %2468 = vdwg.mxu0
      %v2469 = vld [vmem:[#allocation2] sm:$0xee]
      %v2470 = vld [vmem:[#allocation2 + $0x8] sm:$0xee]
      %s2471 = scalar_lea.vmem %s1, 2048
      %v2472 = vld [vmem:[%s2471] sm:$0xff]
      %v2473 = vld [vmem:[%s2471 + $0x8] sm:$0xff]
      %v2474 = vld [vmem:[%s2471 + $0x10] sm:$0xff]
      %v2475 = vld [vmem:[%s2471 + $0x18] sm:$0xff]
      %v2476 = vld [vmem:[%s2471 + $0x20] sm:$0xff]
      %v2477 = vld [vmem:[%s2471 + $0x28] sm:$0xff]
      %v2478 = vld [vmem:[%s2471 + $0x30] sm:$0xff]
      %v2479 = vld [vmem:[%s2471 + $0x38] sm:$0xff]
      %v2480 = vld [vmem:[%s2471 + $0x40] sm:$0xff]
      %v2481 = vld [vmem:[%s2471 + $0x48] sm:$0xff]
      %v2482 = vld [vmem:[%s2471 + $0x50] sm:$0xff]
      %v2483 = vld [vmem:[%s2471 + $0x58] sm:$0xff]
      %v2484 = vld [vmem:[%s2471 + $0x60] sm:$0xff]
      %v2485 = vld [vmem:[%s2471 + $0x68] sm:$0xff]
      %v2486 = vld [vmem:[%s2471 + $0x70] sm:$0xff]
      %v2487 = vld [vmem:[%s2471 + $0x78] sm:$0xff]
      %v2488 = vld [vmem:[%s2471 + $0x80] sm:$0xff]
      %v2489 = vld [vmem:[%s2471 + $0x88] sm:$0xff]
      %v2490 = vld [vmem:[%s2471 + $0x90] sm:$0xff]
      %v2491 = vld [vmem:[%s2471 + $0x98] sm:$0xff]
      %v2492 = vld [vmem:[%s2471 + $0xa0] sm:$0xff]
      %v2493 = vld [vmem:[%s2471 + $0xa8] sm:$0xff]
      %v2494 = vld [vmem:[%s2471 + $0xb0] sm:$0xff]
      %v2495 = vld [vmem:[%s2471 + $0xb8] sm:$0xff]
      %v2496 = vld [vmem:[%s2471 + $0xc0] sm:$0xff]
      %v2497 = vld [vmem:[%s2471 + $0xc8] sm:$0xff]
      %v2498 = vld [vmem:[%s2471 + $0xd0] sm:$0xff]
      %v2499 = vld [vmem:[%s2471 + $0xd8] sm:$0xff]
      %v2500 = vld [vmem:[%s2471 + $0xe0] sm:$0xff]
      %v2501 = vld [vmem:[%s2471 + $0xe8] sm:$0xff]
      %v2502 = vld [vmem:[%s2471 + $0xf0] sm:$0xff]
      %v2503 = vld [vmem:[%s2471 + $0xf8] sm:$0xff]
      %v2504 = vld [vmem:[%s2471 + $0x100] sm:$0xff]
      %v2505 = vld [vmem:[%s2471 + $0x108] sm:$0xff]
      %v2506 = vld [vmem:[%s2471 + $0x110] sm:$0xff]
      %v2507 = vld [vmem:[%s2471 + $0x118] sm:$0xff]
      %v2508 = vld [vmem:[%s2471 + $0x120] sm:$0xff]
      %v2509 = vld [vmem:[%s2471 + $0x128] sm:$0xff]
      %v2510 = vld [vmem:[%s2471 + $0x130] sm:$0xff]
      %v2511 = vld [vmem:[%s2471 + $0x138] sm:$0xff]
      %v2512 = vld [vmem:[%s2471 + $0x140] sm:$0xff]
      %v2513 = vld [vmem:[%s2471 + $0x148] sm:$0xff]
      %v2514 = vld [vmem:[%s2471 + $0x150] sm:$0xff]
      %v2515 = vld [vmem:[%s2471 + $0x158] sm:$0xff]
      %v2516 = vld [vmem:[%s2471 + $0x160] sm:$0xff]
      %v2517 = vld [vmem:[%s2471 + $0x168] sm:$0xff]
      %v2518 = vld [vmem:[%s2471 + $0x170] sm:$0xff]
      %v2519 = vld [vmem:[%s2471 + $0x178] sm:$0xff]
      %v2520 = vld [vmem:[%s2471 + $0x180] sm:$0xff]
      %v2521 = vld [vmem:[%s2471 + $0x188] sm:$0xff]
      %v2522 = vld [vmem:[%s2471 + $0x190] sm:$0xff]
      %v2523 = vld [vmem:[%s2471 + $0x198] sm:$0xff]
      %v2524 = vld [vmem:[%s2471 + $0x1a0] sm:$0xff]
      %v2525 = vld [vmem:[%s2471 + $0x1a8] sm:$0xff]
      %v2526 = vld [vmem:[%s2471 + $0x1b0] sm:$0xff]
      %v2527 = vld [vmem:[%s2471 + $0x1b8] sm:$0xff]
      %v2528 = vld [vmem:[%s2471 + $0x1c0] sm:$0xff]
      %v2529 = vld [vmem:[%s2471 + $0x1c8] sm:$0xff]
      %v2530 = vld [vmem:[%s2471 + $0x1d0] sm:$0xff]
      %v2531 = vld [vmem:[%s2471 + $0x1d8] sm:$0xff]
      %v2532 = vld [vmem:[%s2471 + $0x1e0] sm:$0xff]
      %v2533 = vld [vmem:[%s2471 + $0x1e8] sm:$0xff]
      %v2534 = vld [vmem:[%s2471 + $0x1f0] sm:$0xff]
      %v2535 = vld [vmem:[%s2471 + $0x1f8] sm:$0xff]
      %v2536 = vld [vmem:[%s2471 + $0x200] sm:$0xff]
      %v2537 = vld [vmem:[%s2471 + $0x208] sm:$0xff]
      %v2538 = vld [vmem:[%s2471 + $0x210] sm:$0xff]
      %v2539 = vld [vmem:[%s2471 + $0x218] sm:$0xff]
      %v2540 = vld [vmem:[%s2471 + $0x220] sm:$0xff]
      %v2541 = vld [vmem:[%s2471 + $0x228] sm:$0xff]
      %v2542 = vld [vmem:[%s2471 + $0x230] sm:$0xff]
      %v2543 = vld [vmem:[%s2471 + $0x238] sm:$0xff]
      %v2544 = vld [vmem:[%s2471 + $0x240] sm:$0xff]
      %v2545 = vld [vmem:[%s2471 + $0x248] sm:$0xff]
      %v2546 = vld [vmem:[%s2471 + $0x250] sm:$0xff]
      %v2547 = vld [vmem:[%s2471 + $0x258] sm:$0xff]
      %v2548 = vld [vmem:[%s2471 + $0x260] sm:$0xff]
      %v2549 = vld [vmem:[%s2471 + $0x268] sm:$0xff]
      %v2550 = vld [vmem:[%s2471 + $0x270] sm:$0xff]
      %v2551 = vld [vmem:[%s2471 + $0x278] sm:$0xff]
      %v2552 = vld [vmem:[%s2471 + $0x280] sm:$0xff]
      %v2553 = vld [vmem:[%s2471 + $0x288] sm:$0xff]
      %v2554 = vld [vmem:[%s2471 + $0x290] sm:$0xff]
      %v2555 = vld [vmem:[%s2471 + $0x298] sm:$0xff]
      %v2556 = vld [vmem:[%s2471 + $0x2a0] sm:$0xff]
      %v2557 = vld [vmem:[%s2471 + $0x2a8] sm:$0xff]
      %v2558 = vld [vmem:[%s2471 + $0x2b0] sm:$0xff]
      %v2559 = vld [vmem:[%s2471 + $0x2b8] sm:$0xff]
      %v2560 = vld [vmem:[%s2471 + $0x2c0] sm:$0xff]
      %v2561 = vld [vmem:[%s2471 + $0x2c8] sm:$0xff]
      %v2562 = vld [vmem:[%s2471 + $0x2d0] sm:$0xff]
      %v2563 = vld [vmem:[%s2471 + $0x2d8] sm:$0xff]
      %v2564 = vld [vmem:[%s2471 + $0x2e0] sm:$0xff]
      %v2565 = vld [vmem:[%s2471 + $0x2e8] sm:$0xff]
      %v2566 = vld [vmem:[%s2471 + $0x2f0] sm:$0xff]
      %v2567 = vld [vmem:[%s2471 + $0x2f8] sm:$0xff]
      %v2568 = vld [vmem:[%s2471 + $0x300] sm:$0xff]
      %v2569 = vld [vmem:[%s2471 + $0x308] sm:$0xff]
      %v2570 = vld [vmem:[%s2471 + $0x310] sm:$0xff]
      %v2571 = vld [vmem:[%s2471 + $0x318] sm:$0xff]
      %v2572 = vld [vmem:[%s2471 + $0x320] sm:$0xff]
      %v2573 = vld [vmem:[%s2471 + $0x328] sm:$0xff]
      %v2574 = vld [vmem:[%s2471 + $0x330] sm:$0xff]
      %v2575 = vld [vmem:[%s2471 + $0x338] sm:$0xff]
      %v2576 = vld [vmem:[%s2471 + $0x340] sm:$0xff]
      %v2577 = vld [vmem:[%s2471 + $0x348] sm:$0xff]
      %v2578 = vld [vmem:[%s2471 + $0x350] sm:$0xff]
      %v2579 = vld [vmem:[%s2471 + $0x358] sm:$0xff]
      %v2580 = vld [vmem:[%s2471 + $0x360] sm:$0xff]
      %v2581 = vld [vmem:[%s2471 + $0x368] sm:$0xff]
      %v2582 = vld [vmem:[%s2471 + $0x370] sm:$0xff]
      %v2583 = vld [vmem:[%s2471 + $0x378] sm:$0xff]
      %v2584 = vld [vmem:[%s2471 + $0x380] sm:$0xff]
      %v2585 = vld [vmem:[%s2471 + $0x388] sm:$0xff]
      %v2586 = vld [vmem:[%s2471 + $0x390] sm:$0xff]
      %v2587 = vld [vmem:[%s2471 + $0x398] sm:$0xff]
      %v2588 = vld [vmem:[%s2471 + $0x3a0] sm:$0xff]
      %v2589 = vld [vmem:[%s2471 + $0x3a8] sm:$0xff]
      %v2590 = vld [vmem:[%s2471 + $0x3b0] sm:$0xff]
      %v2591 = vld [vmem:[%s2471 + $0x3b8] sm:$0xff]
      %v2592 = vld [vmem:[%s2471 + $0x3c0] sm:$0xff]
      %v2593 = vld [vmem:[%s2471 + $0x3c8] sm:$0xff]
      %v2594 = vld [vmem:[%s2471 + $0x3d0] sm:$0xff]
      %v2595 = vld [vmem:[%s2471 + $0x3d8] sm:$0xff]
      %v2596 = vld [vmem:[%s2471 + $0x3e0] sm:$0xff]
      %v2597 = vld [vmem:[%s2471 + $0x3e8] sm:$0xff]
      %v2598 = vld [vmem:[%s2471 + $0x3f0] sm:$0xff]
      %v2599 = vld [vmem:[%s2471 + $0x3f8] sm:$0xff]
      %v2602 = vunpack.c.l.b16 %v2469
      %v2603 = vunpack.c.h.b16 %v2469
      %v2604 = vunpack.c.l.b16 %v2470
      %v2605 = vunpack.c.h.b16 %v2470
      %v2606 = vpack.c.b16 %v668, %v2602
      %v2607 = vpack.c.b16 %v669, %v2603
      %v2608 = vpack.c.b16 %v670, %v2604
      %v2609 = vpack.c.b16 %v671, %v2605
      %vm2610 = vcmask 1046528
      %v2611 = vrot.slane %v2606, 1
      %v2612 = vrot.slane %v680, 1
      %v2613 = vsel %vm2610, %v2611, %v2612
      %v2614 = vrot.slane %v2607, 1
      %v2615 = vrot.slane %v681, 1
      %v2616 = vsel %vm2610, %v2614, %v2615
      %v2617 = vrot.slane %v2608, 1
      %v2618 = vrot.slane %v682, 1
      %v2619 = vsel %vm2610, %v2617, %v2618
      %v2620 = vrot.slane %v2609, 1
      %v2621 = vrot.slane %v683, 1
      %v2622 = vsel %vm2610, %v2620, %v2621
      %v2755 = vunpack.c.l.b16 %v2472
      %v2756 = vunpack.c.h.b16 %v2472
      %v2757 = vunpack.c.l.b16 %v2473
      %v2758 = vunpack.c.h.b16 %v2473
      %v2759 = vunpack.c.l.b16 %v2474
      %v2760 = vunpack.c.h.b16 %v2474
      %v2761 = vunpack.c.l.b16 %v2475
      %v2762 = vunpack.c.h.b16 %v2475
      %v2763 = vunpack.c.l.b16 %v2476
      %v2764 = vunpack.c.h.b16 %v2476
      %v2765 = vunpack.c.l.b16 %v2477
      %v2766 = vunpack.c.h.b16 %v2477
      %v2767 = vunpack.c.l.b16 %v2478
      %v2768 = vunpack.c.h.b16 %v2478
      %v2769 = vunpack.c.l.b16 %v2479
      %v2770 = vunpack.c.h.b16 %v2479
      %v2771 = vunpack.c.l.b16 %v2480
      %v2772 = vunpack.c.h.b16 %v2480
      %v2773 = vunpack.c.l.b16 %v2481
      %v2774 = vunpack.c.h.b16 %v2481
      %v2775 = vunpack.c.l.b16 %v2482
      %v2776 = vunpack.c.h.b16 %v2482
      %v2777 = vunpack.c.l.b16 %v2483
      %v2778 = vunpack.c.h.b16 %v2483
      %v2779 = vunpack.c.l.b16 %v2484
      %v2780 = vunpack.c.h.b16 %v2484
      %v2781 = vunpack.c.l.b16 %v2485
      %v2782 = vunpack.c.h.b16 %v2485
      %v2783 = vunpack.c.l.b16 %v2486
      %v2784 = vunpack.c.h.b16 %v2486
      %v2785 = vunpack.c.l.b16 %v2487
      %v2786 = vunpack.c.h.b16 %v2487
      %v2787 = vunpack.c.l.b16 %v2488
      %v2788 = vunpack.c.h.b16 %v2488
      %v2789 = vunpack.c.l.b16 %v2489
      %v2790 = vunpack.c.h.b16 %v2489
      %v2791 = vunpack.c.l.b16 %v2490
      %v2792 = vunpack.c.h.b16 %v2490
      %v2793 = vunpack.c.l.b16 %v2491
      %v2794 = vunpack.c.h.b16 %v2491
      %v2795 = vunpack.c.l.b16 %v2492
      %v2796 = vunpack.c.h.b16 %v2492
      %v2797 = vunpack.c.l.b16 %v2493
      %v2798 = vunpack.c.h.b16 %v2493
      %v2799 = vunpack.c.l.b16 %v2494
      %v2800 = vunpack.c.h.b16 %v2494
      %v2801 = vunpack.c.l.b16 %v2495
      %v2802 = vunpack.c.h.b16 %v2495
      %v2803 = vunpack.c.l.b16 %v2496
      %v2804 = vunpack.c.h.b16 %v2496
      %v2805 = vunpack.c.l.b16 %v2497
      %v2806 = vunpack.c.h.b16 %v2497
      %v2807 = vunpack.c.l.b16 %v2498
      %v2808 = vunpack.c.h.b16 %v2498
      %v2809 = vunpack.c.l.b16 %v2499
      %v2810 = vunpack.c.h.b16 %v2499
      %v2811 = vunpack.c.l.b16 %v2500
      %v2812 = vunpack.c.h.b16 %v2500
      %v2813 = vunpack.c.l.b16 %v2501
      %v2814 = vunpack.c.h.b16 %v2501
      %v2815 = vunpack.c.l.b16 %v2502
      %v2816 = vunpack.c.h.b16 %v2502
      %v2817 = vunpack.c.l.b16 %v2503
      %v2818 = vunpack.c.h.b16 %v2503
      %v2819 = vunpack.c.l.b16 %v2504
      %v2820 = vunpack.c.h.b16 %v2504
      %v2821 = vunpack.c.l.b16 %v2505
      %v2822 = vunpack.c.h.b16 %v2505
      %v2823 = vunpack.c.l.b16 %v2506
      %v2824 = vunpack.c.h.b16 %v2506
      %v2825 = vunpack.c.l.b16 %v2507
      %v2826 = vunpack.c.h.b16 %v2507
      %v2827 = vunpack.c.l.b16 %v2508
      %v2828 = vunpack.c.h.b16 %v2508
      %v2829 = vunpack.c.l.b16 %v2509
      %v2830 = vunpack.c.h.b16 %v2509
      %v2831 = vunpack.c.l.b16 %v2510
      %v2832 = vunpack.c.h.b16 %v2510
      %v2833 = vunpack.c.l.b16 %v2511
      %v2834 = vunpack.c.h.b16 %v2511
      %v2835 = vunpack.c.l.b16 %v2512
      %v2836 = vunpack.c.h.b16 %v2512
      %v2837 = vunpack.c.l.b16 %v2513
      %v2838 = vunpack.c.h.b16 %v2513
      %v2839 = vunpack.c.l.b16 %v2514
      %v2840 = vunpack.c.h.b16 %v2514
      %v2841 = vunpack.c.l.b16 %v2515
      %v2842 = vunpack.c.h.b16 %v2515
      %v2843 = vunpack.c.l.b16 %v2516
      %v2844 = vunpack.c.h.b16 %v2516
      %v2845 = vunpack.c.l.b16 %v2517
      %v2846 = vunpack.c.h.b16 %v2517
      %v2847 = vunpack.c.l.b16 %v2518
      %v2848 = vunpack.c.h.b16 %v2518
      %v2849 = vunpack.c.l.b16 %v2519
      %v2850 = vunpack.c.h.b16 %v2519
      %v2851 = vunpack.c.l.b16 %v2520
      %v2852 = vunpack.c.h.b16 %v2520
      %v2853 = vunpack.c.l.b16 %v2521
      %v2854 = vunpack.c.h.b16 %v2521
      %v2855 = vunpack.c.l.b16 %v2522
      %v2856 = vunpack.c.h.b16 %v2522
      %v2857 = vunpack.c.l.b16 %v2523
      %v2858 = vunpack.c.h.b16 %v2523
      %v2859 = vunpack.c.l.b16 %v2524
      %v2860 = vunpack.c.h.b16 %v2524
      %v2861 = vunpack.c.l.b16 %v2525
      %v2862 = vunpack.c.h.b16 %v2525
      %v2863 = vunpack.c.l.b16 %v2526
      %v2864 = vunpack.c.h.b16 %v2526
      %v2865 = vunpack.c.l.b16 %v2527
      %v2866 = vunpack.c.h.b16 %v2527
      %v2867 = vunpack.c.l.b16 %v2528
      %v2868 = vunpack.c.h.b16 %v2528
      %v2869 = vunpack.c.l.b16 %v2529
      %v2870 = vunpack.c.h.b16 %v2529
      %v2871 = vunpack.c.l.b16 %v2530
      %v2872 = vunpack.c.h.b16 %v2530
      %v2873 = vunpack.c.l.b16 %v2531
      %v2874 = vunpack.c.h.b16 %v2531
      %v2875 = vunpack.c.l.b16 %v2532
      %v2876 = vunpack.c.h.b16 %v2532
      %v2877 = vunpack.c.l.b16 %v2533
      %v2878 = vunpack.c.h.b16 %v2533
      %v2879 = vunpack.c.l.b16 %v2534
      %v2880 = vunpack.c.h.b16 %v2534
      %v2881 = vunpack.c.l.b16 %v2535
      %v2882 = vunpack.c.h.b16 %v2535
      %v2883 = vunpack.c.l.b16 %v2536
      %v2884 = vunpack.c.h.b16 %v2536
      %v2885 = vunpack.c.l.b16 %v2537
      %v2886 = vunpack.c.h.b16 %v2537
      %v2887 = vunpack.c.l.b16 %v2538
      %v2888 = vunpack.c.h.b16 %v2538
      %v2889 = vunpack.c.l.b16 %v2539
      %v2890 = vunpack.c.h.b16 %v2539
      %v2891 = vunpack.c.l.b16 %v2540
      %v2892 = vunpack.c.h.b16 %v2540
      %v2893 = vunpack.c.l.b16 %v2541
      %v2894 = vunpack.c.h.b16 %v2541
      %v2895 = vunpack.c.l.b16 %v2542
      %v2896 = vunpack.c.h.b16 %v2542
      %v2897 = vunpack.c.l.b16 %v2543
      %v2898 = vunpack.c.h.b16 %v2543
      %v2899 = vunpack.c.l.b16 %v2544
      %v2900 = vunpack.c.h.b16 %v2544
      %v2901 = vunpack.c.l.b16 %v2545
      %v2902 = vunpack.c.h.b16 %v2545
      %v2903 = vunpack.c.l.b16 %v2546
      %v2904 = vunpack.c.h.b16 %v2546
      %v2905 = vunpack.c.l.b16 %v2547
      %v2906 = vunpack.c.h.b16 %v2547
      %v2907 = vunpack.c.l.b16 %v2548
      %v2908 = vunpack.c.h.b16 %v2548
      %v2909 = vunpack.c.l.b16 %v2549
      %v2910 = vunpack.c.h.b16 %v2549
      %v2911 = vunpack.c.l.b16 %v2550
      %v2912 = vunpack.c.h.b16 %v2550
      %v2913 = vunpack.c.l.b16 %v2551
      %v2914 = vunpack.c.h.b16 %v2551
      %v2915 = vunpack.c.l.b16 %v2552
      %v2916 = vunpack.c.h.b16 %v2552
      %v2917 = vunpack.c.l.b16 %v2553
      %v2918 = vunpack.c.h.b16 %v2553
      %v2919 = vunpack.c.l.b16 %v2554
      %v2920 = vunpack.c.h.b16 %v2554
      %v2921 = vunpack.c.l.b16 %v2555
      %v2922 = vunpack.c.h.b16 %v2555
      %v2923 = vunpack.c.l.b16 %v2556
      %v2924 = vunpack.c.h.b16 %v2556
      %v2925 = vunpack.c.l.b16 %v2557
      %v2926 = vunpack.c.h.b16 %v2557
      %v2927 = vunpack.c.l.b16 %v2558
      %v2928 = vunpack.c.h.b16 %v2558
      %v2929 = vunpack.c.l.b16 %v2559
      %v2930 = vunpack.c.h.b16 %v2559
      %v2931 = vunpack.c.l.b16 %v2560
      %v2932 = vunpack.c.h.b16 %v2560
      %v2933 = vunpack.c.l.b16 %v2561
      %v2934 = vunpack.c.h.b16 %v2561
      %v2935 = vunpack.c.l.b16 %v2562
      %v2936 = vunpack.c.h.b16 %v2562
      %v2937 = vunpack.c.l.b16 %v2563
      %v2938 = vunpack.c.h.b16 %v2563
      %v2939 = vunpack.c.l.b16 %v2564
      %v2940 = vunpack.c.h.b16 %v2564
      %v2941 = vunpack.c.l.b16 %v2565
      %v2942 = vunpack.c.h.b16 %v2565
      %v2943 = vunpack.c.l.b16 %v2566
      %v2944 = vunpack.c.h.b16 %v2566
      %v2945 = vunpack.c.l.b16 %v2567
      %v2946 = vunpack.c.h.b16 %v2567
      %v2947 = vunpack.c.l.b16 %v2568
      %v2948 = vunpack.c.h.b16 %v2568
      %v2949 = vunpack.c.l.b16 %v2569
      %v2950 = vunpack.c.h.b16 %v2569
      %v2951 = vunpack.c.l.b16 %v2570
      %v2952 = vunpack.c.h.b16 %v2570
      %v2953 = vunpack.c.l.b16 %v2571
      %v2954 = vunpack.c.h.b16 %v2571
      %v2955 = vunpack.c.l.b16 %v2572
      %v2956 = vunpack.c.h.b16 %v2572
      %v2957 = vunpack.c.l.b16 %v2573
      %v2958 = vunpack.c.h.b16 %v2573
      %v2959 = vunpack.c.l.b16 %v2574
      %v2960 = vunpack.c.h.b16 %v2574
      %v2961 = vunpack.c.l.b16 %v2575
      %v2962 = vunpack.c.h.b16 %v2575
      %v2963 = vunpack.c.l.b16 %v2576
      %v2964 = vunpack.c.h.b16 %v2576
      %v2965 = vunpack.c.l.b16 %v2577
      %v2966 = vunpack.c.h.b16 %v2577
      %v2967 = vunpack.c.l.b16 %v2578
      %v2968 = vunpack.c.h.b16 %v2578
      %v2969 = vunpack.c.l.b16 %v2579
      %v2970 = vunpack.c.h.b16 %v2579
      %v2971 = vunpack.c.l.b16 %v2580
      %v2972 = vunpack.c.h.b16 %v2580
      %v2973 = vunpack.c.l.b16 %v2581
      %v2974 = vunpack.c.h.b16 %v2581
      %v2975 = vunpack.c.l.b16 %v2582
      %v2976 = vunpack.c.h.b16 %v2582
      %v2977 = vunpack.c.l.b16 %v2583
      %v2978 = vunpack.c.h.b16 %v2583
      %v2979 = vunpack.c.l.b16 %v2584
      %v2980 = vunpack.c.h.b16 %v2584
      %v2981 = vunpack.c.l.b16 %v2585
      %v2982 = vunpack.c.h.b16 %v2585
      %v2983 = vunpack.c.l.b16 %v2586
      %v2984 = vunpack.c.h.b16 %v2586
      %v2985 = vunpack.c.l.b16 %v2587
      %v2986 = vunpack.c.h.b16 %v2587
      %v2987 = vunpack.c.l.b16 %v2588
      %v2988 = vunpack.c.h.b16 %v2588
      %v2989 = vunpack.c.l.b16 %v2589
      %v2990 = vunpack.c.h.b16 %v2589
      %v2991 = vunpack.c.l.b16 %v2590
      %v2992 = vunpack.c.h.b16 %v2590
      %v2993 = vunpack.c.l.b16 %v2591
      %v2994 = vunpack.c.h.b16 %v2591
      %v2995 = vunpack.c.l.b16 %v2592
      %v2996 = vunpack.c.h.b16 %v2592
      %v2997 = vunpack.c.l.b16 %v2593
      %v2998 = vunpack.c.h.b16 %v2593
      %v2999 = vunpack.c.l.b16 %v2594
      %v3000 = vunpack.c.h.b16 %v2594
      %v3001 = vunpack.c.l.b16 %v2595
      %v3002 = vunpack.c.h.b16 %v2595
      %v3003 = vunpack.c.l.b16 %v2596
      %v3004 = vunpack.c.h.b16 %v2596
      %v3005 = vunpack.c.l.b16 %v2597
      %v3006 = vunpack.c.h.b16 %v2597
      %v3007 = vunpack.c.l.b16 %v2598
      %v3008 = vunpack.c.h.b16 %v2598
      %v3009 = vunpack.c.l.b16 %v2599
      %v3010 = vunpack.c.h.b16 %v2599
      %v3011 = vpack.c.b16 %v2759, %v2755
      %v3012 = vpack.c.b16 %v2760, %v2756
      %v3013 = vpack.c.b16 %v2761, %v2757
      %v3014 = vpack.c.b16 %v2762, %v2758
      %v3015 = vpack.c.b16 %v2767, %v2763
      %v3016 = vpack.c.b16 %v2768, %v2764
      %v3017 = vpack.c.b16 %v2769, %v2765
      %v3018 = vpack.c.b16 %v2770, %v2766
      %v3019 = vpack.c.b16 %v2775, %v2771
      %v3020 = vpack.c.b16 %v2776, %v2772
      %v3021 = vpack.c.b16 %v2777, %v2773
      %v3022 = vpack.c.b16 %v2778, %v2774
      %v3023 = vpack.c.b16 %v2783, %v2779
      %v3024 = vpack.c.b16 %v2784, %v2780
      %v3025 = vpack.c.b16 %v2785, %v2781
      %v3026 = vpack.c.b16 %v2786, %v2782
      %v3027 = vpack.c.b16 %v2791, %v2787
      %v3028 = vpack.c.b16 %v2792, %v2788
      %v3029 = vpack.c.b16 %v2793, %v2789
      %v3030 = vpack.c.b16 %v2794, %v2790
      %v3031 = vpack.c.b16 %v2799, %v2795
      %v3032 = vpack.c.b16 %v2800, %v2796
      %v3033 = vpack.c.b16 %v2801, %v2797
      %v3034 = vpack.c.b16 %v2802, %v2798
      %v3035 = vpack.c.b16 %v2807, %v2803
      %v3036 = vpack.c.b16 %v2808, %v2804
      %v3037 = vpack.c.b16 %v2809, %v2805
      %v3038 = vpack.c.b16 %v2810, %v2806
      %v3039 = vpack.c.b16 %v2815, %v2811
      %v3040 = vpack.c.b16 %v2816, %v2812
      %v3041 = vpack.c.b16 %v2817, %v2813
      %v3042 = vpack.c.b16 %v2818, %v2814
      %v3043 = vpack.c.b16 %v2823, %v2819
      %v3044 = vpack.c.b16 %v2824, %v2820
      %v3045 = vpack.c.b16 %v2825, %v2821
      %v3046 = vpack.c.b16 %v2826, %v2822
      %v3047 = vpack.c.b16 %v2831, %v2827
      %v3048 = vpack.c.b16 %v2832, %v2828
      %v3049 = vpack.c.b16 %v2833, %v2829
      %v3050 = vpack.c.b16 %v2834, %v2830
      %v3051 = vpack.c.b16 %v2839, %v2835
      %v3052 = vpack.c.b16 %v2840, %v2836
      %v3053 = vpack.c.b16 %v2841, %v2837
      %v3054 = vpack.c.b16 %v2842, %v2838
      %v3055 = vpack.c.b16 %v2847, %v2843
      %v3056 = vpack.c.b16 %v2848, %v2844
      %v3057 = vpack.c.b16 %v2849, %v2845
      %v3058 = vpack.c.b16 %v2850, %v2846
      %v3059 = vpack.c.b16 %v2855, %v2851
      %v3060 = vpack.c.b16 %v2856, %v2852
      %v3061 = vpack.c.b16 %v2857, %v2853
      %v3062 = vpack.c.b16 %v2858, %v2854
      %v3063 = vpack.c.b16 %v2863, %v2859
      %v3064 = vpack.c.b16 %v2864, %v2860
      %v3065 = vpack.c.b16 %v2865, %v2861
      %v3066 = vpack.c.b16 %v2866, %v2862
      %v3067 = vpack.c.b16 %v2871, %v2867
      %v3068 = vpack.c.b16 %v2872, %v2868
      %v3069 = vpack.c.b16 %v2873, %v2869
      %v3070 = vpack.c.b16 %v2874, %v2870
      %v3071 = vpack.c.b16 %v2879, %v2875
      %v3072 = vpack.c.b16 %v2880, %v2876
      %v3073 = vpack.c.b16 %v2881, %v2877
      %v3074 = vpack.c.b16 %v2882, %v2878
      %v3075 = vpack.c.b16 %v2887, %v2883
      %v3076 = vpack.c.b16 %v2888, %v2884
      %v3077 = vpack.c.b16 %v2889, %v2885
      %v3078 = vpack.c.b16 %v2890, %v2886
      %v3079 = vpack.c.b16 %v2895, %v2891
      %v3080 = vpack.c.b16 %v2896, %v2892
      %v3081 = vpack.c.b16 %v2897, %v2893
      %v3082 = vpack.c.b16 %v2898, %v2894
      %v3083 = vpack.c.b16 %v2903, %v2899
      %v3084 = vpack.c.b16 %v2904, %v2900
      %v3085 = vpack.c.b16 %v2905, %v2901
      %v3086 = vpack.c.b16 %v2906, %v2902
      %v3087 = vpack.c.b16 %v2911, %v2907
      %v3088 = vpack.c.b16 %v2912, %v2908
      %v3089 = vpack.c.b16 %v2913, %v2909
      %v3090 = vpack.c.b16 %v2914, %v2910
      %v3091 = vpack.c.b16 %v2919, %v2915
      %v3092 = vpack.c.b16 %v2920, %v2916
      %v3093 = vpack.c.b16 %v2921, %v2917
      %v3094 = vpack.c.b16 %v2922, %v2918
      %v3095 = vpack.c.b16 %v2927, %v2923
      %v3096 = vpack.c.b16 %v2928, %v2924
      %v3097 = vpack.c.b16 %v2929, %v2925
      %v3098 = vpack.c.b16 %v2930, %v2926
      %v3099 = vpack.c.b16 %v2935, %v2931
      %v3100 = vpack.c.b16 %v2936, %v2932
      %v3101 = vpack.c.b16 %v2937, %v2933
      %v3102 = vpack.c.b16 %v2938, %v2934
      %v3103 = vpack.c.b16 %v2943, %v2939
      %v3104 = vpack.c.b16 %v2944, %v2940
      %v3105 = vpack.c.b16 %v2945, %v2941
      %v3106 = vpack.c.b16 %v2946, %v2942
      %v3107 = vpack.c.b16 %v2951, %v2947
      %v3108 = vpack.c.b16 %v2952, %v2948
      %v3109 = vpack.c.b16 %v2953, %v2949
      %v3110 = vpack.c.b16 %v2954, %v2950
      %v3111 = vpack.c.b16 %v2959, %v2955
      %v3112 = vpack.c.b16 %v2960, %v2956
      %v3113 = vpack.c.b16 %v2961, %v2957
      %v3114 = vpack.c.b16 %v2962, %v2958
      %v3115 = vpack.c.b16 %v2967, %v2963
      %v3116 = vpack.c.b16 %v2968, %v2964
      %v3117 = vpack.c.b16 %v2969, %v2965
      %v3118 = vpack.c.b16 %v2970, %v2966
      %v3119 = vpack.c.b16 %v2975, %v2971
      %v3120 = vpack.c.b16 %v2976, %v2972
      %v3121 = vpack.c.b16 %v2977, %v2973
      %v3122 = vpack.c.b16 %v2978, %v2974
      %v3123 = vpack.c.b16 %v2983, %v2979
      %v3124 = vpack.c.b16 %v2984, %v2980
      %v3125 = vpack.c.b16 %v2985, %v2981
      %v3126 = vpack.c.b16 %v2986, %v2982
      %v3127 = vpack.c.b16 %v2991, %v2987
      %v3128 = vpack.c.b16 %v2992, %v2988
      %v3129 = vpack.c.b16 %v2993, %v2989
      %v3130 = vpack.c.b16 %v2994, %v2990
      %v3131 = vpack.c.b16 %v2999, %v2995
      %v3132 = vpack.c.b16 %v3000, %v2996
      %v3133 = vpack.c.b16 %v3001, %v2997
      %v3134 = vpack.c.b16 %v3002, %v2998
      %v3135 = vpack.c.b16 %v3007, %v3003
      %v3136 = vpack.c.b16 %v3008, %v3004
      %v3137 = vpack.c.b16 %v3009, %v3005
      %v3138 = vpack.c.b16 %v3010, %v3006
      %3267 = vmatpush.bf16.msra.mxu0 %v3039
      %3268 = vmatpush.bf16.msra.mxu0 %v3035
      %3269 = vmatpush.bf16.msra.mxu0 %v3031
      %3270 = vmatpush.bf16.msra.mxu0 %v3027
      %3271 = vmatpush.bf16.msra.mxu0 %v3023
      %3272 = vmatpush.bf16.msra.mxu0 %v3019
      %3273 = vmatpush.bf16.msra.mxu0 %v3015
      %3274 = vmatpush.bf16.msra.mxu0 %v3011
      %3275 = vmatmul.bf16.gmra.mxu0 %v2613
      %v3276 = vpop.f32.mrf.mxu0
      %v3277 = vadd.f32 0.0, %v3276
      %v3278 = vpop.f32.mrf.mxu0
      %v3279 = vadd.f32 0.0, %v3278
      %3280 = vdwg.mxu0
      %3281 = vmatpush.bf16.msra.mxu0 %v3071
      %3282 = vmatpush.bf16.msra.mxu0 %v3067
      %3283 = vmatpush.bf16.msra.mxu0 %v3063
      %3284 = vmatpush.bf16.msra.mxu0 %v3059
      %3285 = vmatpush.bf16.msra.mxu0 %v3055
      %3286 = vmatpush.bf16.msra.mxu0 %v3051
      %3287 = vmatpush.bf16.msra.mxu0 %v3047
      %3288 = vmatpush.bf16.msra.mxu0 %v3043
      %3289 = vmatmul.bf16.gmra.mxu0 %v2616
      %v3290 = vpop.f32.mrf.mxu0
      %v3291 = vadd.f32 %v3277, %v3290
      %v3292 = vpop.f32.mrf.mxu0
      %v3293 = vadd.f32 %v3279, %v3292
      %3294 = vdwg.mxu0
      %3295 = vmatpush.bf16.msra.mxu0 %v3103
      %3296 = vmatpush.bf16.msra.mxu0 %v3099
      %3297 = vmatpush.bf16.msra.mxu0 %v3095
      %3298 = vmatpush.bf16.msra.mxu0 %v3091
      %3299 = vmatpush.bf16.msra.mxu0 %v3087
      %3300 = vmatpush.bf16.msra.mxu0 %v3083
      %3301 = vmatpush.bf16.msra.mxu0 %v3079
      %3302 = vmatpush.bf16.msra.mxu0 %v3075
      %3303 = vmatmul.bf16.gmra.mxu0 %v2619
      %v3304 = vpop.f32.mrf.mxu0
      %v3305 = vadd.f32 %v3291, %v3304
      %v3306 = vpop.f32.mrf.mxu0
      %v3307 = vadd.f32 %v3293, %v3306
      %3308 = vdwg.mxu0
      %3309 = vmatpush.bf16.msra.mxu0 %v3135
      %3310 = vmatpush.bf16.msra.mxu0 %v3131
      %3311 = vmatpush.bf16.msra.mxu0 %v3127
      %3312 = vmatpush.bf16.msra.mxu0 %v3123
      %3313 = vmatpush.bf16.msra.mxu0 %v3119
      %3314 = vmatpush.bf16.msra.mxu0 %v3115
      %3315 = vmatpush.bf16.msra.mxu0 %v3111
      %3316 = vmatpush.bf16.msra.mxu0 %v3107
      %3317 = vmatmul.bf16.gmra.mxu0 %v2622
      %v3318 = vpop.f32.mrf.mxu0
      %v3319 = vadd.f32 %v3305, %v3318
      %v3320 = vpop.f32.mrf.mxu0
      %v3321 = vadd.f32 %v3307, %v3320
      %3322 = vdwg.mxu0
      %3323 = vmatpush.bf16.msra.mxu0 %v3040
      %3324 = vmatpush.bf16.msra.mxu0 %v3036
      %3325 = vmatpush.bf16.msra.mxu0 %v3032
      %3326 = vmatpush.bf16.msra.mxu0 %v3028
      %3327 = vmatpush.bf16.msra.mxu0 %v3024
      %3328 = vmatpush.bf16.msra.mxu0 %v3020
      %3329 = vmatpush.bf16.msra.mxu0 %v3016
      %3330 = vmatpush.bf16.msra.mxu0 %v3012
      %3331 = vmatmul.bf16.gmra.mxu0 %v2613
      %v3332 = vpop.f32.mrf.mxu0
      %v3333 = vadd.f32 0.0, %v3332
      %v3334 = vpop.f32.mrf.mxu0
      %v3335 = vadd.f32 0.0, %v3334
      %3336 = vdwg.mxu0
      %3337 = vmatpush.bf16.msra.mxu0 %v3072
      %3338 = vmatpush.bf16.msra.mxu0 %v3068
      %3339 = vmatpush.bf16.msra.mxu0 %v3064
      %3340 = vmatpush.bf16.msra.mxu0 %v3060
      %3341 = vmatpush.bf16.msra.mxu0 %v3056
      %3342 = vmatpush.bf16.msra.mxu0 %v3052
      %3343 = vmatpush.bf16.msra.mxu0 %v3048
      %3344 = vmatpush.bf16.msra.mxu0 %v3044
      %3345 = vmatmul.bf16.gmra.mxu0 %v2616
      %v3346 = vpop.f32.mrf.mxu0
      %v3347 = vadd.f32 %v3333, %v3346
      %v3348 = vpop.f32.mrf.mxu0
      %v3349 = vadd.f32 %v3335, %v3348
      %3350 = vdwg.mxu0
      %3351 = vmatpush.bf16.msra.mxu0 %v3104
      %3352 = vmatpush.bf16.msra.mxu0 %v3100
      %3353 = vmatpush.bf16.msra.mxu0 %v3096
      %3354 = vmatpush.bf16.msra.mxu0 %v3092
      %3355 = vmatpush.bf16.msra.mxu0 %v3088
      %3356 = vmatpush.bf16.msra.mxu0 %v3084
      %3357 = vmatpush.bf16.msra.mxu0 %v3080
      %3358 = vmatpush.bf16.msra.mxu0 %v3076
      %3359 = vmatmul.bf16.gmra.mxu0 %v2619
      %v3360 = vpop.f32.mrf.mxu0
      %v3361 = vadd.f32 %v3347, %v3360
      %v3362 = vpop.f32.mrf.mxu0
      %v3363 = vadd.f32 %v3349, %v3362
      %3364 = vdwg.mxu0
      %3365 = vmatpush.bf16.msra.mxu0 %v3136
      %3366 = vmatpush.bf16.msra.mxu0 %v3132
      %3367 = vmatpush.bf16.msra.mxu0 %v3128
      %3368 = vmatpush.bf16.msra.mxu0 %v3124
      %3369 = vmatpush.bf16.msra.mxu0 %v3120
      %3370 = vmatpush.bf16.msra.mxu0 %v3116
      %3371 = vmatpush.bf16.msra.mxu0 %v3112
      %3372 = vmatpush.bf16.msra.mxu0 %v3108
      %3373 = vmatmul.bf16.gmra.mxu0 %v2622
      %v3374 = vpop.f32.mrf.mxu0
      %v3375 = vadd.f32 %v3361, %v3374
      %v3376 = vpop.f32.mrf.mxu0
      %v3377 = vadd.f32 %v3363, %v3376
      %3378 = vdwg.mxu0
      %3379 = vmatpush.bf16.msra.mxu0 %v3041
      %3380 = vmatpush.bf16.msra.mxu0 %v3037
      %3381 = vmatpush.bf16.msra.mxu0 %v3033
      %3382 = vmatpush.bf16.msra.mxu0 %v3029
      %3383 = vmatpush.bf16.msra.mxu0 %v3025
      %3384 = vmatpush.bf16.msra.mxu0 %v3021
      %3385 = vmatpush.bf16.msra.mxu0 %v3017
      %3386 = vmatpush.bf16.msra.mxu0 %v3013
      %3387 = vmatmul.bf16.gmra.mxu0 %v2613
      %v3388 = vpop.f32.mrf.mxu0
      %v3389 = vadd.f32 0.0, %v3388
      %v3390 = vpop.f32.mrf.mxu0
      %v3391 = vadd.f32 0.0, %v3390
      %3392 = vdwg.mxu0
      %3393 = vmatpush.bf16.msra.mxu0 %v3073
      %3394 = vmatpush.bf16.msra.mxu0 %v3069
      %3395 = vmatpush.bf16.msra.mxu0 %v3065
      %3396 = vmatpush.bf16.msra.mxu0 %v3061
      %3397 = vmatpush.bf16.msra.mxu0 %v3057
      %3398 = vmatpush.bf16.msra.mxu0 %v3053
      %3399 = vmatpush.bf16.msra.mxu0 %v3049
      %3400 = vmatpush.bf16.msra.mxu0 %v3045
      %3401 = vmatmul.bf16.gmra.mxu0 %v2616
      %v3402 = vpop.f32.mrf.mxu0
      %v3403 = vadd.f32 %v3389, %v3402
      %v3404 = vpop.f32.mrf.mxu0
      %v3405 = vadd.f32 %v3391, %v3404
      %3406 = vdwg.mxu0
      %3407 = vmatpush.bf16.msra.mxu0 %v3105
      %3408 = vmatpush.bf16.msra.mxu0 %v3101
      %3409 = vmatpush.bf16.msra.mxu0 %v3097
      %3410 = vmatpush.bf16.msra.mxu0 %v3093
      %3411 = vmatpush.bf16.msra.mxu0 %v3089
      %3412 = vmatpush.bf16.msra.mxu0 %v3085
      %3413 = vmatpush.bf16.msra.mxu0 %v3081
      %3414 = vmatpush.bf16.msra.mxu0 %v3077
      %3415 = vmatmul.bf16.gmra.mxu0 %v2619
      %v3416 = vpop.f32.mrf.mxu0
      %v3417 = vadd.f32 %v3403, %v3416
      %v3418 = vpop.f32.mrf.mxu0
      %v3419 = vadd.f32 %v3405, %v3418
      %3420 = vdwg.mxu0
      %3421 = vmatpush.bf16.msra.mxu0 %v3137
      %3422 = vmatpush.bf16.msra.mxu0 %v3133
      %3423 = vmatpush.bf16.msra.mxu0 %v3129
      %3424 = vmatpush.bf16.msra.mxu0 %v3125
      %3425 = vmatpush.bf16.msra.mxu0 %v3121
      %3426 = vmatpush.bf16.msra.mxu0 %v3117
      %3427 = vmatpush.bf16.msra.mxu0 %v3113
      %3428 = vmatpush.bf16.msra.mxu0 %v3109
      %3429 = vmatmul.bf16.gmra.mxu0 %v2622
      %v3430 = vpop.f32.mrf.mxu0
      %v3431 = vadd.f32 %v3417, %v3430
      %v3432 = vpop.f32.mrf.mxu0
      %v3433 = vadd.f32 %v3419, %v3432
      %3434 = vdwg.mxu0
      %3435 = vmatpush.bf16.msra.mxu0 %v3042
      %3436 = vmatpush.bf16.msra.mxu0 %v3038
      %3437 = vmatpush.bf16.msra.mxu0 %v3034
      %3438 = vmatpush.bf16.msra.mxu0 %v3030
      %3439 = vmatpush.bf16.msra.mxu0 %v3026
      %3440 = vmatpush.bf16.msra.mxu0 %v3022
      %3441 = vmatpush.bf16.msra.mxu0 %v3018
      %3442 = vmatpush.bf16.msra.mxu0 %v3014
      %3443 = vmatmul.bf16.gmra.mxu0 %v2613
      %v3444 = vpop.f32.mrf.mxu0
      %v3445 = vadd.f32 0.0, %v3444
      %v3446 = vpop.f32.mrf.mxu0
      %v3447 = vadd.f32 0.0, %v3446
      %3448 = vdwg.mxu0
      %3449 = vmatpush.bf16.msra.mxu0 %v3074
      %3450 = vmatpush.bf16.msra.mxu0 %v3070
      %3451 = vmatpush.bf16.msra.mxu0 %v3066
      %3452 = vmatpush.bf16.msra.mxu0 %v3062
      %3453 = vmatpush.bf16.msra.mxu0 %v3058
      %3454 = vmatpush.bf16.msra.mxu0 %v3054
      %3455 = vmatpush.bf16.msra.mxu0 %v3050
      %3456 = vmatpush.bf16.msra.mxu0 %v3046
      %3457 = vmatmul.bf16.gmra.mxu0 %v2616
      %v3458 = vpop.f32.mrf.mxu0
      %v3459 = vadd.f32 %v3445, %v3458
      %v3460 = vpop.f32.mrf.mxu0
      %v3461 = vadd.f32 %v3447, %v3460
      %3462 = vdwg.mxu0
      %3463 = vmatpush.bf16.msra.mxu0 %v3106
      %3464 = vmatpush.bf16.msra.mxu0 %v3102
      %3465 = vmatpush.bf16.msra.mxu0 %v3098
      %3466 = vmatpush.bf16.msra.mxu0 %v3094
      %3467 = vmatpush.bf16.msra.mxu0 %v3090
      %3468 = vmatpush.bf16.msra.mxu0 %v3086
      %3469 = vmatpush.bf16.msra.mxu0 %v3082
      %3470 = vmatpush.bf16.msra.mxu0 %v3078
      %3471 = vmatmul.bf16.gmra.mxu0 %v2619
      %v3472 = vpop.f32.mrf.mxu0
      %v3473 = vadd.f32 %v3459, %v3472
      %v3474 = vpop.f32.mrf.mxu0
      %v3475 = vadd.f32 %v3461, %v3474
      %3476 = vdwg.mxu0
      %3477 = vmatpush.bf16.msra.mxu0 %v3138
      %3478 = vmatpush.bf16.msra.mxu0 %v3134
      %3479 = vmatpush.bf16.msra.mxu0 %v3130
      %3480 = vmatpush.bf16.msra.mxu0 %v3126
      %3481 = vmatpush.bf16.msra.mxu0 %v3122
      %3482 = vmatpush.bf16.msra.mxu0 %v3118
      %3483 = vmatpush.bf16.msra.mxu0 %v3114
      %3484 = vmatpush.bf16.msra.mxu0 %v3110
      %3485 = vmatmul.bf16.gmra.mxu0 %v2622
      %v3486 = vpop.f32.mrf.mxu0
      %v3487 = vadd.f32 %v3473, %v3486
      %v3488 = vpop.f32.mrf.mxu0
      %v3489 = vadd.f32 %v3475, %v3488
      %3490 = vdwg.mxu0
      %v3491 = vadd.f32 %v2297, %v3319
      %v3492 = vadd.f32 %v2353, %v3375
      %v3493 = vadd.f32 %v2409, %v3431
      %v3494 = vadd.f32 %v2465, %v3487
      %v3495 = vadd.f32 %v2299, %v3321
      %v3496 = vadd.f32 %v2355, %v3377
      %v3497 = vadd.f32 %v2411, %v3433
      %v3498 = vadd.f32 %v2467, %v3489
      %v3499 = vld [vmem:[%s4] sm:$0xf]
      %v3501 = vperm.slane %v3499, 0
      %v3502 = vperm.slane %v3499, 1
      %v3503 = vperm.slane %v3499, 2
      %v3504 = vperm.slane %v3499, 3
      %v3509 = vmul.f32 %v3491, %v3501
      %v3510 = vmul.f32 %v3492, %v3502
      %v3511 = vmul.f32 %v3493, %v3503
      %v3512 = vmul.f32 %v3494, %v3504
      %v3513 = vmul.f32 %v3495, %v3501
      %v3514 = vmul.f32 %v3496, %v3502
      %v3515 = vmul.f32 %v3497, %v3503
      %v3516 = vmul.f32 %v3498, %v3504
      %s3517 = scalar_lea.vmem %s4, 4
      %v3518 = vld [vmem:[%s3517] sm:$0xf]
      %v3520 = vperm.slane %v3518, 0
      %v3521 = vperm.slane %v3518, 1
      %v3522 = vperm.slane %v3518, 2
      %v3523 = vperm.slane %v3518, 3
      %v3528 = vadd.f32 %v3509, %v3520
      %v3529 = vadd.f32 %v3510, %v3521
      %v3530 = vadd.f32 %v3511, %v3522
      %v3531 = vadd.f32 %v3512, %v3523
      %v3532 = vadd.f32 %v3513, %v3520
      %v3533 = vadd.f32 %v3514, %v3521
      %v3534 = vadd.f32 %v3515, %v3522
      %v3535 = vadd.f32 %v3516, %v3523
      %vm3536 = vcmp.ge.f32.partialorder %v3528, 0.0
      %vm3537 = vcmp.ge.f32.partialorder %v3529, 0.0
      %vm3538 = vcmp.ge.f32.partialorder %v3530, 0.0
      %vm3539 = vcmp.ge.f32.partialorder %v3531, 0.0
      %vm3540 = vcmp.ge.f32.partialorder %v3532, 0.0
      %vm3541 = vcmp.ge.f32.partialorder %v3533, 0.0
      %vm3542 = vcmp.ge.f32.partialorder %v3534, 0.0
      %vm3543 = vcmp.ge.f32.partialorder %v3535, 0.0
      %s3544 = scalar_lea.vmem %s4, 8
      %v3545 = vld [vmem:[%s3544] sm:$0xf]
      %v3547 = vperm.slane %v3545, 0
      %v3548 = vperm.slane %v3545, 1
      %v3549 = vperm.slane %v3545, 2
      %v3550 = vperm.slane %v3545, 3
      %v3555 = vmul.f32 %v3547, %v3528
      %v3556 = vmul.f32 %v3548, %v3529
      %v3557 = vmul.f32 %v3549, %v3530
      %v3558 = vmul.f32 %v3550, %v3531
      %v3559 = vmul.f32 %v3547, %v3532
      %v3560 = vmul.f32 %v3548, %v3533
      %v3561 = vmul.f32 %v3549, %v3534
      %v3562 = vmul.f32 %v3550, %v3535
      %v3563 = vsel %vm3536, %v3528, %v3555
      %v3564 = vsel %vm3537, %v3529, %v3556
      %v3565 = vsel %vm3538, %v3530, %v3557
      %v3566 = vsel %vm3539, %v3531, %v3558
      %v3567 = vsel %vm3540, %v3532, %v3559
      %v3568 = vsel %vm3541, %v3533, %v3560
      %v3569 = vsel %vm3542, %v3534, %v3561
      %v3570 = vsel %vm3543, %v3535, %v3562
      %v3571 = vpack.c.bf16 %v3564, %v3563
      %v3572 = vpack.c.bf16 %v3566, %v3565
      %v3573 = vpack.c.bf16 %v3568, %v3567
      %v3574 = vpack.c.bf16 %v3570, %v3569
      %v3576 = vshrl.u32 %v3571, 16
      %v3578 = vrot.slane %v3576, 7
      %v3579 = vshll.u32 %v3571, 16
      %v3581 = vor.u32 %v3578, %v3579
      %v3583 = vshrl.u32 %v3572, 16
      %v3585 = vrot.slane %v3583, 7
      %v3586 = vshll.u32 %v3572, 16
      %v3588 = vor.u32 %v3585, %v3586
      %v3589 = vrot.slane %v3578, 4
      %v3591 = vshrl.u32 %v3573, 16
      %v3593 = vrot.slane %v3591, 7
      %v3594 = vshll.u32 %v3573, 16
      %v3596 = vor.u32 %v3593, %v3594
      %v3597 = vsel %vm335, %v3589, %v3596
      %v3598 = vrot.slane %v3585, 4
      %v3600 = vshrl.u32 %v3574, 16
      %v3602 = vrot.slane %v3600, 7
      %v3603 = vshll.u32 %v3574, 16
      %v3605 = vor.u32 %v3602, %v3603
      %v3606 = vsel %vm335, %v3598, %v3605
      %v3607 = vrot.slane %v3593, 4
      %v3608 = vrot.slane %v3602, 4
      %v3615 = vsel %vm380, %v3581, %v395
      %3616 = vst [vmem:[#allocation2] sm:$0xff] %v3615
      %v3617 = vld [vmem:[#allocation2 + $0x8] sm:$0xff]
      %v3618 = vsel %vm380, %v3588, %v3617
      %3619 = vst [vmem:[#allocation2 + $0x8] sm:$0xff] %v3618
      %3620 = vst [vmem:[#allocation2 + $0x10] sm:$0xff] %v3597
      %3621 = vst [vmem:[#allocation2 + $0x18] sm:$0xff] %v3606
      %v3622 = vld [vmem:[#allocation2 + $0x20] sm:$0x11]
      %v3623 = vsel %vm232, %v3607, %v3622
      %3624 = vst [vmem:[#allocation2 + $0x20] sm:$0x11] %v3623
      %v3625 = vld [vmem:[#allocation2 + $0x28] sm:$0x11]
      %v3626 = vsel %vm232, %v3608, %v3625
      %3627 = vst [vmem:[#allocation2 + $0x28] sm:$0x11] %v3626
      %v3628 = vld [vmem:[#allocation2] sm:$0xff]
      %v3629 = vld [vmem:[#allocation2 + $0x8] sm:$0xff]
      %v3630 = vld [vmem:[#allocation2 + $0x10] sm:$0xff]
      %v3631 = vld [vmem:[#allocation2 + $0x18] sm:$0xff]
      %v3632 = vld [vmem:[%s2] sm:$0xff]
      %v3633 = vld [vmem:[%s2 + $0x8] sm:$0xff]
      %v3634 = vld [vmem:[%s2 + $0x10] sm:$0xff]
      %v3635 = vld [vmem:[%s2 + $0x18] sm:$0xff]
      %v3636 = vld [vmem:[%s2 + $0x20] sm:$0xff]
      %v3637 = vld [vmem:[%s2 + $0x28] sm:$0xff]
      %v3638 = vld [vmem:[%s2 + $0x30] sm:$0xff]
      %v3639 = vld [vmem:[%s2 + $0x38] sm:$0xff]
      %v3640 = vld [vmem:[%s2 + $0x40] sm:$0xff]
      %v3641 = vld [vmem:[%s2 + $0x48] sm:$0xff]
      %v3642 = vld [vmem:[%s2 + $0x50] sm:$0xff]
      %v3643 = vld [vmem:[%s2 + $0x58] sm:$0xff]
      %v3644 = vld [vmem:[%s2 + $0x60] sm:$0xff]
      %v3645 = vld [vmem:[%s2 + $0x68] sm:$0xff]
      %v3646 = vld [vmem:[%s2 + $0x70] sm:$0xff]
      %v3647 = vld [vmem:[%s2 + $0x78] sm:$0xff]
      %v3648 = vld [vmem:[%s2 + $0x80] sm:$0xff]
      %v3649 = vld [vmem:[%s2 + $0x88] sm:$0xff]
      %v3650 = vld [vmem:[%s2 + $0x90] sm:$0xff]
      %v3651 = vld [vmem:[%s2 + $0x98] sm:$0xff]
      %v3652 = vld [vmem:[%s2 + $0xa0] sm:$0xff]
      %v3653 = vld [vmem:[%s2 + $0xa8] sm:$0xff]
      %v3654 = vld [vmem:[%s2 + $0xb0] sm:$0xff]
      %v3655 = vld [vmem:[%s2 + $0xb8] sm:$0xff]
      %v3656 = vld [vmem:[%s2 + $0xc0] sm:$0xff]
      %v3657 = vld [vmem:[%s2 + $0xc8] sm:$0xff]
      %v3658 = vld [vmem:[%s2 + $0xd0] sm:$0xff]
      %v3659 = vld [vmem:[%s2 + $0xd8] sm:$0xff]
      %v3660 = vld [vmem:[%s2 + $0xe0] sm:$0xff]
      %v3661 = vld [vmem:[%s2 + $0xe8] sm:$0xff]
      %v3662 = vld [vmem:[%s2 + $0xf0] sm:$0xff]
      %v3663 = vld [vmem:[%s2 + $0xf8] sm:$0xff]
      %v3664 = vld [vmem:[%s2 + $0x100] sm:$0xff]
      %v3665 = vld [vmem:[%s2 + $0x108] sm:$0xff]
      %v3666 = vld [vmem:[%s2 + $0x110] sm:$0xff]
      %v3667 = vld [vmem:[%s2 + $0x118] sm:$0xff]
      %v3668 = vld [vmem:[%s2 + $0x120] sm:$0xff]
      %v3669 = vld [vmem:[%s2 + $0x128] sm:$0xff]
      %v3670 = vld [vmem:[%s2 + $0x130] sm:$0xff]
      %v3671 = vld [vmem:[%s2 + $0x138] sm:$0xff]
      %v3672 = vld [vmem:[%s2 + $0x140] sm:$0xff]
      %v3673 = vld [vmem:[%s2 + $0x148] sm:$0xff]
      %v3674 = vld [vmem:[%s2 + $0x150] sm:$0xff]
      %v3675 = vld [vmem:[%s2 + $0x158] sm:$0xff]
      %v3676 = vld [vmem:[%s2 + $0x160] sm:$0xff]
      %v3677 = vld [vmem:[%s2 + $0x168] sm:$0xff]
      %v3678 = vld [vmem:[%s2 + $0x170] sm:$0xff]
      %v3679 = vld [vmem:[%s2 + $0x178] sm:$0xff]
      %v3680 = vld [vmem:[%s2 + $0x180] sm:$0xff]
      %v3681 = vld [vmem:[%s2 + $0x188] sm:$0xff]
      %v3682 = vld [vmem:[%s2 + $0x190] sm:$0xff]
      %v3683 = vld [vmem:[%s2 + $0x198] sm:$0xff]
      %v3684 = vld [vmem:[%s2 + $0x1a0] sm:$0xff]
      %v3685 = vld [vmem:[%s2 + $0x1a8] sm:$0xff]
      %v3686 = vld [vmem:[%s2 + $0x1b0] sm:$0xff]
      %v3687 = vld [vmem:[%s2 + $0x1b8] sm:$0xff]
      %v3688 = vld [vmem:[%s2 + $0x1c0] sm:$0xff]
      %v3689 = vld [vmem:[%s2 + $0x1c8] sm:$0xff]
      %v3690 = vld [vmem:[%s2 + $0x1d0] sm:$0xff]
      %v3691 = vld [vmem:[%s2 + $0x1d8] sm:$0xff]
      %v3692 = vld [vmem:[%s2 + $0x1e0] sm:$0xff]
      %v3693 = vld [vmem:[%s2 + $0x1e8] sm:$0xff]
      %v3694 = vld [vmem:[%s2 + $0x1f0] sm:$0xff]
      %v3695 = vld [vmem:[%s2 + $0x1f8] sm:$0xff]
      %v3696 = vld [vmem:[%s2 + $0x200] sm:$0xff]
      %v3697 = vld [vmem:[%s2 + $0x208] sm:$0xff]
      %v3698 = vld [vmem:[%s2 + $0x210] sm:$0xff]
      %v3699 = vld [vmem:[%s2 + $0x218] sm:$0xff]
      %v3700 = vld [vmem:[%s2 + $0x220] sm:$0xff]
      %v3701 = vld [vmem:[%s2 + $0x228] sm:$0xff]
      %v3702 = vld [vmem:[%s2 + $0x230] sm:$0xff]
      %v3703 = vld [vmem:[%s2 + $0x238] sm:$0xff]
      %v3704 = vld [vmem:[%s2 + $0x240] sm:$0xff]
      %v3705 = vld [vmem:[%s2 + $0x248] sm:$0xff]
      %v3706 = vld [vmem:[%s2 + $0x250] sm:$0xff]
      %v3707 = vld [vmem:[%s2 + $0x258] sm:$0xff]
      %v3708 = vld [vmem:[%s2 + $0x260] sm:$0xff]
      %v3709 = vld [vmem:[%s2 + $0x268] sm:$0xff]
      %v3710 = vld [vmem:[%s2 + $0x270] sm:$0xff]
      %v3711 = vld [vmem:[%s2 + $0x278] sm:$0xff]
      %v3712 = vld [vmem:[%s2 + $0x280] sm:$0xff]
      %v3713 = vld [vmem:[%s2 + $0x288] sm:$0xff]
      %v3714 = vld [vmem:[%s2 + $0x290] sm:$0xff]
      %v3715 = vld [vmem:[%s2 + $0x298] sm:$0xff]
      %v3716 = vld [vmem:[%s2 + $0x2a0] sm:$0xff]
      %v3717 = vld [vmem:[%s2 + $0x2a8] sm:$0xff]
      %v3718 = vld [vmem:[%s2 + $0x2b0] sm:$0xff]
      %v3719 = vld [vmem:[%s2 + $0x2b8] sm:$0xff]
      %v3720 = vld [vmem:[%s2 + $0x2c0] sm:$0xff]
      %v3721 = vld [vmem:[%s2 + $0x2c8] sm:$0xff]
      %v3722 = vld [vmem:[%s2 + $0x2d0] sm:$0xff]
      %v3723 = vld [vmem:[%s2 + $0x2d8] sm:$0xff]
      %v3724 = vld [vmem:[%s2 + $0x2e0] sm:$0xff]
      %v3725 = vld [vmem:[%s2 + $0x2e8] sm:$0xff]
      %v3726 = vld [vmem:[%s2 + $0x2f0] sm:$0xff]
      %v3727 = vld [vmem:[%s2 + $0x2f8] sm:$0xff]
      %v3728 = vld [vmem:[%s2 + $0x300] sm:$0xff]
      %v3729 = vld [vmem:[%s2 + $0x308] sm:$0xff]
      %v3730 = vld [vmem:[%s2 + $0x310] sm:$0xff]
      %v3731 = vld [vmem:[%s2 + $0x318] sm:$0xff]
      %v3732 = vld [vmem:[%s2 + $0x320] sm:$0xff]
      %v3733 = vld [vmem:[%s2 + $0x328] sm:$0xff]
      %v3734 = vld [vmem:[%s2 + $0x330] sm:$0xff]
      %v3735 = vld [vmem:[%s2 + $0x338] sm:$0xff]
      %v3736 = vld [vmem:[%s2 + $0x340] sm:$0xff]
      %v3737 = vld [vmem:[%s2 + $0x348] sm:$0xff]
      %v3738 = vld [vmem:[%s2 + $0x350] sm:$0xff]
      %v3739 = vld [vmem:[%s2 + $0x358] sm:$0xff]
      %v3740 = vld [vmem:[%s2 + $0x360] sm:$0xff]
      %v3741 = vld [vmem:[%s2 + $0x368] sm:$0xff]
      %v3742 = vld [vmem:[%s2 + $0x370] sm:$0xff]
      %v3743 = vld [vmem:[%s2 + $0x378] sm:$0xff]
      %v3744 = vld [vmem:[%s2 + $0x380] sm:$0xff]
      %v3745 = vld [vmem:[%s2 + $0x388] sm:$0xff]
      %v3746 = vld [vmem:[%s2 + $0x390] sm:$0xff]
      %v3747 = vld [vmem:[%s2 + $0x398] sm:$0xff]
      %v3748 = vld [vmem:[%s2 + $0x3a0] sm:$0xff]
      %v3749 = vld [vmem:[%s2 + $0x3a8] sm:$0xff]
      %v3750 = vld [vmem:[%s2 + $0x3b0] sm:$0xff]
      %v3751 = vld [vmem:[%s2 + $0x3b8] sm:$0xff]
      %v3752 = vld [vmem:[%s2 + $0x3c0] sm:$0xff]
      %v3753 = vld [vmem:[%s2 + $0x3c8] sm:$0xff]
      %v3754 = vld [vmem:[%s2 + $0x3d0] sm:$0xff]
      %v3755 = vld [vmem:[%s2 + $0x3d8] sm:$0xff]
      %v3756 = vld [vmem:[%s2 + $0x3e0] sm:$0xff]
      %v3757 = vld [vmem:[%s2 + $0x3e8] sm:$0xff]
      %v3758 = vld [vmem:[%s2 + $0x3f0] sm:$0xff]
      %v3759 = vld [vmem:[%s2 + $0x3f8] sm:$0xff]
      %v3760 = vld [vmem:[#allocation2 + $0x20] sm:$0x11]
      %v3761 = vld [vmem:[#allocation2 + $0x28] sm:$0x11]
      %s3762 = scalar_lea.vmem %s2, 1024
      %v3763 = vld [vmem:[%s3762] sm:$0xff]
      %v3764 = vld [vmem:[%s3762 + $0x8] sm:$0xff]
      %v3765 = vld [vmem:[%s3762 + $0x10] sm:$0xff]
      %v3766 = vld [vmem:[%s3762 + $0x18] sm:$0xff]
      %v3767 = vld [vmem:[%s3762 + $0x20] sm:$0xff]
      %v3768 = vld [vmem:[%s3762 + $0x28] sm:$0xff]
      %v3769 = vld [vmem:[%s3762 + $0x30] sm:$0xff]
      %v3770 = vld [vmem:[%s3762 + $0x38] sm:$0xff]
      %v3771 = vld [vmem:[%s3762 + $0x40] sm:$0xff]
      %v3772 = vld [vmem:[%s3762 + $0x48] sm:$0xff]
      %v3773 = vld [vmem:[%s3762 + $0x50] sm:$0xff]
      %v3774 = vld [vmem:[%s3762 + $0x58] sm:$0xff]
      %v3775 = vld [vmem:[%s3762 + $0x60] sm:$0xff]
      %v3776 = vld [vmem:[%s3762 + $0x68] sm:$0xff]
      %v3777 = vld [vmem:[%s3762 + $0x70] sm:$0xff]
      %v3778 = vld [vmem:[%s3762 + $0x78] sm:$0xff]
      %v3779 = vld [vmem:[%s3762 + $0x80] sm:$0xff]
      %v3780 = vld [vmem:[%s3762 + $0x88] sm:$0xff]
      %v3781 = vld [vmem:[%s3762 + $0x90] sm:$0xff]
      %v3782 = vld [vmem:[%s3762 + $0x98] sm:$0xff]
      %v3783 = vld [vmem:[%s3762 + $0xa0] sm:$0xff]
      %v3784 = vld [vmem:[%s3762 + $0xa8] sm:$0xff]
      %v3785 = vld [vmem:[%s3762 + $0xb0] sm:$0xff]
      %v3786 = vld [vmem:[%s3762 + $0xb8] sm:$0xff]
      %v3787 = vld [vmem:[%s3762 + $0xc0] sm:$0xff]
      %v3788 = vld [vmem:[%s3762 + $0xc8] sm:$0xff]
      %v3789 = vld [vmem:[%s3762 + $0xd0] sm:$0xff]
      %v3790 = vld [vmem:[%s3762 + $0xd8] sm:$0xff]
      %v3791 = vld [vmem:[%s3762 + $0xe0] sm:$0xff]
      %v3792 = vld [vmem:[%s3762 + $0xe8] sm:$0xff]
      %v3793 = vld [vmem:[%s3762 + $0xf0] sm:$0xff]
      %v3794 = vld [vmem:[%s3762 + $0xf8] sm:$0xff]
      %v3795 = vld [vmem:[%s3762 + $0x100] sm:$0xff]
      %v3796 = vld [vmem:[%s3762 + $0x108] sm:$0xff]
      %v3797 = vld [vmem:[%s3762 + $0x110] sm:$0xff]
      %v3798 = vld [vmem:[%s3762 + $0x118] sm:$0xff]
      %v3799 = vld [vmem:[%s3762 + $0x120] sm:$0xff]
      %v3800 = vld [vmem:[%s3762 + $0x128] sm:$0xff]
      %v3801 = vld [vmem:[%s3762 + $0x130] sm:$0xff]
      %v3802 = vld [vmem:[%s3762 + $0x138] sm:$0xff]
      %v3803 = vld [vmem:[%s3762 + $0x140] sm:$0xff]
      %v3804 = vld [vmem:[%s3762 + $0x148] sm:$0xff]
      %v3805 = vld [vmem:[%s3762 + $0x150] sm:$0xff]
      %v3806 = vld [vmem:[%s3762 + $0x158] sm:$0xff]
      %v3807 = vld [vmem:[%s3762 + $0x160] sm:$0xff]
      %v3808 = vld [vmem:[%s3762 + $0x168] sm:$0xff]
      %v3809 = vld [vmem:[%s3762 + $0x170] sm:$0xff]
      %v3810 = vld [vmem:[%s3762 + $0x178] sm:$0xff]
      %v3811 = vld [vmem:[%s3762 + $0x180] sm:$0xff]
      %v3812 = vld [vmem:[%s3762 + $0x188] sm:$0xff]
      %v3813 = vld [vmem:[%s3762 + $0x190] sm:$0xff]
      %v3814 = vld [vmem:[%s3762 + $0x198] sm:$0xff]
      %v3815 = vld [vmem:[%s3762 + $0x1a0] sm:$0xff]
      %v3816 = vld [vmem:[%s3762 + $0x1a8] sm:$0xff]
      %v3817 = vld [vmem:[%s3762 + $0x1b0] sm:$0xff]
      %v3818 = vld [vmem:[%s3762 + $0x1b8] sm:$0xff]
      %v3819 = vld [vmem:[%s3762 + $0x1c0] sm:$0xff]
      %v3820 = vld [vmem:[%s3762 + $0x1c8] sm:$0xff]
      %v3821 = vld [vmem:[%s3762 + $0x1d0] sm:$0xff]
      %v3822 = vld [vmem:[%s3762 + $0x1d8] sm:$0xff]
      %v3823 = vld [vmem:[%s3762 + $0x1e0] sm:$0xff]
      %v3824 = vld [vmem:[%s3762 + $0x1e8] sm:$0xff]
      %v3825 = vld [vmem:[%s3762 + $0x1f0] sm:$0xff]
      %v3826 = vld [vmem:[%s3762 + $0x1f8] sm:$0xff]
      %v3827 = vld [vmem:[%s3762 + $0x200] sm:$0xff]
      %v3828 = vld [vmem:[%s3762 + $0x208] sm:$0xff]
      %v3829 = vld [vmem:[%s3762 + $0x210] sm:$0xff]
      %v3830 = vld [vmem:[%s3762 + $0x218] sm:$0xff]
      %v3831 = vld [vmem:[%s3762 + $0x220] sm:$0xff]
      %v3832 = vld [vmem:[%s3762 + $0x228] sm:$0xff]
      %v3833 = vld [vmem:[%s3762 + $0x230] sm:$0xff]
      %v3834 = vld [vmem:[%s3762 + $0x238] sm:$0xff]
      %v3835 = vld [vmem:[%s3762 + $0x240] sm:$0xff]
      %v3836 = vld [vmem:[%s3762 + $0x248] sm:$0xff]
      %v3837 = vld [vmem:[%s3762 + $0x250] sm:$0xff]
      %v3838 = vld [vmem:[%s3762 + $0x258] sm:$0xff]
      %v3839 = vld [vmem:[%s3762 + $0x260] sm:$0xff]
      %v3840 = vld [vmem:[%s3762 + $0x268] sm:$0xff]
      %v3841 = vld [vmem:[%s3762 + $0x270] sm:$0xff]
      %v3842 = vld [vmem:[%s3762 + $0x278] sm:$0xff]
      %v3843 = vld [vmem:[%s3762 + $0x280] sm:$0xff]
      %v3844 = vld [vmem:[%s3762 + $0x288] sm:$0xff]
      %v3845 = vld [vmem:[%s3762 + $0x290] sm:$0xff]
      %v3846 = vld [vmem:[%s3762 + $0x298] sm:$0xff]
      %v3847 = vld [vmem:[%s3762 + $0x2a0] sm:$0xff]
      %v3848 = vld [vmem:[%s3762 + $0x2a8] sm:$0xff]
      %v3849 = vld [vmem:[%s3762 + $0x2b0] sm:$0xff]
      %v3850 = vld [vmem:[%s3762 + $0x2b8] sm:$0xff]
      %v3851 = vld [vmem:[%s3762 + $0x2c0] sm:$0xff]
      %v3852 = vld [vmem:[%s3762 + $0x2c8] sm:$0xff]
      %v3853 = vld [vmem:[%s3762 + $0x2d0] sm:$0xff]
      %v3854 = vld [vmem:[%s3762 + $0x2d8] sm:$0xff]
      %v3855 = vld [vmem:[%s3762 + $0x2e0] sm:$0xff]
      %v3856 = vld [vmem:[%s3762 + $0x2e8] sm:$0xff]
      %v3857 = vld [vmem:[%s3762 + $0x2f0] sm:$0xff]
      %v3858 = vld [vmem:[%s3762 + $0x2f8] sm:$0xff]
      %v3859 = vld [vmem:[%s3762 + $0x300] sm:$0xff]
      %v3860 = vld [vmem:[%s3762 + $0x308] sm:$0xff]
      %v3861 = vld [vmem:[%s3762 + $0x310] sm:$0xff]
      %v3862 = vld [vmem:[%s3762 + $0x318] sm:$0xff]
      %v3863 = vld [vmem:[%s3762 + $0x320] sm:$0xff]
      %v3864 = vld [vmem:[%s3762 + $0x328] sm:$0xff]
      %v3865 = vld [vmem:[%s3762 + $0x330] sm:$0xff]
      %v3866 = vld [vmem:[%s3762 + $0x338] sm:$0xff]
      %v3867 = vld [vmem:[%s3762 + $0x340] sm:$0xff]
      %v3868 = vld [vmem:[%s3762 + $0x348] sm:$0xff]
      %v3869 = vld [vmem:[%s3762 + $0x350] sm:$0xff]
      %v3870 = vld [vmem:[%s3762 + $0x358] sm:$0xff]
      %v3871 = vld [vmem:[%s3762 + $0x360] sm:$0xff]
      %v3872 = vld [vmem:[%s3762 + $0x368] sm:$0xff]
      %v3873 = vld [vmem:[%s3762 + $0x370] sm:$0xff]
      %v3874 = vld [vmem:[%s3762 + $0x378] sm:$0xff]
      %v3875 = vld [vmem:[%s3762 + $0x380] sm:$0xff]
      %v3876 = vld [vmem:[%s3762 + $0x388] sm:$0xff]
      %v3877 = vld [vmem:[%s3762 + $0x390] sm:$0xff]
      %v3878 = vld [vmem:[%s3762 + $0x398] sm:$0xff]
      %v3879 = vld [vmem:[%s3762 + $0x3a0] sm:$0xff]
      %v3880 = vld [vmem:[%s3762 + $0x3a8] sm:$0xff]
      %v3881 = vld [vmem:[%s3762 + $0x3b0] sm:$0xff]
      %v3882 = vld [vmem:[%s3762 + $0x3b8] sm:$0xff]
      %v3883 = vld [vmem:[%s3762 + $0x3c0] sm:$0xff]
      %v3884 = vld [vmem:[%s3762 + $0x3c8] sm:$0xff]
      %v3885 = vld [vmem:[%s3762 + $0x3d0] sm:$0xff]
      %v3886 = vld [vmem:[%s3762 + $0x3d8] sm:$0xff]
      %v3887 = vld [vmem:[%s3762 + $0x3e0] sm:$0xff]
      %v3888 = vld [vmem:[%s3762 + $0x3e8] sm:$0xff]
      %v3889 = vld [vmem:[%s3762 + $0x3f0] sm:$0xff]
      %v3890 = vld [vmem:[%s3762 + $0x3f8] sm:$0xff]
      %v3897 = vunpack.c.l.b16 %v3628
      %v3898 = vunpack.c.h.b16 %v3628
      %v3899 = vunpack.c.l.b16 %v3629
      %v3900 = vunpack.c.h.b16 %v3629
      %v3901 = vunpack.c.l.b16 %v3630
      %v3902 = vunpack.c.h.b16 %v3630
      %v3903 = vunpack.c.l.b16 %v3631
      %v3904 = vunpack.c.h.b16 %v3631
      %v3905 = vunpack.c.l.b16 %v3760
      %v3906 = vunpack.c.h.b16 %v3760
      %v3907 = vunpack.c.l.b16 %v3761
      %v3908 = vunpack.c.h.b16 %v3761
      %v3909 = vpack.c.b16 %v3901, %v3897
      %v3910 = vpack.c.b16 %v3902, %v3898
      %v3911 = vpack.c.b16 %v3903, %v3899
      %v3912 = vpack.c.b16 %v3904, %v3900
      %v3913 = vpack.c.b16 %v3905, %v3905
      %v3914 = vpack.c.b16 %v3906, %v3906
      %v3915 = vpack.c.b16 %v3907, %v3907
      %v3916 = vpack.c.b16 %v3908, %v3908
      %v3918 = vshrl.u32 %v3909, 16
      %v3920 = vshll.u32 %v3909, 16
      %v3922 = vrot.slane %v3920, 1
      %v3923 = vor.u32 %v3918, %v3922
      %v3925 = vshll.u32 %v3913, 16
      %v3927 = vrot.slane %v3925, 1
      %v3928 = vsel %vm684, %v3923, %v3927
      %v3930 = vshrl.u32 %v3910, 16
      %v3932 = vshll.u32 %v3910, 16
      %v3934 = vrot.slane %v3932, 1
      %v3935 = vor.u32 %v3930, %v3934
      %v3937 = vshll.u32 %v3914, 16
      %v3939 = vrot.slane %v3937, 1
      %v3940 = vsel %vm684, %v3935, %v3939
      %v3942 = vshrl.u32 %v3911, 16
      %v3944 = vshll.u32 %v3911, 16
      %v3946 = vrot.slane %v3944, 1
      %v3947 = vor.u32 %v3942, %v3946
      %v3949 = vshll.u32 %v3915, 16
      %v3951 = vrot.slane %v3949, 1
      %v3952 = vsel %vm684, %v3947, %v3951
      %v3954 = vshrl.u32 %v3912, 16
      %v3956 = vshll.u32 %v3912, 16
      %v3958 = vrot.slane %v3956, 1
      %v3959 = vor.u32 %v3954, %v3958
      %v3961 = vshll.u32 %v3916, 16
      %v3963 = vrot.slane %v3961, 1
      %v3964 = vsel %vm684, %v3959, %v3963
      %v4097 = vunpack.c.l.b16 %v3763
      %v4098 = vunpack.c.h.b16 %v3763
      %v4099 = vunpack.c.l.b16 %v3764
      %v4100 = vunpack.c.h.b16 %v3764
      %v4101 = vunpack.c.l.b16 %v3765
      %v4102 = vunpack.c.h.b16 %v3765
      %v4103 = vunpack.c.l.b16 %v3766
      %v4104 = vunpack.c.h.b16 %v3766
      %v4105 = vunpack.c.l.b16 %v3767
      %v4106 = vunpack.c.h.b16 %v3767
      %v4107 = vunpack.c.l.b16 %v3768
      %v4108 = vunpack.c.h.b16 %v3768
      %v4109 = vunpack.c.l.b16 %v3769
      %v4110 = vunpack.c.h.b16 %v3769
      %v4111 = vunpack.c.l.b16 %v3770
      %v4112 = vunpack.c.h.b16 %v3770
      %v4113 = vunpack.c.l.b16 %v3771
      %v4114 = vunpack.c.h.b16 %v3771
      %v4115 = vunpack.c.l.b16 %v3772
      %v4116 = vunpack.c.h.b16 %v3772
      %v4117 = vunpack.c.l.b16 %v3773
      %v4118 = vunpack.c.h.b16 %v3773
      %v4119 = vunpack.c.l.b16 %v3774
      %v4120 = vunpack.c.h.b16 %v3774
      %v4121 = vunpack.c.l.b16 %v3775
      %v4122 = vunpack.c.h.b16 %v3775
      %v4123 = vunpack.c.l.b16 %v3776
      %v4124 = vunpack.c.h.b16 %v3776
      %v4125 = vunpack.c.l.b16 %v3777
      %v4126 = vunpack.c.h.b16 %v3777
      %v4127 = vunpack.c.l.b16 %v3778
      %v4128 = vunpack.c.h.b16 %v3778
      %v4129 = vunpack.c.l.b16 %v3779
      %v4130 = vunpack.c.h.b16 %v3779
      %v4131 = vunpack.c.l.b16 %v3780
      %v4132 = vunpack.c.h.b16 %v3780
      %v4133 = vunpack.c.l.b16 %v3781
      %v4134 = vunpack.c.h.b16 %v3781
      %v4135 = vunpack.c.l.b16 %v3782
      %v4136 = vunpack.c.h.b16 %v3782
      %v4137 = vunpack.c.l.b16 %v3783
      %v4138 = vunpack.c.h.b16 %v3783
      %v4139 = vunpack.c.l.b16 %v3784
      %v4140 = vunpack.c.h.b16 %v3784
      %v4141 = vunpack.c.l.b16 %v3785
      %v4142 = vunpack.c.h.b16 %v3785
      %v4143 = vunpack.c.l.b16 %v3786
      %v4144 = vunpack.c.h.b16 %v3786
      %v4145 = vunpack.c.l.b16 %v3787
      %v4146 = vunpack.c.h.b16 %v3787
      %v4147 = vunpack.c.l.b16 %v3788
      %v4148 = vunpack.c.h.b16 %v3788
      %v4149 = vunpack.c.l.b16 %v3789
      %v4150 = vunpack.c.h.b16 %v3789
      %v4151 = vunpack.c.l.b16 %v3790
      %v4152 = vunpack.c.h.b16 %v3790
      %v4153 = vunpack.c.l.b16 %v3791
      %v4154 = vunpack.c.h.b16 %v3791
      %v4155 = vunpack.c.l.b16 %v3792
      %v4156 = vunpack.c.h.b16 %v3792
      %v4157 = vunpack.c.l.b16 %v3793
      %v4158 = vunpack.c.h.b16 %v3793
      %v4159 = vunpack.c.l.b16 %v3794
      %v4160 = vunpack.c.h.b16 %v3794
      %v4161 = vunpack.c.l.b16 %v3795
      %v4162 = vunpack.c.h.b16 %v3795
      %v4163 = vunpack.c.l.b16 %v3796
      %v4164 = vunpack.c.h.b16 %v3796
      %v4165 = vunpack.c.l.b16 %v3797
      %v4166 = vunpack.c.h.b16 %v3797
      %v4167 = vunpack.c.l.b16 %v3798
      %v4168 = vunpack.c.h.b16 %v3798
      %v4169 = vunpack.c.l.b16 %v3799
      %v4170 = vunpack.c.h.b16 %v3799
      %v4171 = vunpack.c.l.b16 %v3800
      %v4172 = vunpack.c.h.b16 %v3800
      %v4173 = vunpack.c.l.b16 %v3801
      %v4174 = vunpack.c.h.b16 %v3801
      %v4175 = vunpack.c.l.b16 %v3802
      %v4176 = vunpack.c.h.b16 %v3802
      %v4177 = vunpack.c.l.b16 %v3803
      %v4178 = vunpack.c.h.b16 %v3803
      %v4179 = vunpack.c.l.b16 %v3804
      %v4180 = vunpack.c.h.b16 %v3804
      %v4181 = vunpack.c.l.b16 %v3805
      %v4182 = vunpack.c.h.b16 %v3805
      %v4183 = vunpack.c.l.b16 %v3806
      %v4184 = vunpack.c.h.b16 %v3806
      %v4185 = vunpack.c.l.b16 %v3807
      %v4186 = vunpack.c.h.b16 %v3807
      %v4187 = vunpack.c.l.b16 %v3808
      %v4188 = vunpack.c.h.b16 %v3808
      %v4189 = vunpack.c.l.b16 %v3809
      %v4190 = vunpack.c.h.b16 %v3809
      %v4191 = vunpack.c.l.b16 %v3810
      %v4192 = vunpack.c.h.b16 %v3810
      %v4193 = vunpack.c.l.b16 %v3811
      %v4194 = vunpack.c.h.b16 %v3811
      %v4195 = vunpack.c.l.b16 %v3812
      %v4196 = vunpack.c.h.b16 %v3812
      %v4197 = vunpack.c.l.b16 %v3813
      %v4198 = vunpack.c.h.b16 %v3813
      %v4199 = vunpack.c.l.b16 %v3814
      %v4200 = vunpack.c.h.b16 %v3814
      %v4201 = vunpack.c.l.b16 %v3815
      %v4202 = vunpack.c.h.b16 %v3815
      %v4203 = vunpack.c.l.b16 %v3816
      %v4204 = vunpack.c.h.b16 %v3816
      %v4205 = vunpack.c.l.b16 %v3817
      %v4206 = vunpack.c.h.b16 %v3817
      %v4207 = vunpack.c.l.b16 %v3818
      %v4208 = vunpack.c.h.b16 %v3818
      %v4209 = vunpack.c.l.b16 %v3819
      %v4210 = vunpack.c.h.b16 %v3819
      %v4211 = vunpack.c.l.b16 %v3820
      %v4212 = vunpack.c.h.b16 %v3820
      %v4213 = vunpack.c.l.b16 %v3821
      %v4214 = vunpack.c.h.b16 %v3821
      %v4215 = vunpack.c.l.b16 %v3822
      %v4216 = vunpack.c.h.b16 %v3822
      %v4217 = vunpack.c.l.b16 %v3823
      %v4218 = vunpack.c.h.b16 %v3823
      %v4219 = vunpack.c.l.b16 %v3824
      %v4220 = vunpack.c.h.b16 %v3824
      %v4221 = vunpack.c.l.b16 %v3825
      %v4222 = vunpack.c.h.b16 %v3825
      %v4223 = vunpack.c.l.b16 %v3826
      %v4224 = vunpack.c.h.b16 %v3826
      %v4225 = vunpack.c.l.b16 %v3827
      %v4226 = vunpack.c.h.b16 %v3827
      %v4227 = vunpack.c.l.b16 %v3828
      %v4228 = vunpack.c.h.b16 %v3828
      %v4229 = vunpack.c.l.b16 %v3829
      %v4230 = vunpack.c.h.b16 %v3829
      %v4231 = vunpack.c.l.b16 %v3830
      %v4232 = vunpack.c.h.b16 %v3830
      %v4233 = vunpack.c.l.b16 %v3831
      %v4234 = vunpack.c.h.b16 %v3831
      %v4235 = vunpack.c.l.b16 %v3832
      %v4236 = vunpack.c.h.b16 %v3832
      %v4237 = vunpack.c.l.b16 %v3833
      %v4238 = vunpack.c.h.b16 %v3833
      %v4239 = vunpack.c.l.b16 %v3834
      %v4240 = vunpack.c.h.b16 %v3834
      %v4241 = vunpack.c.l.b16 %v3835
      %v4242 = vunpack.c.h.b16 %v3835
      %v4243 = vunpack.c.l.b16 %v3836
      %v4244 = vunpack.c.h.b16 %v3836
      %v4245 = vunpack.c.l.b16 %v3837
      %v4246 = vunpack.c.h.b16 %v3837
      %v4247 = vunpack.c.l.b16 %v3838
      %v4248 = vunpack.c.h.b16 %v3838
      %v4249 = vunpack.c.l.b16 %v3839
      %v4250 = vunpack.c.h.b16 %v3839
      %v4251 = vunpack.c.l.b16 %v3840
      %v4252 = vunpack.c.h.b16 %v3840
      %v4253 = vunpack.c.l.b16 %v3841
      %v4254 = vunpack.c.h.b16 %v3841
      %v4255 = vunpack.c.l.b16 %v3842
      %v4256 = vunpack.c.h.b16 %v3842
      %v4257 = vunpack.c.l.b16 %v3843
      %v4258 = vunpack.c.h.b16 %v3843
      %v4259 = vunpack.c.l.b16 %v3844
      %v4260 = vunpack.c.h.b16 %v3844
      %v4261 = vunpack.c.l.b16 %v3845
      %v4262 = vunpack.c.h.b16 %v3845
      %v4263 = vunpack.c.l.b16 %v3846
      %v4264 = vunpack.c.h.b16 %v3846
      %v4265 = vunpack.c.l.b16 %v3847
      %v4266 = vunpack.c.h.b16 %v3847
      %v4267 = vunpack.c.l.b16 %v3848
      %v4268 = vunpack.c.h.b16 %v3848
      %v4269 = vunpack.c.l.b16 %v3849
      %v4270 = vunpack.c.h.b16 %v3849
      %v4271 = vunpack.c.l.b16 %v3850
      %v4272 = vunpack.c.h.b16 %v3850
      %v4273 = vunpack.c.l.b16 %v3851
      %v4274 = vunpack.c.h.b16 %v3851
      %v4275 = vunpack.c.l.b16 %v3852
      %v4276 = vunpack.c.h.b16 %v3852
      %v4277 = vunpack.c.l.b16 %v3853
      %v4278 = vunpack.c.h.b16 %v3853
      %v4279 = vunpack.c.l.b16 %v3854
      %v4280 = vunpack.c.h.b16 %v3854
      %v4281 = vunpack.c.l.b16 %v3855
      %v4282 = vunpack.c.h.b16 %v3855
      %v4283 = vunpack.c.l.b16 %v3856
      %v4284 = vunpack.c.h.b16 %v3856
      %v4285 = vunpack.c.l.b16 %v3857
      %v4286 = vunpack.c.h.b16 %v3857
      %v4287 = vunpack.c.l.b16 %v3858
      %v4288 = vunpack.c.h.b16 %v3858
      %v4289 = vunpack.c.l.b16 %v3859
      %v4290 = vunpack.c.h.b16 %v3859
      %v4291 = vunpack.c.l.b16 %v3860
      %v4292 = vunpack.c.h.b16 %v3860
      %v4293 = vunpack.c.l.b16 %v3861
      %v4294 = vunpack.c.h.b16 %v3861
      %v4295 = vunpack.c.l.b16 %v3862
      %v4296 = vunpack.c.h.b16 %v3862
      %v4297 = vunpack.c.l.b16 %v3863
      %v4298 = vunpack.c.h.b16 %v3863
      %v4299 = vunpack.c.l.b16 %v3864
      %v4300 = vunpack.c.h.b16 %v3864
      %v4301 = vunpack.c.l.b16 %v3865
      %v4302 = vunpack.c.h.b16 %v3865
      %v4303 = vunpack.c.l.b16 %v3866
      %v4304 = vunpack.c.h.b16 %v3866
      %v4305 = vunpack.c.l.b16 %v3867
      %v4306 = vunpack.c.h.b16 %v3867
      %v4307 = vunpack.c.l.b16 %v3868
      %v4308 = vunpack.c.h.b16 %v3868
      %v4309 = vunpack.c.l.b16 %v3869
      %v4310 = vunpack.c.h.b16 %v3869
      %v4311 = vunpack.c.l.b16 %v3870
      %v4312 = vunpack.c.h.b16 %v3870
      %v4313 = vunpack.c.l.b16 %v3871
      %v4314 = vunpack.c.h.b16 %v3871
      %v4315 = vunpack.c.l.b16 %v3872
      %v4316 = vunpack.c.h.b16 %v3872
      %v4317 = vunpack.c.l.b16 %v3873
      %v4318 = vunpack.c.h.b16 %v3873
      %v4319 = vunpack.c.l.b16 %v3874
      %v4320 = vunpack.c.h.b16 %v3874
      %v4321 = vunpack.c.l.b16 %v3875
      %v4322 = vunpack.c.h.b16 %v3875
      %v4323 = vunpack.c.l.b16 %v3876
      %v4324 = vunpack.c.h.b16 %v3876
      %v4325 = vunpack.c.l.b16 %v3877
      %v4326 = vunpack.c.h.b16 %v3877
      %v4327 = vunpack.c.l.b16 %v3878
      %v4328 = vunpack.c.h.b16 %v3878
      %v4329 = vunpack.c.l.b16 %v3879
      %v4330 = vunpack.c.h.b16 %v3879
      %v4331 = vunpack.c.l.b16 %v3880
      %v4332 = vunpack.c.h.b16 %v3880
      %v4333 = vunpack.c.l.b16 %v3881
      %v4334 = vunpack.c.h.b16 %v3881
      %v4335 = vunpack.c.l.b16 %v3882
      %v4336 = vunpack.c.h.b16 %v3882
      %v4337 = vunpack.c.l.b16 %v3883
      %v4338 = vunpack.c.h.b16 %v3883
      %v4339 = vunpack.c.l.b16 %v3884
      %v4340 = vunpack.c.h.b16 %v3884
      %v4341 = vunpack.c.l.b16 %v3885
      %v4342 = vunpack.c.h.b16 %v3885
      %v4343 = vunpack.c.l.b16 %v3886
      %v4344 = vunpack.c.h.b16 %v3886
      %v4345 = vunpack.c.l.b16 %v3887
      %v4346 = vunpack.c.h.b16 %v3887
      %v4347 = vunpack.c.l.b16 %v3888
      %v4348 = vunpack.c.h.b16 %v3888
      %v4349 = vunpack.c.l.b16 %v3889
      %v4350 = vunpack.c.h.b16 %v3889
      %v4351 = vunpack.c.l.b16 %v3890
      %v4352 = vunpack.c.h.b16 %v3890
      %v4353 = vpack.c.b16 %v4101, %v4097
      %v4354 = vpack.c.b16 %v4102, %v4098
      %v4355 = vpack.c.b16 %v4103, %v4099
      %v4356 = vpack.c.b16 %v4104, %v4100
      %v4357 = vpack.c.b16 %v4109, %v4105
      %v4358 = vpack.c.b16 %v4110, %v4106
      %v4359 = vpack.c.b16 %v4111, %v4107
      %v4360 = vpack.c.b16 %v4112, %v4108
      %v4361 = vpack.c.b16 %v4117, %v4113
      %v4362 = vpack.c.b16 %v4118, %v4114
      %v4363 = vpack.c.b16 %v4119, %v4115
      %v4364 = vpack.c.b16 %v4120, %v4116
      %v4365 = vpack.c.b16 %v4125, %v4121
      %v4366 = vpack.c.b16 %v4126, %v4122
      %v4367 = vpack.c.b16 %v4127, %v4123
      %v4368 = vpack.c.b16 %v4128, %v4124
      %v4369 = vpack.c.b16 %v4133, %v4129
      %v4370 = vpack.c.b16 %v4134, %v4130
      %v4371 = vpack.c.b16 %v4135, %v4131
      %v4372 = vpack.c.b16 %v4136, %v4132
      %v4373 = vpack.c.b16 %v4141, %v4137
      %v4374 = vpack.c.b16 %v4142, %v4138
      %v4375 = vpack.c.b16 %v4143, %v4139
      %v4376 = vpack.c.b16 %v4144, %v4140
      %v4377 = vpack.c.b16 %v4149, %v4145
      %v4378 = vpack.c.b16 %v4150, %v4146
      %v4379 = vpack.c.b16 %v4151, %v4147
      %v4380 = vpack.c.b16 %v4152, %v4148
      %v4381 = vpack.c.b16 %v4157, %v4153
      %v4382 = vpack.c.b16 %v4158, %v4154
      %v4383 = vpack.c.b16 %v4159, %v4155
      %v4384 = vpack.c.b16 %v4160, %v4156
      %v4385 = vpack.c.b16 %v4165, %v4161
      %v4386 = vpack.c.b16 %v4166, %v4162
      %v4387 = vpack.c.b16 %v4167, %v4163
      %v4388 = vpack.c.b16 %v4168, %v4164
      %v4389 = vpack.c.b16 %v4173, %v4169
      %v4390 = vpack.c.b16 %v4174, %v4170
      %v4391 = vpack.c.b16 %v4175, %v4171
      %v4392 = vpack.c.b16 %v4176, %v4172
      %v4393 = vpack.c.b16 %v4181, %v4177
      %v4394 = vpack.c.b16 %v4182, %v4178
      %v4395 = vpack.c.b16 %v4183, %v4179
      %v4396 = vpack.c.b16 %v4184, %v4180
      %v4397 = vpack.c.b16 %v4189, %v4185
      %v4398 = vpack.c.b16 %v4190, %v4186
      %v4399 = vpack.c.b16 %v4191, %v4187
      %v4400 = vpack.c.b16 %v4192, %v4188
      %v4401 = vpack.c.b16 %v4197, %v4193
      %v4402 = vpack.c.b16 %v4198, %v4194
      %v4403 = vpack.c.b16 %v4199, %v4195
      %v4404 = vpack.c.b16 %v4200, %v4196
      %v4405 = vpack.c.b16 %v4205, %v4201
      %v4406 = vpack.c.b16 %v4206, %v4202
      %v4407 = vpack.c.b16 %v4207, %v4203
      %v4408 = vpack.c.b16 %v4208, %v4204
      %v4409 = vpack.c.b16 %v4213, %v4209
      %v4410 = vpack.c.b16 %v4214, %v4210
      %v4411 = vpack.c.b16 %v4215, %v4211
      %v4412 = vpack.c.b16 %v4216, %v4212
      %v4413 = vpack.c.b16 %v4221, %v4217
      %v4414 = vpack.c.b16 %v4222, %v4218
      %v4415 = vpack.c.b16 %v4223, %v4219
      %v4416 = vpack.c.b16 %v4224, %v4220
      %v4417 = vpack.c.b16 %v4229, %v4225
      %v4418 = vpack.c.b16 %v4230, %v4226
      %v4419 = vpack.c.b16 %v4231, %v4227
      %v4420 = vpack.c.b16 %v4232, %v4228
      %v4421 = vpack.c.b16 %v4237, %v4233
      %v4422 = vpack.c.b16 %v4238, %v4234
      %v4423 = vpack.c.b16 %v4239, %v4235
      %v4424 = vpack.c.b16 %v4240, %v4236
      %v4425 = vpack.c.b16 %v4245, %v4241
      %v4426 = vpack.c.b16 %v4246, %v4242
      %v4427 = vpack.c.b16 %v4247, %v4243
      %v4428 = vpack.c.b16 %v4248, %v4244
      %v4429 = vpack.c.b16 %v4253, %v4249
      %v4430 = vpack.c.b16 %v4254, %v4250
      %v4431 = vpack.c.b16 %v4255, %v4251
      %v4432 = vpack.c.b16 %v4256, %v4252
      %v4433 = vpack.c.b16 %v4261, %v4257
      %v4434 = vpack.c.b16 %v4262, %v4258
      %v4435 = vpack.c.b16 %v4263, %v4259
      %v4436 = vpack.c.b16 %v4264, %v4260
      %v4437 = vpack.c.b16 %v4269, %v4265
      %v4438 = vpack.c.b16 %v4270, %v4266
      %v4439 = vpack.c.b16 %v4271, %v4267
      %v4440 = vpack.c.b16 %v4272, %v4268
      %v4441 = vpack.c.b16 %v4277, %v4273
      %v4442 = vpack.c.b16 %v4278, %v4274
      %v4443 = vpack.c.b16 %v4279, %v4275
      %v4444 = vpack.c.b16 %v4280, %v4276
      %v4445 = vpack.c.b16 %v4285, %v4281
      %v4446 = vpack.c.b16 %v4286, %v4282
      %v4447 = vpack.c.b16 %v4287, %v4283
      %v4448 = vpack.c.b16 %v4288, %v4284
      %v4449 = vpack.c.b16 %v4293, %v4289
      %v4450 = vpack.c.b16 %v4294, %v4290
      %v4451 = vpack.c.b16 %v4295, %v4291
      %v4452 = vpack.c.b16 %v4296, %v4292
      %v4453 = vpack.c.b16 %v4301, %v4297
      %v4454 = vpack.c.b16 %v4302, %v4298
      %v4455 = vpack.c.b16 %v4303, %v4299
      %v4456 = vpack.c.b16 %v4304, %v4300
      %v4457 = vpack.c.b16 %v4309, %v4305
      %v4458 = vpack.c.b16 %v4310, %v4306
      %v4459 = vpack.c.b16 %v4311, %v4307
      %v4460 = vpack.c.b16 %v4312, %v4308
      %v4461 = vpack.c.b16 %v4317, %v4313
      %v4462 = vpack.c.b16 %v4318, %v4314
      %v4463 = vpack.c.b16 %v4319, %v4315
      %v4464 = vpack.c.b16 %v4320, %v4316
      %v4465 = vpack.c.b16 %v4325, %v4321
      %v4466 = vpack.c.b16 %v4326, %v4322
      %v4467 = vpack.c.b16 %v4327, %v4323
      %v4468 = vpack.c.b16 %v4328, %v4324
      %v4469 = vpack.c.b16 %v4333, %v4329
      %v4470 = vpack.c.b16 %v4334, %v4330
      %v4471 = vpack.c.b16 %v4335, %v4331
      %v4472 = vpack.c.b16 %v4336, %v4332
      %v4473 = vpack.c.b16 %v4341, %v4337
      %v4474 = vpack.c.b16 %v4342, %v4338
      %v4475 = vpack.c.b16 %v4343, %v4339
      %v4476 = vpack.c.b16 %v4344, %v4340
      %v4477 = vpack.c.b16 %v4349, %v4345
      %v4478 = vpack.c.b16 %v4350, %v4346
      %v4479 = vpack.c.b16 %v4351, %v4347
      %v4480 = vpack.c.b16 %v4352, %v4348
      %4609 = vmatpush.bf16.msra.mxu0 %v4381
      %4610 = vmatpush.bf16.msra.mxu0 %v4377
      %4611 = vmatpush.bf16.msra.mxu0 %v4373
      %4612 = vmatpush.bf16.msra.mxu0 %v4369
      %4613 = vmatpush.bf16.msra.mxu0 %v4365
      %4614 = vmatpush.bf16.msra.mxu0 %v4361
      %4615 = vmatpush.bf16.msra.mxu0 %v4357
      %4616 = vmatpush.bf16.msra.mxu0 %v4353
      %4617 = vmatmul.bf16.gmra.mxu0 %v3928
      %v4618 = vpop.f32.mrf.mxu0
      %v4619 = vadd.f32 0.0, %v4618
      %v4620 = vpop.f32.mrf.mxu0
      %v4621 = vadd.f32 0.0, %v4620
      %4622 = vdwg.mxu0
      %4623 = vmatpush.bf16.msra.mxu0 %v4413
      %4624 = vmatpush.bf16.msra.mxu0 %v4409
      %4625 = vmatpush.bf16.msra.mxu0 %v4405
      %4626 = vmatpush.bf16.msra.mxu0 %v4401
      %4627 = vmatpush.bf16.msra.mxu0 %v4397
      %4628 = vmatpush.bf16.msra.mxu0 %v4393
      %4629 = vmatpush.bf16.msra.mxu0 %v4389
      %4630 = vmatpush.bf16.msra.mxu0 %v4385
      %4631 = vmatmul.bf16.gmra.mxu0 %v3940
      %v4632 = vpop.f32.mrf.mxu0
      %v4633 = vadd.f32 %v4619, %v4632
      %v4634 = vpop.f32.mrf.mxu0
      %v4635 = vadd.f32 %v4621, %v4634
      %4636 = vdwg.mxu0
      %4637 = vmatpush.bf16.msra.mxu0 %v4445
      %4638 = vmatpush.bf16.msra.mxu0 %v4441
      %4639 = vmatpush.bf16.msra.mxu0 %v4437
      %4640 = vmatpush.bf16.msra.mxu0 %v4433
      %4641 = vmatpush.bf16.msra.mxu0 %v4429
      %4642 = vmatpush.bf16.msra.mxu0 %v4425
      %4643 = vmatpush.bf16.msra.mxu0 %v4421
      %4644 = vmatpush.bf16.msra.mxu0 %v4417
      %4645 = vmatmul.bf16.gmra.mxu0 %v3952
      %v4646 = vpop.f32.mrf.mxu0
      %v4647 = vadd.f32 %v4633, %v4646
      %v4648 = vpop.f32.mrf.mxu0
      %v4649 = vadd.f32 %v4635, %v4648
      %4650 = vdwg.mxu0
      %4651 = vmatpush.bf16.msra.mxu0 %v4477
      %4652 = vmatpush.bf16.msra.mxu0 %v4473
      %4653 = vmatpush.bf16.msra.mxu0 %v4469
      %4654 = vmatpush.bf16.msra.mxu0 %v4465
      %4655 = vmatpush.bf16.msra.mxu0 %v4461
      %4656 = vmatpush.bf16.msra.mxu0 %v4457
      %4657 = vmatpush.bf16.msra.mxu0 %v4453
      %4658 = vmatpush.bf16.msra.mxu0 %v4449
      %4659 = vmatmul.bf16.gmra.mxu0 %v3964
      %v4660 = vpop.f32.mrf.mxu0
      %v4661 = vadd.f32 %v4647, %v4660
      %v4662 = vpop.f32.mrf.mxu0
      %v4663 = vadd.f32 %v4649, %v4662
      %4664 = vdwg.mxu0
      %4665 = vmatpush.bf16.msra.mxu0 %v4382
      %4666 = vmatpush.bf16.msra.mxu0 %v4378
      %4667 = vmatpush.bf16.msra.mxu0 %v4374
      %4668 = vmatpush.bf16.msra.mxu0 %v4370
      %4669 = vmatpush.bf16.msra.mxu0 %v4366
      %4670 = vmatpush.bf16.msra.mxu0 %v4362
      %4671 = vmatpush.bf16.msra.mxu0 %v4358
      %4672 = vmatpush.bf16.msra.mxu0 %v4354
      %4673 = vmatmul.bf16.gmra.mxu0 %v3928
      %v4674 = vpop.f32.mrf.mxu0
      %v4675 = vadd.f32 0.0, %v4674
      %v4676 = vpop.f32.mrf.mxu0
      %v4677 = vadd.f32 0.0, %v4676
      %4678 = vdwg.mxu0
      %4679 = vmatpush.bf16.msra.mxu0 %v4414
      %4680 = vmatpush.bf16.msra.mxu0 %v4410
      %4681 = vmatpush.bf16.msra.mxu0 %v4406
      %4682 = vmatpush.bf16.msra.mxu0 %v4402
      %4683 = vmatpush.bf16.msra.mxu0 %v4398
      %4684 = vmatpush.bf16.msra.mxu0 %v4394
      %4685 = vmatpush.bf16.msra.mxu0 %v4390
      %4686 = vmatpush.bf16.msra.mxu0 %v4386
      %4687 = vmatmul.bf16.gmra.mxu0 %v3940
      %v4688 = vpop.f32.mrf.mxu0
      %v4689 = vadd.f32 %v4675, %v4688
      %v4690 = vpop.f32.mrf.mxu0
      %v4691 = vadd.f32 %v4677, %v4690
      %4692 = vdwg.mxu0
      %4693 = vmatpush.bf16.msra.mxu0 %v4446
      %4694 = vmatpush.bf16.msra.mxu0 %v4442
      %4695 = vmatpush.bf16.msra.mxu0 %v4438
      %4696 = vmatpush.bf16.msra.mxu0 %v4434
      %4697 = vmatpush.bf16.msra.mxu0 %v4430
      %4698 = vmatpush.bf16.msra.mxu0 %v4426
      %4699 = vmatpush.bf16.msra.mxu0 %v4422
      %4700 = vmatpush.bf16.msra.mxu0 %v4418
      %4701 = vmatmul.bf16.gmra.mxu0 %v3952
      %v4702 = vpop.f32.mrf.mxu0
      %v4703 = vadd.f32 %v4689, %v4702
      %v4704 = vpop.f32.mrf.mxu0
      %v4705 = vadd.f32 %v4691, %v4704
      %4706 = vdwg.mxu0
      %4707 = vmatpush.bf16.msra.mxu0 %v4478
      %4708 = vmatpush.bf16.msra.mxu0 %v4474
      %4709 = vmatpush.bf16.msra.mxu0 %v4470
      %4710 = vmatpush.bf16.msra.mxu0 %v4466
      %4711 = vmatpush.bf16.msra.mxu0 %v4462
      %4712 = vmatpush.bf16.msra.mxu0 %v4458
      %4713 = vmatpush.bf16.msra.mxu0 %v4454
      %4714 = vmatpush.bf16.msra.mxu0 %v4450
      %4715 = vmatmul.bf16.gmra.mxu0 %v3964
      %v4716 = vpop.f32.mrf.mxu0
      %v4717 = vadd.f32 %v4703, %v4716
      %v4718 = vpop.f32.mrf.mxu0
      %v4719 = vadd.f32 %v4705, %v4718
      %4720 = vdwg.mxu0
      %4721 = vmatpush.bf16.msra.mxu0 %v4383
      %4722 = vmatpush.bf16.msra.mxu0 %v4379
      %4723 = vmatpush.bf16.msra.mxu0 %v4375
      %4724 = vmatpush.bf16.msra.mxu0 %v4371
      %4725 = vmatpush.bf16.msra.mxu0 %v4367
      %4726 = vmatpush.bf16.msra.mxu0 %v4363
      %4727 = vmatpush.bf16.msra.mxu0 %v4359
      %4728 = vmatpush.bf16.msra.mxu0 %v4355
      %4729 = vmatmul.bf16.gmra.mxu0 %v3928
      %v4730 = vpop.f32.mrf.mxu0
      %v4731 = vadd.f32 0.0, %v4730
      %v4732 = vpop.f32.mrf.mxu0
      %v4733 = vadd.f32 0.0, %v4732
      %4734 = vdwg.mxu0
      %4735 = vmatpush.bf16.msra.mxu0 %v4415
      %4736 = vmatpush.bf16.msra.mxu0 %v4411
      %4737 = vmatpush.bf16.msra.mxu0 %v4407
      %4738 = vmatpush.bf16.msra.mxu0 %v4403
      %4739 = vmatpush.bf16.msra.mxu0 %v4399
      %4740 = vmatpush.bf16.msra.mxu0 %v4395
      %4741 = vmatpush.bf16.msra.mxu0 %v4391
      %4742 = vmatpush.bf16.msra.mxu0 %v4387
      %4743 = vmatmul.bf16.gmra.mxu0 %v3940
      %v4744 = vpop.f32.mrf.mxu0
      %v4745 = vadd.f32 %v4731, %v4744
      %v4746 = vpop.f32.mrf.mxu0
      %v4747 = vadd.f32 %v4733, %v4746
      %4748 = vdwg.mxu0
      %4749 = vmatpush.bf16.msra.mxu0 %v4447
      %4750 = vmatpush.bf16.msra.mxu0 %v4443
      %4751 = vmatpush.bf16.msra.mxu0 %v4439
      %4752 = vmatpush.bf16.msra.mxu0 %v4435
      %4753 = vmatpush.bf16.msra.mxu0 %v4431
      %4754 = vmatpush.bf16.msra.mxu0 %v4427
      %4755 = vmatpush.bf16.msra.mxu0 %v4423
      %4756 = vmatpush.bf16.msra.mxu0 %v4419
      %4757 = vmatmul.bf16.gmra.mxu0 %v3952
      %v4758 = vpop.f32.mrf.mxu0
      %v4759 = vadd.f32 %v4745, %v4758
      %v4760 = vpop.f32.mrf.mxu0
      %v4761 = vadd.f32 %v4747, %v4760
      %4762 = vdwg.mxu0
      %4763 = vmatpush.bf16.msra.mxu0 %v4479
      %4764 = vmatpush.bf16.msra.mxu0 %v4475
      %4765 = vmatpush.bf16.msra.mxu0 %v4471
      %4766 = vmatpush.bf16.msra.mxu0 %v4467
      %4767 = vmatpush.bf16.msra.mxu0 %v4463
      %4768 = vmatpush.bf16.msra.mxu0 %v4459
      %4769 = vmatpush.bf16.msra.mxu0 %v4455
      %4770 = vmatpush.bf16.msra.mxu0 %v4451
      %4771 = vmatmul.bf16.gmra.mxu0 %v3964
      %v4772 = vpop.f32.mrf.mxu0
      %v4773 = vadd.f32 %v4759, %v4772
      %v4774 = vpop.f32.mrf.mxu0
      %v4775 = vadd.f32 %v4761, %v4774
      %4776 = vdwg.mxu0
      %4777 = vmatpush.bf16.msra.mxu0 %v4384
      %4778 = vmatpush.bf16.msra.mxu0 %v4380
      %4779 = vmatpush.bf16.msra.mxu0 %v4376
      %4780 = vmatpush.bf16.msra.mxu0 %v4372
      %4781 = vmatpush.bf16.msra.mxu0 %v4368
      %4782 = vmatpush.bf16.msra.mxu0 %v4364
      %4783 = vmatpush.bf16.msra.mxu0 %v4360
      %4784 = vmatpush.bf16.msra.mxu0 %v4356
      %4785 = vmatmul.bf16.gmra.mxu0 %v3928
      %v4786 = vpop.f32.mrf.mxu0
      %v4787 = vadd.f32 0.0, %v4786
      %v4788 = vpop.f32.mrf.mxu0
      %v4789 = vadd.f32 0.0, %v4788
      %4790 = vdwg.mxu0
      %4791 = vmatpush.bf16.msra.mxu0 %v4416
      %4792 = vmatpush.bf16.msra.mxu0 %v4412
      %4793 = vmatpush.bf16.msra.mxu0 %v4408
      %4794 = vmatpush.bf16.msra.mxu0 %v4404
      %4795 = vmatpush.bf16.msra.mxu0 %v4400
      %4796 = vmatpush.bf16.msra.mxu0 %v4396
      %4797 = vmatpush.bf16.msra.mxu0 %v4392
      %4798 = vmatpush.bf16.msra.mxu0 %v4388
      %4799 = vmatmul.bf16.gmra.mxu0 %v3940
      %v4800 = vpop.f32.mrf.mxu0
      %v4801 = vadd.f32 %v4787, %v4800
      %v4802 = vpop.f32.mrf.mxu0
      %v4803 = vadd.f32 %v4789, %v4802
      %4804 = vdwg.mxu0
      %4805 = vmatpush.bf16.msra.mxu0 %v4448
      %4806 = vmatpush.bf16.msra.mxu0 %v4444
      %4807 = vmatpush.bf16.msra.mxu0 %v4440
      %4808 = vmatpush.bf16.msra.mxu0 %v4436
      %4809 = vmatpush.bf16.msra.mxu0 %v4432
      %4810 = vmatpush.bf16.msra.mxu0 %v4428
      %4811 = vmatpush.bf16.msra.mxu0 %v4424
      %4812 = vmatpush.bf16.msra.mxu0 %v4420
      %4813 = vmatmul.bf16.gmra.mxu0 %v3952
      %v4814 = vpop.f32.mrf.mxu0
      %v4815 = vadd.f32 %v4801, %v4814
      %v4816 = vpop.f32.mrf.mxu0
      %v4817 = vadd.f32 %v4803, %v4816
      %4818 = vdwg.mxu0
      %4819 = vmatpush.bf16.msra.mxu0 %v4480
      %4820 = vmatpush.bf16.msra.mxu0 %v4476
      %4821 = vmatpush.bf16.msra.mxu0 %v4472
      %4822 = vmatpush.bf16.msra.mxu0 %v4468
      %4823 = vmatpush.bf16.msra.mxu0 %v4464
      %4824 = vmatpush.bf16.msra.mxu0 %v4460
      %4825 = vmatpush.bf16.msra.mxu0 %v4456
      %4826 = vmatpush.bf16.msra.mxu0 %v4452
      %4827 = vmatmul.bf16.gmra.mxu0 %v3964
      %v4828 = vpop.f32.mrf.mxu0
      %v4829 = vadd.f32 %v4815, %v4828
      %v4830 = vpop.f32.mrf.mxu0
      %v4831 = vadd.f32 %v4817, %v4830
      %4832 = vdwg.mxu0
      %v4965 = vunpack.c.l.b16 %v3632
      %v4966 = vunpack.c.h.b16 %v3632
      %v4967 = vunpack.c.l.b16 %v3633
      %v4968 = vunpack.c.h.b16 %v3633
      %v4969 = vunpack.c.l.b16 %v3634
      %v4970 = vunpack.c.h.b16 %v3634
      %v4971 = vunpack.c.l.b16 %v3635
      %v4972 = vunpack.c.h.b16 %v3635
      %v4973 = vunpack.c.l.b16 %v3636
      %v4974 = vunpack.c.h.b16 %v3636
      %v4975 = vunpack.c.l.b16 %v3637
      %v4976 = vunpack.c.h.b16 %v3637
      %v4977 = vunpack.c.l.b16 %v3638
      %v4978 = vunpack.c.h.b16 %v3638
      %v4979 = vunpack.c.l.b16 %v3639
      %v4980 = vunpack.c.h.b16 %v3639
      %v4981 = vunpack.c.l.b16 %v3640
      %v4982 = vunpack.c.h.b16 %v3640
      %v4983 = vunpack.c.l.b16 %v3641
      %v4984 = vunpack.c.h.b16 %v3641
      %v4985 = vunpack.c.l.b16 %v3642
      %v4986 = vunpack.c.h.b16 %v3642
      %v4987 = vunpack.c.l.b16 %v3643
      %v4988 = vunpack.c.h.b16 %v3643
      %v4989 = vunpack.c.l.b16 %v3644
      %v4990 = vunpack.c.h.b16 %v3644
      %v4991 = vunpack.c.l.b16 %v3645
      %v4992 = vunpack.c.h.b16 %v3645
      %v4993 = vunpack.c.l.b16 %v3646
      %v4994 = vunpack.c.h.b16 %v3646
      %v4995 = vunpack.c.l.b16 %v3647
      %v4996 = vunpack.c.h.b16 %v3647
      %v4997 = vunpack.c.l.b16 %v3648
      %v4998 = vunpack.c.h.b16 %v3648
      %v4999 = vunpack.c.l.b16 %v3649
      %v5000 = vunpack.c.h.b16 %v3649
      %v5001 = vunpack.c.l.b16 %v3650
      %v5002 = vunpack.c.h.b16 %v3650
      %v5003 = vunpack.c.l.b16 %v3651
      %v5004 = vunpack.c.h.b16 %v3651
      %v5005 = vunpack.c.l.b16 %v3652
      %v5006 = vunpack.c.h.b16 %v3652
      %v5007 = vunpack.c.l.b16 %v3653
      %v5008 = vunpack.c.h.b16 %v3653
      %v5009 = vunpack.c.l.b16 %v3654
      %v5010 = vunpack.c.h.b16 %v3654
      %v5011 = vunpack.c.l.b16 %v3655
      %v5012 = vunpack.c.h.b16 %v3655
      %v5013 = vunpack.c.l.b16 %v3656
      %v5014 = vunpack.c.h.b16 %v3656
      %v5015 = vunpack.c.l.b16 %v3657
      %v5016 = vunpack.c.h.b16 %v3657
      %v5017 = vunpack.c.l.b16 %v3658
      %v5018 = vunpack.c.h.b16 %v3658
      %v5019 = vunpack.c.l.b16 %v3659
      %v5020 = vunpack.c.h.b16 %v3659
      %v5021 = vunpack.c.l.b16 %v3660
      %v5022 = vunpack.c.h.b16 %v3660
      %v5023 = vunpack.c.l.b16 %v3661
      %v5024 = vunpack.c.h.b16 %v3661
      %v5025 = vunpack.c.l.b16 %v3662
      %v5026 = vunpack.c.h.b16 %v3662
      %v5027 = vunpack.c.l.b16 %v3663
      %v5028 = vunpack.c.h.b16 %v3663
      %v5029 = vunpack.c.l.b16 %v3664
      %v5030 = vunpack.c.h.b16 %v3664
      %v5031 = vunpack.c.l.b16 %v3665
      %v5032 = vunpack.c.h.b16 %v3665
      %v5033 = vunpack.c.l.b16 %v3666
      %v5034 = vunpack.c.h.b16 %v3666
      %v5035 = vunpack.c.l.b16 %v3667
      %v5036 = vunpack.c.h.b16 %v3667
      %v5037 = vunpack.c.l.b16 %v3668
      %v5038 = vunpack.c.h.b16 %v3668
      %v5039 = vunpack.c.l.b16 %v3669
      %v5040 = vunpack.c.h.b16 %v3669
      %v5041 = vunpack.c.l.b16 %v3670
      %v5042 = vunpack.c.h.b16 %v3670
      %v5043 = vunpack.c.l.b16 %v3671
      %v5044 = vunpack.c.h.b16 %v3671
      %v5045 = vunpack.c.l.b16 %v3672
      %v5046 = vunpack.c.h.b16 %v3672
      %v5047 = vunpack.c.l.b16 %v3673
      %v5048 = vunpack.c.h.b16 %v3673
      %v5049 = vunpack.c.l.b16 %v3674
      %v5050 = vunpack.c.h.b16 %v3674
      %v5051 = vunpack.c.l.b16 %v3675
      %v5052 = vunpack.c.h.b16 %v3675
      %v5053 = vunpack.c.l.b16 %v3676
      %v5054 = vunpack.c.h.b16 %v3676
      %v5055 = vunpack.c.l.b16 %v3677
      %v5056 = vunpack.c.h.b16 %v3677
      %v5057 = vunpack.c.l.b16 %v3678
      %v5058 = vunpack.c.h.b16 %v3678
      %v5059 = vunpack.c.l.b16 %v3679
      %v5060 = vunpack.c.h.b16 %v3679
      %v5061 = vunpack.c.l.b16 %v3680
      %v5062 = vunpack.c.h.b16 %v3680
      %v5063 = vunpack.c.l.b16 %v3681
      %v5064 = vunpack.c.h.b16 %v3681
      %v5065 = vunpack.c.l.b16 %v3682
      %v5066 = vunpack.c.h.b16 %v3682
      %v5067 = vunpack.c.l.b16 %v3683
      %v5068 = vunpack.c.h.b16 %v3683
      %v5069 = vunpack.c.l.b16 %v3684
      %v5070 = vunpack.c.h.b16 %v3684
      %v5071 = vunpack.c.l.b16 %v3685
      %v5072 = vunpack.c.h.b16 %v3685
      %v5073 = vunpack.c.l.b16 %v3686
      %v5074 = vunpack.c.h.b16 %v3686
      %v5075 = vunpack.c.l.b16 %v3687
      %v5076 = vunpack.c.h.b16 %v3687
      %v5077 = vunpack.c.l.b16 %v3688
      %v5078 = vunpack.c.h.b16 %v3688
      %v5079 = vunpack.c.l.b16 %v3689
      %v5080 = vunpack.c.h.b16 %v3689
      %v5081 = vunpack.c.l.b16 %v3690
      %v5082 = vunpack.c.h.b16 %v3690
      %v5083 = vunpack.c.l.b16 %v3691
      %v5084 = vunpack.c.h.b16 %v3691
      %v5085 = vunpack.c.l.b16 %v3692
      %v5086 = vunpack.c.h.b16 %v3692
      %v5087 = vunpack.c.l.b16 %v3693
      %v5088 = vunpack.c.h.b16 %v3693
      %v5089 = vunpack.c.l.b16 %v3694
      %v5090 = vunpack.c.h.b16 %v3694
      %v5091 = vunpack.c.l.b16 %v3695
      %v5092 = vunpack.c.h.b16 %v3695
      %v5093 = vunpack.c.l.b16 %v3696
      %v5094 = vunpack.c.h.b16 %v3696
      %v5095 = vunpack.c.l.b16 %v3697
      %v5096 = vunpack.c.h.b16 %v3697
      %v5097 = vunpack.c.l.b16 %v3698
      %v5098 = vunpack.c.h.b16 %v3698
      %v5099 = vunpack.c.l.b16 %v3699
      %v5100 = vunpack.c.h.b16 %v3699
      %v5101 = vunpack.c.l.b16 %v3700
      %v5102 = vunpack.c.h.b16 %v3700
      %v5103 = vunpack.c.l.b16 %v3701
      %v5104 = vunpack.c.h.b16 %v3701
      %v5105 = vunpack.c.l.b16 %v3702
      %v5106 = vunpack.c.h.b16 %v3702
      %v5107 = vunpack.c.l.b16 %v3703
      %v5108 = vunpack.c.h.b16 %v3703
      %v5109 = vunpack.c.l.b16 %v3704
      %v5110 = vunpack.c.h.b16 %v3704
      %v5111 = vunpack.c.l.b16 %v3705
      %v5112 = vunpack.c.h.b16 %v3705
      %v5113 = vunpack.c.l.b16 %v3706
      %v5114 = vunpack.c.h.b16 %v3706
      %v5115 = vunpack.c.l.b16 %v3707
      %v5116 = vunpack.c.h.b16 %v3707
      %v5117 = vunpack.c.l.b16 %v3708
      %v5118 = vunpack.c.h.b16 %v3708
      %v5119 = vunpack.c.l.b16 %v3709
      %v5120 = vunpack.c.h.b16 %v3709
      %v5121 = vunpack.c.l.b16 %v3710
      %v5122 = vunpack.c.h.b16 %v3710
      %v5123 = vunpack.c.l.b16 %v3711
      %v5124 = vunpack.c.h.b16 %v3711
      %v5125 = vunpack.c.l.b16 %v3712
      %v5126 = vunpack.c.h.b16 %v3712
      %v5127 = vunpack.c.l.b16 %v3713
      %v5128 = vunpack.c.h.b16 %v3713
      %v5129 = vunpack.c.l.b16 %v3714
      %v5130 = vunpack.c.h.b16 %v3714
      %v5131 = vunpack.c.l.b16 %v3715
      %v5132 = vunpack.c.h.b16 %v3715
      %v5133 = vunpack.c.l.b16 %v3716
      %v5134 = vunpack.c.h.b16 %v3716
      %v5135 = vunpack.c.l.b16 %v3717
      %v5136 = vunpack.c.h.b16 %v3717
      %v5137 = vunpack.c.l.b16 %v3718
      %v5138 = vunpack.c.h.b16 %v3718
      %v5139 = vunpack.c.l.b16 %v3719
      %v5140 = vunpack.c.h.b16 %v3719
      %v5141 = vunpack.c.l.b16 %v3720
      %v5142 = vunpack.c.h.b16 %v3720
      %v5143 = vunpack.c.l.b16 %v3721
      %v5144 = vunpack.c.h.b16 %v3721
      %v5145 = vunpack.c.l.b16 %v3722
      %v5146 = vunpack.c.h.b16 %v3722
      %v5147 = vunpack.c.l.b16 %v3723
      %v5148 = vunpack.c.h.b16 %v3723
      %v5149 = vunpack.c.l.b16 %v3724
      %v5150 = vunpack.c.h.b16 %v3724
      %v5151 = vunpack.c.l.b16 %v3725
      %v5152 = vunpack.c.h.b16 %v3725
      %v5153 = vunpack.c.l.b16 %v3726
      %v5154 = vunpack.c.h.b16 %v3726
      %v5155 = vunpack.c.l.b16 %v3727
      %v5156 = vunpack.c.h.b16 %v3727
      %v5157 = vunpack.c.l.b16 %v3728
      %v5158 = vunpack.c.h.b16 %v3728
      %v5159 = vunpack.c.l.b16 %v3729
      %v5160 = vunpack.c.h.b16 %v3729
      %v5161 = vunpack.c.l.b16 %v3730
      %v5162 = vunpack.c.h.b16 %v3730
      %v5163 = vunpack.c.l.b16 %v3731
      %v5164 = vunpack.c.h.b16 %v3731
      %v5165 = vunpack.c.l.b16 %v3732
      %v5166 = vunpack.c.h.b16 %v3732
      %v5167 = vunpack.c.l.b16 %v3733
      %v5168 = vunpack.c.h.b16 %v3733
      %v5169 = vunpack.c.l.b16 %v3734
      %v5170 = vunpack.c.h.b16 %v3734
      %v5171 = vunpack.c.l.b16 %v3735
      %v5172 = vunpack.c.h.b16 %v3735
      %v5173 = vunpack.c.l.b16 %v3736
      %v5174 = vunpack.c.h.b16 %v3736
      %v5175 = vunpack.c.l.b16 %v3737
      %v5176 = vunpack.c.h.b16 %v3737
      %v5177 = vunpack.c.l.b16 %v3738
      %v5178 = vunpack.c.h.b16 %v3738
      %v5179 = vunpack.c.l.b16 %v3739
      %v5180 = vunpack.c.h.b16 %v3739
      %v5181 = vunpack.c.l.b16 %v3740
      %v5182 = vunpack.c.h.b16 %v3740
      %v5183 = vunpack.c.l.b16 %v3741
      %v5184 = vunpack.c.h.b16 %v3741
      %v5185 = vunpack.c.l.b16 %v3742
      %v5186 = vunpack.c.h.b16 %v3742
      %v5187 = vunpack.c.l.b16 %v3743
      %v5188 = vunpack.c.h.b16 %v3743
      %v5189 = vunpack.c.l.b16 %v3744
      %v5190 = vunpack.c.h.b16 %v3744
      %v5191 = vunpack.c.l.b16 %v3745
      %v5192 = vunpack.c.h.b16 %v3745
      %v5193 = vunpack.c.l.b16 %v3746
      %v5194 = vunpack.c.h.b16 %v3746
      %v5195 = vunpack.c.l.b16 %v3747
      %v5196 = vunpack.c.h.b16 %v3747
      %v5197 = vunpack.c.l.b16 %v3748
      %v5198 = vunpack.c.h.b16 %v3748
      %v5199 = vunpack.c.l.b16 %v3749
      %v5200 = vunpack.c.h.b16 %v3749
      %v5201 = vunpack.c.l.b16 %v3750
      %v5202 = vunpack.c.h.b16 %v3750
      %v5203 = vunpack.c.l.b16 %v3751
      %v5204 = vunpack.c.h.b16 %v3751
      %v5205 = vunpack.c.l.b16 %v3752
      %v5206 = vunpack.c.h.b16 %v3752
      %v5207 = vunpack.c.l.b16 %v3753
      %v5208 = vunpack.c.h.b16 %v3753
      %v5209 = vunpack.c.l.b16 %v3754
      %v5210 = vunpack.c.h.b16 %v3754
      %v5211 = vunpack.c.l.b16 %v3755
      %v5212 = vunpack.c.h.b16 %v3755
      %v5213 = vunpack.c.l.b16 %v3756
      %v5214 = vunpack.c.h.b16 %v3756
      %v5215 = vunpack.c.l.b16 %v3757
      %v5216 = vunpack.c.h.b16 %v3757
      %v5217 = vunpack.c.l.b16 %v3758
      %v5218 = vunpack.c.h.b16 %v3758
      %v5219 = vunpack.c.l.b16 %v3759
      %v5220 = vunpack.c.h.b16 %v3759
      %v5221 = vpack.c.b16 %v4969, %v4965
      %v5222 = vpack.c.b16 %v4970, %v4966
      %v5223 = vpack.c.b16 %v4971, %v4967
      %v5224 = vpack.c.b16 %v4972, %v4968
      %v5225 = vpack.c.b16 %v4977, %v4973
      %v5226 = vpack.c.b16 %v4978, %v4974
      %v5227 = vpack.c.b16 %v4979, %v4975
      %v5228 = vpack.c.b16 %v4980, %v4976
      %v5229 = vpack.c.b16 %v4985, %v4981
      %v5230 = vpack.c.b16 %v4986, %v4982
      %v5231 = vpack.c.b16 %v4987, %v4983
      %v5232 = vpack.c.b16 %v4988, %v4984
      %v5233 = vpack.c.b16 %v4993, %v4989
      %v5234 = vpack.c.b16 %v4994, %v4990
      %v5235 = vpack.c.b16 %v4995, %v4991
      %v5236 = vpack.c.b16 %v4996, %v4992
      %v5237 = vpack.c.b16 %v5001, %v4997
      %v5238 = vpack.c.b16 %v5002, %v4998
      %v5239 = vpack.c.b16 %v5003, %v4999
      %v5240 = vpack.c.b16 %v5004, %v5000
      %v5241 = vpack.c.b16 %v5009, %v5005
      %v5242 = vpack.c.b16 %v5010, %v5006
      %v5243 = vpack.c.b16 %v5011, %v5007
      %v5244 = vpack.c.b16 %v5012, %v5008
      %v5245 = vpack.c.b16 %v5017, %v5013
      %v5246 = vpack.c.b16 %v5018, %v5014
      %v5247 = vpack.c.b16 %v5019, %v5015
      %v5248 = vpack.c.b16 %v5020, %v5016
      %v5249 = vpack.c.b16 %v5025, %v5021
      %v5250 = vpack.c.b16 %v5026, %v5022
      %v5251 = vpack.c.b16 %v5027, %v5023
      %v5252 = vpack.c.b16 %v5028, %v5024
      %v5253 = vpack.c.b16 %v5033, %v5029
      %v5254 = vpack.c.b16 %v5034, %v5030
      %v5255 = vpack.c.b16 %v5035, %v5031
      %v5256 = vpack.c.b16 %v5036, %v5032
      %v5257 = vpack.c.b16 %v5041, %v5037
      %v5258 = vpack.c.b16 %v5042, %v5038
      %v5259 = vpack.c.b16 %v5043, %v5039
      %v5260 = vpack.c.b16 %v5044, %v5040
      %v5261 = vpack.c.b16 %v5049, %v5045
      %v5262 = vpack.c.b16 %v5050, %v5046
      %v5263 = vpack.c.b16 %v5051, %v5047
      %v5264 = vpack.c.b16 %v5052, %v5048
      %v5265 = vpack.c.b16 %v5057, %v5053
      %v5266 = vpack.c.b16 %v5058, %v5054
      %v5267 = vpack.c.b16 %v5059, %v5055
      %v5268 = vpack.c.b16 %v5060, %v5056
      %v5269 = vpack.c.b16 %v5065, %v5061
      %v5270 = vpack.c.b16 %v5066, %v5062
      %v5271 = vpack.c.b16 %v5067, %v5063
      %v5272 = vpack.c.b16 %v5068, %v5064
      %v5273 = vpack.c.b16 %v5073, %v5069
      %v5274 = vpack.c.b16 %v5074, %v5070
      %v5275 = vpack.c.b16 %v5075, %v5071
      %v5276 = vpack.c.b16 %v5076, %v5072
      %v5277 = vpack.c.b16 %v5081, %v5077
      %v5278 = vpack.c.b16 %v5082, %v5078
      %v5279 = vpack.c.b16 %v5083, %v5079
      %v5280 = vpack.c.b16 %v5084, %v5080
      %v5281 = vpack.c.b16 %v5089, %v5085
      %v5282 = vpack.c.b16 %v5090, %v5086
      %v5283 = vpack.c.b16 %v5091, %v5087
      %v5284 = vpack.c.b16 %v5092, %v5088
      %v5285 = vpack.c.b16 %v5097, %v5093
      %v5286 = vpack.c.b16 %v5098, %v5094
      %v5287 = vpack.c.b16 %v5099, %v5095
      %v5288 = vpack.c.b16 %v5100, %v5096
      %v5289 = vpack.c.b16 %v5105, %v5101
      %v5290 = vpack.c.b16 %v5106, %v5102
      %v5291 = vpack.c.b16 %v5107, %v5103
      %v5292 = vpack.c.b16 %v5108, %v5104
      %v5293 = vpack.c.b16 %v5113, %v5109
      %v5294 = vpack.c.b16 %v5114, %v5110
      %v5295 = vpack.c.b16 %v5115, %v5111
      %v5296 = vpack.c.b16 %v5116, %v5112
      %v5297 = vpack.c.b16 %v5121, %v5117
      %v5298 = vpack.c.b16 %v5122, %v5118
      %v5299 = vpack.c.b16 %v5123, %v5119
      %v5300 = vpack.c.b16 %v5124, %v5120
      %v5301 = vpack.c.b16 %v5129, %v5125
      %v5302 = vpack.c.b16 %v5130, %v5126
      %v5303 = vpack.c.b16 %v5131, %v5127
      %v5304 = vpack.c.b16 %v5132, %v5128
      %v5305 = vpack.c.b16 %v5137, %v5133
      %v5306 = vpack.c.b16 %v5138, %v5134
      %v5307 = vpack.c.b16 %v5139, %v5135
      %v5308 = vpack.c.b16 %v5140, %v5136
      %v5309 = vpack.c.b16 %v5145, %v5141
      %v5310 = vpack.c.b16 %v5146, %v5142
      %v5311 = vpack.c.b16 %v5147, %v5143
      %v5312 = vpack.c.b16 %v5148, %v5144
      %v5313 = vpack.c.b16 %v5153, %v5149
      %v5314 = vpack.c.b16 %v5154, %v5150
      %v5315 = vpack.c.b16 %v5155, %v5151
      %v5316 = vpack.c.b16 %v5156, %v5152
      %v5317 = vpack.c.b16 %v5161, %v5157
      %v5318 = vpack.c.b16 %v5162, %v5158
      %v5319 = vpack.c.b16 %v5163, %v5159
      %v5320 = vpack.c.b16 %v5164, %v5160
      %v5321 = vpack.c.b16 %v5169, %v5165
      %v5322 = vpack.c.b16 %v5170, %v5166
      %v5323 = vpack.c.b16 %v5171, %v5167
      %v5324 = vpack.c.b16 %v5172, %v5168
      %v5325 = vpack.c.b16 %v5177, %v5173
      %v5326 = vpack.c.b16 %v5178, %v5174
      %v5327 = vpack.c.b16 %v5179, %v5175
      %v5328 = vpack.c.b16 %v5180, %v5176
      %v5329 = vpack.c.b16 %v5185, %v5181
      %v5330 = vpack.c.b16 %v5186, %v5182
      %v5331 = vpack.c.b16 %v5187, %v5183
      %v5332 = vpack.c.b16 %v5188, %v5184
      %v5333 = vpack.c.b16 %v5193, %v5189
      %v5334 = vpack.c.b16 %v5194, %v5190
      %v5335 = vpack.c.b16 %v5195, %v5191
      %v5336 = vpack.c.b16 %v5196, %v5192
      %v5337 = vpack.c.b16 %v5201, %v5197
      %v5338 = vpack.c.b16 %v5202, %v5198
      %v5339 = vpack.c.b16 %v5203, %v5199
      %v5340 = vpack.c.b16 %v5204, %v5200
      %v5341 = vpack.c.b16 %v5209, %v5205
      %v5342 = vpack.c.b16 %v5210, %v5206
      %v5343 = vpack.c.b16 %v5211, %v5207
      %v5344 = vpack.c.b16 %v5212, %v5208
      %v5345 = vpack.c.b16 %v5217, %v5213
      %v5346 = vpack.c.b16 %v5218, %v5214
      %v5347 = vpack.c.b16 %v5219, %v5215
      %v5348 = vpack.c.b16 %v5220, %v5216
      %5477 = vmatpush.bf16.msra.mxu0 %v5249
      %5478 = vmatpush.bf16.msra.mxu0 %v5245
      %5479 = vmatpush.bf16.msra.mxu0 %v5241
      %5480 = vmatpush.bf16.msra.mxu0 %v5237
      %5481 = vmatpush.bf16.msra.mxu0 %v5233
      %5482 = vmatpush.bf16.msra.mxu0 %v5229
      %5483 = vmatpush.bf16.msra.mxu0 %v5225
      %5484 = vmatpush.bf16.msra.mxu0 %v5221
      %5485 = vmatmul.bf16.gmra.mxu0 %v3909
      %v5486 = vpop.f32.mrf.mxu0
      %v5487 = vadd.f32 %v4661, %v5486
      %v5488 = vpop.f32.mrf.mxu0
      %v5489 = vadd.f32 %v4663, %v5488
      %5490 = vdwg.mxu0
      %5491 = vmatpush.bf16.msra.mxu0 %v5281
      %5492 = vmatpush.bf16.msra.mxu0 %v5277
      %5493 = vmatpush.bf16.msra.mxu0 %v5273
      %5494 = vmatpush.bf16.msra.mxu0 %v5269
      %5495 = vmatpush.bf16.msra.mxu0 %v5265
      %5496 = vmatpush.bf16.msra.mxu0 %v5261
      %5497 = vmatpush.bf16.msra.mxu0 %v5257
      %5498 = vmatpush.bf16.msra.mxu0 %v5253
      %5499 = vmatmul.bf16.gmra.mxu0 %v3910
      %v5500 = vpop.f32.mrf.mxu0
      %v5501 = vadd.f32 %v5487, %v5500
      %v5502 = vpop.f32.mrf.mxu0
      %v5503 = vadd.f32 %v5489, %v5502
      %5504 = vdwg.mxu0
      %5505 = vmatpush.bf16.msra.mxu0 %v5313
      %5506 = vmatpush.bf16.msra.mxu0 %v5309
      %5507 = vmatpush.bf16.msra.mxu0 %v5305
      %5508 = vmatpush.bf16.msra.mxu0 %v5301
      %5509 = vmatpush.bf16.msra.mxu0 %v5297
      %5510 = vmatpush.bf16.msra.mxu0 %v5293
      %5511 = vmatpush.bf16.msra.mxu0 %v5289
      %5512 = vmatpush.bf16.msra.mxu0 %v5285
      %5513 = vmatmul.bf16.gmra.mxu0 %v3911
      %v5514 = vpop.f32.mrf.mxu0
      %v5515 = vadd.f32 %v5501, %v5514
      %v5516 = vpop.f32.mrf.mxu0
      %v5517 = vadd.f32 %v5503, %v5516
      %5518 = vdwg.mxu0
      %5519 = vmatpush.bf16.msra.mxu0 %v5345
      %5520 = vmatpush.bf16.msra.mxu0 %v5341
      %5521 = vmatpush.bf16.msra.mxu0 %v5337
      %5522 = vmatpush.bf16.msra.mxu0 %v5333
      %5523 = vmatpush.bf16.msra.mxu0 %v5329
      %5524 = vmatpush.bf16.msra.mxu0 %v5325
      %5525 = vmatpush.bf16.msra.mxu0 %v5321
      %5526 = vmatpush.bf16.msra.mxu0 %v5317
      %5527 = vmatmul.bf16.gmra.mxu0 %v3912
      %v5528 = vpop.f32.mrf.mxu0
      %v5529 = vadd.f32 %v5515, %v5528
      %v5530 = vpop.f32.mrf.mxu0
      %v5531 = vadd.f32 %v5517, %v5530
      %5532 = vdwg.mxu0
      %5533 = vmatpush.bf16.msra.mxu0 %v5250
      %5534 = vmatpush.bf16.msra.mxu0 %v5246
      %5535 = vmatpush.bf16.msra.mxu0 %v5242
      %5536 = vmatpush.bf16.msra.mxu0 %v5238
      %5537 = vmatpush.bf16.msra.mxu0 %v5234
      %5538 = vmatpush.bf16.msra.mxu0 %v5230
      %5539 = vmatpush.bf16.msra.mxu0 %v5226
      %5540 = vmatpush.bf16.msra.mxu0 %v5222
      %5541 = vmatmul.bf16.gmra.mxu0 %v3909
      %v5542 = vpop.f32.mrf.mxu0
      %v5543 = vadd.f32 %v4717, %v5542
      %v5544 = vpop.f32.mrf.mxu0
      %v5545 = vadd.f32 %v4719, %v5544
      %5546 = vdwg.mxu0
      %5547 = vmatpush.bf16.msra.mxu0 %v5282
      %5548 = vmatpush.bf16.msra.mxu0 %v5278
      %5549 = vmatpush.bf16.msra.mxu0 %v5274
      %5550 = vmatpush.bf16.msra.mxu0 %v5270
      %5551 = vmatpush.bf16.msra.mxu0 %v5266
      %5552 = vmatpush.bf16.msra.mxu0 %v5262
      %5553 = vmatpush.bf16.msra.mxu0 %v5258
      %5554 = vmatpush.bf16.msra.mxu0 %v5254
      %5555 = vmatmul.bf16.gmra.mxu0 %v3910
      %v5556 = vpop.f32.mrf.mxu0
      %v5557 = vadd.f32 %v5543, %v5556
      %v5558 = vpop.f32.mrf.mxu0
      %v5559 = vadd.f32 %v5545, %v5558
      %5560 = vdwg.mxu0
      %5561 = vmatpush.bf16.msra.mxu0 %v5314
      %5562 = vmatpush.bf16.msra.mxu0 %v5310
      %5563 = vmatpush.bf16.msra.mxu0 %v5306
      %5564 = vmatpush.bf16.msra.mxu0 %v5302
      %5565 = vmatpush.bf16.msra.mxu0 %v5298
      %5566 = vmatpush.bf16.msra.mxu0 %v5294
      %5567 = vmatpush.bf16.msra.mxu0 %v5290
      %5568 = vmatpush.bf16.msra.mxu0 %v5286
      %5569 = vmatmul.bf16.gmra.mxu0 %v3911
      %v5570 = vpop.f32.mrf.mxu0
      %v5571 = vadd.f32 %v5557, %v5570
      %v5572 = vpop.f32.mrf.mxu0
      %v5573 = vadd.f32 %v5559, %v5572
      %5574 = vdwg.mxu0
      %5575 = vmatpush.bf16.msra.mxu0 %v5346
      %5576 = vmatpush.bf16.msra.mxu0 %v5342
      %5577 = vmatpush.bf16.msra.mxu0 %v5338
      %5578 = vmatpush.bf16.msra.mxu0 %v5334
      %5579 = vmatpush.bf16.msra.mxu0 %v5330
      %5580 = vmatpush.bf16.msra.mxu0 %v5326
      %5581 = vmatpush.bf16.msra.mxu0 %v5322
      %5582 = vmatpush.bf16.msra.mxu0 %v5318
      %5583 = vmatmul.bf16.gmra.mxu0 %v3912
      %v5584 = vpop.f32.mrf.mxu0
      %v5585 = vadd.f32 %v5571, %v5584
      %v5586 = vpop.f32.mrf.mxu0
      %v5587 = vadd.f32 %v5573, %v5586
      %5588 = vdwg.mxu0
      %5589 = vmatpush.bf16.msra.mxu0 %v5251
      %5590 = vmatpush.bf16.msra.mxu0 %v5247
      %5591 = vmatpush.bf16.msra.mxu0 %v5243
      %5592 = vmatpush.bf16.msra.mxu0 %v5239
      %5593 = vmatpush.bf16.msra.mxu0 %v5235
      %5594 = vmatpush.bf16.msra.mxu0 %v5231
      %5595 = vmatpush.bf16.msra.mxu0 %v5227
      %5596 = vmatpush.bf16.msra.mxu0 %v5223
      %5597 = vmatmul.bf16.gmra.mxu0 %v3909
      %v5598 = vpop.f32.mrf.mxu0
      %v5599 = vadd.f32 %v4773, %v5598
      %v5600 = vpop.f32.mrf.mxu0
      %v5601 = vadd.f32 %v4775, %v5600
      %5602 = vdwg.mxu0
      %5603 = vmatpush.bf16.msra.mxu0 %v5283
      %5604 = vmatpush.bf16.msra.mxu0 %v5279
      %5605 = vmatpush.bf16.msra.mxu0 %v5275
      %5606 = vmatpush.bf16.msra.mxu0 %v5271
      %5607 = vmatpush.bf16.msra.mxu0 %v5267
      %5608 = vmatpush.bf16.msra.mxu0 %v5263
      %5609 = vmatpush.bf16.msra.mxu0 %v5259
      %5610 = vmatpush.bf16.msra.mxu0 %v5255
      %5611 = vmatmul.bf16.gmra.mxu0 %v3910
      %v5612 = vpop.f32.mrf.mxu0
      %v5613 = vadd.f32 %v5599, %v5612
      %v5614 = vpop.f32.mrf.mxu0
      %v5615 = vadd.f32 %v5601, %v5614
      %5616 = vdwg.mxu0
      %5617 = vmatpush.bf16.msra.mxu0 %v5315
      %5618 = vmatpush.bf16.msra.mxu0 %v5311
      %5619 = vmatpush.bf16.msra.mxu0 %v5307
      %5620 = vmatpush.bf16.msra.mxu0 %v5303
      %5621 = vmatpush.bf16.msra.mxu0 %v5299
      %5622 = vmatpush.bf16.msra.mxu0 %v5295
      %5623 = vmatpush.bf16.msra.mxu0 %v5291
      %5624 = vmatpush.bf16.msra.mxu0 %v5287
      %5625 = vmatmul.bf16.gmra.mxu0 %v3911
      %v5626 = vpop.f32.mrf.mxu0
      %v5627 = vadd.f32 %v5613, %v5626
      %v5628 = vpop.f32.mrf.mxu0
      %v5629 = vadd.f32 %v5615, %v5628
      %5630 = vdwg.mxu0
      %5631 = vmatpush.bf16.msra.mxu0 %v5347
      %5632 = vmatpush.bf16.msra.mxu0 %v5343
      %5633 = vmatpush.bf16.msra.mxu0 %v5339
      %5634 = vmatpush.bf16.msra.mxu0 %v5335
      %5635 = vmatpush.bf16.msra.mxu0 %v5331
      %5636 = vmatpush.bf16.msra.mxu0 %v5327
      %5637 = vmatpush.bf16.msra.mxu0 %v5323
      %5638 = vmatpush.bf16.msra.mxu0 %v5319
      %5639 = vmatmul.bf16.gmra.mxu0 %v3912
      %v5640 = vpop.f32.mrf.mxu0
      %v5641 = vadd.f32 %v5627, %v5640
      %v5642 = vpop.f32.mrf.mxu0
      %v5643 = vadd.f32 %v5629, %v5642
      %5644 = vdwg.mxu0
      %5645 = vmatpush.bf16.msra.mxu0 %v5252
      %5646 = vmatpush.bf16.msra.mxu0 %v5248
      %5647 = vmatpush.bf16.msra.mxu0 %v5244
      %5648 = vmatpush.bf16.msra.mxu0 %v5240
      %5649 = vmatpush.bf16.msra.mxu0 %v5236
      %5650 = vmatpush.bf16.msra.mxu0 %v5232
      %5651 = vmatpush.bf16.msra.mxu0 %v5228
      %5652 = vmatpush.bf16.msra.mxu0 %v5224
      %5653 = vmatmul.bf16.gmra.mxu0 %v3909
      %v5654 = vpop.f32.mrf.mxu0
      %v5655 = vadd.f32 %v4829, %v5654
      %v5656 = vpop.f32.mrf.mxu0
      %v5657 = vadd.f32 %v4831, %v5656
      %5658 = vdwg.mxu0
      %5659 = vmatpush.bf16.msra.mxu0 %v5284
      %5660 = vmatpush.bf16.msra.mxu0 %v5280
      %5661 = vmatpush.bf16.msra.mxu0 %v5276
      %5662 = vmatpush.bf16.msra.mxu0 %v5272
      %5663 = vmatpush.bf16.msra.mxu0 %v5268
      %5664 = vmatpush.bf16.msra.mxu0 %v5264
      %5665 = vmatpush.bf16.msra.mxu0 %v5260
      %5666 = vmatpush.bf16.msra.mxu0 %v5256
      %5667 = vmatmul.bf16.gmra.mxu0 %v3910
      %v5668 = vpop.f32.mrf.mxu0
      %v5669 = vadd.f32 %v5655, %v5668
      %v5670 = vpop.f32.mrf.mxu0
      %v5671 = vadd.f32 %v5657, %v5670
      %5672 = vdwg.mxu0
      %5673 = vmatpush.bf16.msra.mxu0 %v5316
      %5674 = vmatpush.bf16.msra.mxu0 %v5312
      %5675 = vmatpush.bf16.msra.mxu0 %v5308
      %5676 = vmatpush.bf16.msra.mxu0 %v5304
      %5677 = vmatpush.bf16.msra.mxu0 %v5300
      %5678 = vmatpush.bf16.msra.mxu0 %v5296
      %5679 = vmatpush.bf16.msra.mxu0 %v5292
      %5680 = vmatpush.bf16.msra.mxu0 %v5288
      %5681 = vmatmul.bf16.gmra.mxu0 %v3911
      %v5682 = vpop.f32.mrf.mxu0
      %v5683 = vadd.f32 %v5669, %v5682
      %v5684 = vpop.f32.mrf.mxu0
      %v5685 = vadd.f32 %v5671, %v5684
      %5686 = vdwg.mxu0
      %5687 = vmatpush.bf16.msra.mxu0 %v5348
      %5688 = vmatpush.bf16.msra.mxu0 %v5344
      %5689 = vmatpush.bf16.msra.mxu0 %v5340
      %5690 = vmatpush.bf16.msra.mxu0 %v5336
      %5691 = vmatpush.bf16.msra.mxu0 %v5332
      %5692 = vmatpush.bf16.msra.mxu0 %v5328
      %5693 = vmatpush.bf16.msra.mxu0 %v5324
      %5694 = vmatpush.bf16.msra.mxu0 %v5320
      %5695 = vmatmul.bf16.gmra.mxu0 %v3912
      %v5696 = vpop.f32.mrf.mxu0
      %v5697 = vadd.f32 %v5683, %v5696
      %v5698 = vpop.f32.mrf.mxu0
      %v5699 = vadd.f32 %v5685, %v5698
      %5700 = vdwg.mxu0
      %v5701 = vld [vmem:[#allocation2] sm:$0xee]
      %v5702 = vld [vmem:[#allocation2 + $0x8] sm:$0xee]
      %s5703 = scalar_lea.vmem %s2, 2048
      %v5704 = vld [vmem:[%s5703] sm:$0xff]
      %v5705 = vld [vmem:[%s5703 + $0x8] sm:$0xff]
      %v5706 = vld [vmem:[%s5703 + $0x10] sm:$0xff]
      %v5707 = vld [vmem:[%s5703 + $0x18] sm:$0xff]
      %v5708 = vld [vmem:[%s5703 + $0x20] sm:$0xff]
      %v5709 = vld [vmem:[%s5703 + $0x28] sm:$0xff]
      %v5710 = vld [vmem:[%s5703 + $0x30] sm:$0xff]
      %v5711 = vld [vmem:[%s5703 + $0x38] sm:$0xff]
      %v5712 = vld [vmem:[%s5703 + $0x40] sm:$0xff]
      %v5713 = vld [vmem:[%s5703 + $0x48] sm:$0xff]
      %v5714 = vld [vmem:[%s5703 + $0x50] sm:$0xff]
      %v5715 = vld [vmem:[%s5703 + $0x58] sm:$0xff]
      %v5716 = vld [vmem:[%s5703 + $0x60] sm:$0xff]
      %v5717 = vld [vmem:[%s5703 + $0x68] sm:$0xff]
      %v5718 = vld [vmem:[%s5703 + $0x70] sm:$0xff]
      %v5719 = vld [vmem:[%s5703 + $0x78] sm:$0xff]
      %v5720 = vld [vmem:[%s5703 + $0x80] sm:$0xff]
      %v5721 = vld [vmem:[%s5703 + $0x88] sm:$0xff]
      %v5722 = vld [vmem:[%s5703 + $0x90] sm:$0xff]
      %v5723 = vld [vmem:[%s5703 + $0x98] sm:$0xff]
      %v5724 = vld [vmem:[%s5703 + $0xa0] sm:$0xff]
      %v5725 = vld [vmem:[%s5703 + $0xa8] sm:$0xff]
      %v5726 = vld [vmem:[%s5703 + $0xb0] sm:$0xff]
      %v5727 = vld [vmem:[%s5703 + $0xb8] sm:$0xff]
      %v5728 = vld [vmem:[%s5703 + $0xc0] sm:$0xff]
      %v5729 = vld [vmem:[%s5703 + $0xc8] sm:$0xff]
      %v5730 = vld [vmem:[%s5703 + $0xd0] sm:$0xff]
      %v5731 = vld [vmem:[%s5703 + $0xd8] sm:$0xff]
      %v5732 = vld [vmem:[%s5703 + $0xe0] sm:$0xff]
      %v5733 = vld [vmem:[%s5703 + $0xe8] sm:$0xff]
      %v5734 = vld [vmem:[%s5703 + $0xf0] sm:$0xff]
      %v5735 = vld [vmem:[%s5703 + $0xf8] sm:$0xff]
      %v5736 = vld [vmem:[%s5703 + $0x100] sm:$0xff]
      %v5737 = vld [vmem:[%s5703 + $0x108] sm:$0xff]
      %v5738 = vld [vmem:[%s5703 + $0x110] sm:$0xff]
      %v5739 = vld [vmem:[%s5703 + $0x118] sm:$0xff]
      %v5740 = vld [vmem:[%s5703 + $0x120] sm:$0xff]
      %v5741 = vld [vmem:[%s5703 + $0x128] sm:$0xff]
      %v5742 = vld [vmem:[%s5703 + $0x130] sm:$0xff]
      %v5743 = vld [vmem:[%s5703 + $0x138] sm:$0xff]
      %v5744 = vld [vmem:[%s5703 + $0x140] sm:$0xff]
      %v5745 = vld [vmem:[%s5703 + $0x148] sm:$0xff]
      %v5746 = vld [vmem:[%s5703 + $0x150] sm:$0xff]
      %v5747 = vld [vmem:[%s5703 + $0x158] sm:$0xff]
      %v5748 = vld [vmem:[%s5703 + $0x160] sm:$0xff]
      %v5749 = vld [vmem:[%s5703 + $0x168] sm:$0xff]
      %v5750 = vld [vmem:[%s5703 + $0x170] sm:$0xff]
      %v5751 = vld [vmem:[%s5703 + $0x178] sm:$0xff]
      %v5752 = vld [vmem:[%s5703 + $0x180] sm:$0xff]
      %v5753 = vld [vmem:[%s5703 + $0x188] sm:$0xff]
      %v5754 = vld [vmem:[%s5703 + $0x190] sm:$0xff]
      %v5755 = vld [vmem:[%s5703 + $0x198] sm:$0xff]
      %v5756 = vld [vmem:[%s5703 + $0x1a0] sm:$0xff]
      %v5757 = vld [vmem:[%s5703 + $0x1a8] sm:$0xff]
      %v5758 = vld [vmem:[%s5703 + $0x1b0] sm:$0xff]
      %v5759 = vld [vmem:[%s5703 + $0x1b8] sm:$0xff]
      %v5760 = vld [vmem:[%s5703 + $0x1c0] sm:$0xff]
      %v5761 = vld [vmem:[%s5703 + $0x1c8] sm:$0xff]
      %v5762 = vld [vmem:[%s5703 + $0x1d0] sm:$0xff]
      %v5763 = vld [vmem:[%s5703 + $0x1d8] sm:$0xff]
      %v5764 = vld [vmem:[%s5703 + $0x1e0] sm:$0xff]
      %v5765 = vld [vmem:[%s5703 + $0x1e8] sm:$0xff]
      %v5766 = vld [vmem:[%s5703 + $0x1f0] sm:$0xff]
      %v5767 = vld [vmem:[%s5703 + $0x1f8] sm:$0xff]
      %v5768 = vld [vmem:[%s5703 + $0x200] sm:$0xff]
      %v5769 = vld [vmem:[%s5703 + $0x208] sm:$0xff]
      %v5770 = vld [vmem:[%s5703 + $0x210] sm:$0xff]
      %v5771 = vld [vmem:[%s5703 + $0x218] sm:$0xff]
      %v5772 = vld [vmem:[%s5703 + $0x220] sm:$0xff]
      %v5773 = vld [vmem:[%s5703 + $0x228] sm:$0xff]
      %v5774 = vld [vmem:[%s5703 + $0x230] sm:$0xff]
      %v5775 = vld [vmem:[%s5703 + $0x238] sm:$0xff]
      %v5776 = vld [vmem:[%s5703 + $0x240] sm:$0xff]
      %v5777 = vld [vmem:[%s5703 + $0x248] sm:$0xff]
      %v5778 = vld [vmem:[%s5703 + $0x250] sm:$0xff]
      %v5779 = vld [vmem:[%s5703 + $0x258] sm:$0xff]
      %v5780 = vld [vmem:[%s5703 + $0x260] sm:$0xff]
      %v5781 = vld [vmem:[%s5703 + $0x268] sm:$0xff]
      %v5782 = vld [vmem:[%s5703 + $0x270] sm:$0xff]
      %v5783 = vld [vmem:[%s5703 + $0x278] sm:$0xff]
      %v5784 = vld [vmem:[%s5703 + $0x280] sm:$0xff]
      %v5785 = vld [vmem:[%s5703 + $0x288] sm:$0xff]
      %v5786 = vld [vmem:[%s5703 + $0x290] sm:$0xff]
      %v5787 = vld [vmem:[%s5703 + $0x298] sm:$0xff]
      %v5788 = vld [vmem:[%s5703 + $0x2a0] sm:$0xff]
      %v5789 = vld [vmem:[%s5703 + $0x2a8] sm:$0xff]
      %v5790 = vld [vmem:[%s5703 + $0x2b0] sm:$0xff]
      %v5791 = vld [vmem:[%s5703 + $0x2b8] sm:$0xff]
      %v5792 = vld [vmem:[%s5703 + $0x2c0] sm:$0xff]
      %v5793 = vld [vmem:[%s5703 + $0x2c8] sm:$0xff]
      %v5794 = vld [vmem:[%s5703 + $0x2d0] sm:$0xff]
      %v5795 = vld [vmem:[%s5703 + $0x2d8] sm:$0xff]
      %v5796 = vld [vmem:[%s5703 + $0x2e0] sm:$0xff]
      %v5797 = vld [vmem:[%s5703 + $0x2e8] sm:$0xff]
      %v5798 = vld [vmem:[%s5703 + $0x2f0] sm:$0xff]
      %v5799 = vld [vmem:[%s5703 + $0x2f8] sm:$0xff]
      %v5800 = vld [vmem:[%s5703 + $0x300] sm:$0xff]
      %v5801 = vld [vmem:[%s5703 + $0x308] sm:$0xff]
      %v5802 = vld [vmem:[%s5703 + $0x310] sm:$0xff]
      %v5803 = vld [vmem:[%s5703 + $0x318] sm:$0xff]
      %v5804 = vld [vmem:[%s5703 + $0x320] sm:$0xff]
      %v5805 = vld [vmem:[%s5703 + $0x328] sm:$0xff]
      %v5806 = vld [vmem:[%s5703 + $0x330] sm:$0xff]
      %v5807 = vld [vmem:[%s5703 + $0x338] sm:$0xff]
      %v5808 = vld [vmem:[%s5703 + $0x340] sm:$0xff]
      %v5809 = vld [vmem:[%s5703 + $0x348] sm:$0xff]
      %v5810 = vld [vmem:[%s5703 + $0x350] sm:$0xff]
      %v5811 = vld [vmem:[%s5703 + $0x358] sm:$0xff]
      %v5812 = vld [vmem:[%s5703 + $0x360] sm:$0xff]
      %v5813 = vld [vmem:[%s5703 + $0x368] sm:$0xff]
      %v5814 = vld [vmem:[%s5703 + $0x370] sm:$0xff]
      %v5815 = vld [vmem:[%s5703 + $0x378] sm:$0xff]
      %v5816 = vld [vmem:[%s5703 + $0x380] sm:$0xff]
      %v5817 = vld [vmem:[%s5703 + $0x388] sm:$0xff]
      %v5818 = vld [vmem:[%s5703 + $0x390] sm:$0xff]
      %v5819 = vld [vmem:[%s5703 + $0x398] sm:$0xff]
      %v5820 = vld [vmem:[%s5703 + $0x3a0] sm:$0xff]
      %v5821 = vld [vmem:[%s5703 + $0x3a8] sm:$0xff]
      %v5822 = vld [vmem:[%s5703 + $0x3b0] sm:$0xff]
      %v5823 = vld [vmem:[%s5703 + $0x3b8] sm:$0xff]
      %v5824 = vld [vmem:[%s5703 + $0x3c0] sm:$0xff]
      %v5825 = vld [vmem:[%s5703 + $0x3c8] sm:$0xff]
      %v5826 = vld [vmem:[%s5703 + $0x3d0] sm:$0xff]
      %v5827 = vld [vmem:[%s5703 + $0x3d8] sm:$0xff]
      %v5828 = vld [vmem:[%s5703 + $0x3e0] sm:$0xff]
      %v5829 = vld [vmem:[%s5703 + $0x3e8] sm:$0xff]
      %v5830 = vld [vmem:[%s5703 + $0x3f0] sm:$0xff]
      %v5831 = vld [vmem:[%s5703 + $0x3f8] sm:$0xff]
      %v5834 = vunpack.c.l.b16 %v5701
      %v5835 = vunpack.c.h.b16 %v5701
      %v5836 = vunpack.c.l.b16 %v5702
      %v5837 = vunpack.c.h.b16 %v5702
      %v5838 = vpack.c.b16 %v3901, %v5834
      %v5839 = vpack.c.b16 %v3902, %v5835
      %v5840 = vpack.c.b16 %v3903, %v5836
      %v5841 = vpack.c.b16 %v3904, %v5837
      %v5842 = vrot.slane %v5838, 1
      %v5843 = vrot.slane %v3913, 1
      %v5844 = vsel %vm2610, %v5842, %v5843
      %v5845 = vrot.slane %v5839, 1
      %v5846 = vrot.slane %v3914, 1
      %v5847 = vsel %vm2610, %v5845, %v5846
      %v5848 = vrot.slane %v5840, 1
      %v5849 = vrot.slane %v3915, 1
      %v5850 = vsel %vm2610, %v5848, %v5849
      %v5851 = vrot.slane %v5841, 1
      %v5852 = vrot.slane %v3916, 1
      %v5853 = vsel %vm2610, %v5851, %v5852
      %v5986 = vunpack.c.l.b16 %v5704
      %v5987 = vunpack.c.h.b16 %v5704
      %v5988 = vunpack.c.l.b16 %v5705
      %v5989 = vunpack.c.h.b16 %v5705
      %v5990 = vunpack.c.l.b16 %v5706
      %v5991 = vunpack.c.h.b16 %v5706
      %v5992 = vunpack.c.l.b16 %v5707
      %v5993 = vunpack.c.h.b16 %v5707
      %v5994 = vunpack.c.l.b16 %v5708
      %v5995 = vunpack.c.h.b16 %v5708
      %v5996 = vunpack.c.l.b16 %v5709
      %v5997 = vunpack.c.h.b16 %v5709
      %v5998 = vunpack.c.l.b16 %v5710
      %v5999 = vunpack.c.h.b16 %v5710
      %v6000 = vunpack.c.l.b16 %v5711
      %v6001 = vunpack.c.h.b16 %v5711
      %v6002 = vunpack.c.l.b16 %v5712
      %v6003 = vunpack.c.h.b16 %v5712
      %v6004 = vunpack.c.l.b16 %v5713
      %v6005 = vunpack.c.h.b16 %v5713
      %v6006 = vunpack.c.l.b16 %v5714
      %v6007 = vunpack.c.h.b16 %v5714
      %v6008 = vunpack.c.l.b16 %v5715
      %v6009 = vunpack.c.h.b16 %v5715
      %v6010 = vunpack.c.l.b16 %v5716
      %v6011 = vunpack.c.h.b16 %v5716
      %v6012 = vunpack.c.l.b16 %v5717
      %v6013 = vunpack.c.h.b16 %v5717
      %v6014 = vunpack.c.l.b16 %v5718
      %v6015 = vunpack.c.h.b16 %v5718
      %v6016 = vunpack.c.l.b16 %v5719
      %v6017 = vunpack.c.h.b16 %v5719
      %v6018 = vunpack.c.l.b16 %v5720
      %v6019 = vunpack.c.h.b16 %v5720
      %v6020 = vunpack.c.l.b16 %v5721
      %v6021 = vunpack.c.h.b16 %v5721
      %v6022 = vunpack.c.l.b16 %v5722
      %v6023 = vunpack.c.h.b16 %v5722
      %v6024 = vunpack.c.l.b16 %v5723
      %v6025 = vunpack.c.h.b16 %v5723
      %v6026 = vunpack.c.l.b16 %v5724
      %v6027 = vunpack.c.h.b16 %v5724
      %v6028 = vunpack.c.l.b16 %v5725
      %v6029 = vunpack.c.h.b16 %v5725
      %v6030 = vunpack.c.l.b16 %v5726
      %v6031 = vunpack.c.h.b16 %v5726
      %v6032 = vunpack.c.l.b16 %v5727
      %v6033 = vunpack.c.h.b16 %v5727
      %v6034 = vunpack.c.l.b16 %v5728
      %v6035 = vunpack.c.h.b16 %v5728
      %v6036 = vunpack.c.l.b16 %v5729
      %v6037 = vunpack.c.h.b16 %v5729
      %v6038 = vunpack.c.l.b16 %v5730
      %v6039 = vunpack.c.h.b16 %v5730
      %v6040 = vunpack.c.l.b16 %v5731
      %v6041 = vunpack.c.h.b16 %v5731
      %v6042 = vunpack.c.l.b16 %v5732
      %v6043 = vunpack.c.h.b16 %v5732
      %v6044 = vunpack.c.l.b16 %v5733
      %v6045 = vunpack.c.h.b16 %v5733
      %v6046 = vunpack.c.l.b16 %v5734
      %v6047 = vunpack.c.h.b16 %v5734
      %v6048 = vunpack.c.l.b16 %v5735
      %v6049 = vunpack.c.h.b16 %v5735
      %v6050 = vunpack.c.l.b16 %v5736
      %v6051 = vunpack.c.h.b16 %v5736
      %v6052 = vunpack.c.l.b16 %v5737
      %v6053 = vunpack.c.h.b16 %v5737
      %v6054 = vunpack.c.l.b16 %v5738
      %v6055 = vunpack.c.h.b16 %v5738
      %v6056 = vunpack.c.l.b16 %v5739
      %v6057 = vunpack.c.h.b16 %v5739
      %v6058 = vunpack.c.l.b16 %v5740
      %v6059 = vunpack.c.h.b16 %v5740
      %v6060 = vunpack.c.l.b16 %v5741
      %v6061 = vunpack.c.h.b16 %v5741
      %v6062 = vunpack.c.l.b16 %v5742
      %v6063 = vunpack.c.h.b16 %v5742
      %v6064 = vunpack.c.l.b16 %v5743
      %v6065 = vunpack.c.h.b16 %v5743
      %v6066 = vunpack.c.l.b16 %v5744
      %v6067 = vunpack.c.h.b16 %v5744
      %v6068 = vunpack.c.l.b16 %v5745
      %v6069 = vunpack.c.h.b16 %v5745
      %v6070 = vunpack.c.l.b16 %v5746
      %v6071 = vunpack.c.h.b16 %v5746
      %v6072 = vunpack.c.l.b16 %v5747
      %v6073 = vunpack.c.h.b16 %v5747
      %v6074 = vunpack.c.l.b16 %v5748
      %v6075 = vunpack.c.h.b16 %v5748
      %v6076 = vunpack.c.l.b16 %v5749
      %v6077 = vunpack.c.h.b16 %v5749
      %v6078 = vunpack.c.l.b16 %v5750
      %v6079 = vunpack.c.h.b16 %v5750
      %v6080 = vunpack.c.l.b16 %v5751
      %v6081 = vunpack.c.h.b16 %v5751
      %v6082 = vunpack.c.l.b16 %v5752
      %v6083 = vunpack.c.h.b16 %v5752
      %v6084 = vunpack.c.l.b16 %v5753
      %v6085 = vunpack.c.h.b16 %v5753
      %v6086 = vunpack.c.l.b16 %v5754
      %v6087 = vunpack.c.h.b16 %v5754
      %v6088 = vunpack.c.l.b16 %v5755
      %v6089 = vunpack.c.h.b16 %v5755
      %v6090 = vunpack.c.l.b16 %v5756
      %v6091 = vunpack.c.h.b16 %v5756
      %v6092 = vunpack.c.l.b16 %v5757
      %v6093 = vunpack.c.h.b16 %v5757
      %v6094 = vunpack.c.l.b16 %v5758
      %v6095 = vunpack.c.h.b16 %v5758
      %v6096 = vunpack.c.l.b16 %v5759
      %v6097 = vunpack.c.h.b16 %v5759
      %v6098 = vunpack.c.l.b16 %v5760
      %v6099 = vunpack.c.h.b16 %v5760
      %v6100 = vunpack.c.l.b16 %v5761
      %v6101 = vunpack.c.h.b16 %v5761
      %v6102 = vunpack.c.l.b16 %v5762
      %v6103 = vunpack.c.h.b16 %v5762
      %v6104 = vunpack.c.l.b16 %v5763
      %v6105 = vunpack.c.h.b16 %v5763
      %v6106 = vunpack.c.l.b16 %v5764
      %v6107 = vunpack.c.h.b16 %v5764
      %v6108 = vunpack.c.l.b16 %v5765
      %v6109 = vunpack.c.h.b16 %v5765
      %v6110 = vunpack.c.l.b16 %v5766
      %v6111 = vunpack.c.h.b16 %v5766
      %v6112 = vunpack.c.l.b16 %v5767
      %v6113 = vunpack.c.h.b16 %v5767
      %v6114 = vunpack.c.l.b16 %v5768
      %v6115 = vunpack.c.h.b16 %v5768
      %v6116 = vunpack.c.l.b16 %v5769
      %v6117 = vunpack.c.h.b16 %v5769
      %v6118 = vunpack.c.l.b16 %v5770
      %v6119 = vunpack.c.h.b16 %v5770
      %v6120 = vunpack.c.l.b16 %v5771
      %v6121 = vunpack.c.h.b16 %v5771
      %v6122 = vunpack.c.l.b16 %v5772
      %v6123 = vunpack.c.h.b16 %v5772
      %v6124 = vunpack.c.l.b16 %v5773
      %v6125 = vunpack.c.h.b16 %v5773
      %v6126 = vunpack.c.l.b16 %v5774
      %v6127 = vunpack.c.h.b16 %v5774
      %v6128 = vunpack.c.l.b16 %v5775
      %v6129 = vunpack.c.h.b16 %v5775
      %v6130 = vunpack.c.l.b16 %v5776
      %v6131 = vunpack.c.h.b16 %v5776
      %v6132 = vunpack.c.l.b16 %v5777
      %v6133 = vunpack.c.h.b16 %v5777
      %v6134 = vunpack.c.l.b16 %v5778
      %v6135 = vunpack.c.h.b16 %v5778
      %v6136 = vunpack.c.l.b16 %v5779
      %v6137 = vunpack.c.h.b16 %v5779
      %v6138 = vunpack.c.l.b16 %v5780
      %v6139 = vunpack.c.h.b16 %v5780
      %v6140 = vunpack.c.l.b16 %v5781
      %v6141 = vunpack.c.h.b16 %v5781
      %v6142 = vunpack.c.l.b16 %v5782
      %v6143 = vunpack.c.h.b16 %v5782
      %v6144 = vunpack.c.l.b16 %v5783
      %v6145 = vunpack.c.h.b16 %v5783
      %v6146 = vunpack.c.l.b16 %v5784
      %v6147 = vunpack.c.h.b16 %v5784
      %v6148 = vunpack.c.l.b16 %v5785
      %v6149 = vunpack.c.h.b16 %v5785
      %v6150 = vunpack.c.l.b16 %v5786
      %v6151 = vunpack.c.h.b16 %v5786
      %v6152 = vunpack.c.l.b16 %v5787
      %v6153 = vunpack.c.h.b16 %v5787
      %v6154 = vunpack.c.l.b16 %v5788
      %v6155 = vunpack.c.h.b16 %v5788
      %v6156 = vunpack.c.l.b16 %v5789
      %v6157 = vunpack.c.h.b16 %v5789
      %v6158 = vunpack.c.l.b16 %v5790
      %v6159 = vunpack.c.h.b16 %v5790
      %v6160 = vunpack.c.l.b16 %v5791
      %v6161 = vunpack.c.h.b16 %v5791
      %v6162 = vunpack.c.l.b16 %v5792
      %v6163 = vunpack.c.h.b16 %v5792
      %v6164 = vunpack.c.l.b16 %v5793
      %v6165 = vunpack.c.h.b16 %v5793
      %v6166 = vunpack.c.l.b16 %v5794
      %v6167 = vunpack.c.h.b16 %v5794
      %v6168 = vunpack.c.l.b16 %v5795
      %v6169 = vunpack.c.h.b16 %v5795
      %v6170 = vunpack.c.l.b16 %v5796
      %v6171 = vunpack.c.h.b16 %v5796
      %v6172 = vunpack.c.l.b16 %v5797
      %v6173 = vunpack.c.h.b16 %v5797
      %v6174 = vunpack.c.l.b16 %v5798
      %v6175 = vunpack.c.h.b16 %v5798
      %v6176 = vunpack.c.l.b16 %v5799
      %v6177 = vunpack.c.h.b16 %v5799
      %v6178 = vunpack.c.l.b16 %v5800
      %v6179 = vunpack.c.h.b16 %v5800
      %v6180 = vunpack.c.l.b16 %v5801
      %v6181 = vunpack.c.h.b16 %v5801
      %v6182 = vunpack.c.l.b16 %v5802
      %v6183 = vunpack.c.h.b16 %v5802
      %v6184 = vunpack.c.l.b16 %v5803
      %v6185 = vunpack.c.h.b16 %v5803
      %v6186 = vunpack.c.l.b16 %v5804
      %v6187 = vunpack.c.h.b16 %v5804
      %v6188 = vunpack.c.l.b16 %v5805
      %v6189 = vunpack.c.h.b16 %v5805
      %v6190 = vunpack.c.l.b16 %v5806
      %v6191 = vunpack.c.h.b16 %v5806
      %v6192 = vunpack.c.l.b16 %v5807
      %v6193 = vunpack.c.h.b16 %v5807
      %v6194 = vunpack.c.l.b16 %v5808
      %v6195 = vunpack.c.h.b16 %v5808
      %v6196 = vunpack.c.l.b16 %v5809
      %v6197 = vunpack.c.h.b16 %v5809
      %v6198 = vunpack.c.l.b16 %v5810
      %v6199 = vunpack.c.h.b16 %v5810
      %v6200 = vunpack.c.l.b16 %v5811
      %v6201 = vunpack.c.h.b16 %v5811
      %v6202 = vunpack.c.l.b16 %v5812
      %v6203 = vunpack.c.h.b16 %v5812
      %v6204 = vunpack.c.l.b16 %v5813
      %v6205 = vunpack.c.h.b16 %v5813
      %v6206 = vunpack.c.l.b16 %v5814
      %v6207 = vunpack.c.h.b16 %v5814
      %v6208 = vunpack.c.l.b16 %v5815
      %v6209 = vunpack.c.h.b16 %v5815
      %v6210 = vunpack.c.l.b16 %v5816
      %v6211 = vunpack.c.h.b16 %v5816
      %v6212 = vunpack.c.l.b16 %v5817
      %v6213 = vunpack.c.h.b16 %v5817
      %v6214 = vunpack.c.l.b16 %v5818
      %v6215 = vunpack.c.h.b16 %v5818
      %v6216 = vunpack.c.l.b16 %v5819
      %v6217 = vunpack.c.h.b16 %v5819
      %v6218 = vunpack.c.l.b16 %v5820
      %v6219 = vunpack.c.h.b16 %v5820
      %v6220 = vunpack.c.l.b16 %v5821
      %v6221 = vunpack.c.h.b16 %v5821
      %v6222 = vunpack.c.l.b16 %v5822
      %v6223 = vunpack.c.h.b16 %v5822
      %v6224 = vunpack.c.l.b16 %v5823
      %v6225 = vunpack.c.h.b16 %v5823
      %v6226 = vunpack.c.l.b16 %v5824
      %v6227 = vunpack.c.h.b16 %v5824
      %v6228 = vunpack.c.l.b16 %v5825
      %v6229 = vunpack.c.h.b16 %v5825
      %v6230 = vunpack.c.l.b16 %v5826
      %v6231 = vunpack.c.h.b16 %v5826
      %v6232 = vunpack.c.l.b16 %v5827
      %v6233 = vunpack.c.h.b16 %v5827
      %v6234 = vunpack.c.l.b16 %v5828
      %v6235 = vunpack.c.h.b16 %v5828
      %v6236 = vunpack.c.l.b16 %v5829
      %v6237 = vunpack.c.h.b16 %v5829
      %v6238 = vunpack.c.l.b16 %v5830
      %v6239 = vunpack.c.h.b16 %v5830
      %v6240 = vunpack.c.l.b16 %v5831
      %v6241 = vunpack.c.h.b16 %v5831
      %v6242 = vpack.c.b16 %v5990, %v5986
      %v6243 = vpack.c.b16 %v5991, %v5987
      %v6244 = vpack.c.b16 %v5992, %v5988
      %v6245 = vpack.c.b16 %v5993, %v5989
      %v6246 = vpack.c.b16 %v5998, %v5994
      %v6247 = vpack.c.b16 %v5999, %v5995
      %v6248 = vpack.c.b16 %v6000, %v5996
      %v6249 = vpack.c.b16 %v6001, %v5997
      %v6250 = vpack.c.b16 %v6006, %v6002
      %v6251 = vpack.c.b16 %v6007, %v6003
      %v6252 = vpack.c.b16 %v6008, %v6004
      %v6253 = vpack.c.b16 %v6009, %v6005
      %v6254 = vpack.c.b16 %v6014, %v6010
      %v6255 = vpack.c.b16 %v6015, %v6011
      %v6256 = vpack.c.b16 %v6016, %v6012
      %v6257 = vpack.c.b16 %v6017, %v6013
      %v6258 = vpack.c.b16 %v6022, %v6018
      %v6259 = vpack.c.b16 %v6023, %v6019
      %v6260 = vpack.c.b16 %v6024, %v6020
      %v6261 = vpack.c.b16 %v6025, %v6021
      %v6262 = vpack.c.b16 %v6030, %v6026
      %v6263 = vpack.c.b16 %v6031, %v6027
      %v6264 = vpack.c.b16 %v6032, %v6028
      %v6265 = vpack.c.b16 %v6033, %v6029
      %v6266 = vpack.c.b16 %v6038, %v6034
      %v6267 = vpack.c.b16 %v6039, %v6035
      %v6268 = vpack.c.b16 %v6040, %v6036
      %v6269 = vpack.c.b16 %v6041, %v6037
      %v6270 = vpack.c.b16 %v6046, %v6042
      %v6271 = vpack.c.b16 %v6047, %v6043
      %v6272 = vpack.c.b16 %v6048, %v6044
      %v6273 = vpack.c.b16 %v6049, %v6045
      %v6274 = vpack.c.b16 %v6054, %v6050
      %v6275 = vpack.c.b16 %v6055, %v6051
      %v6276 = vpack.c.b16 %v6056, %v6052
      %v6277 = vpack.c.b16 %v6057, %v6053
      %v6278 = vpack.c.b16 %v6062, %v6058
      %v6279 = vpack.c.b16 %v6063, %v6059
      %v6280 = vpack.c.b16 %v6064, %v6060
      %v6281 = vpack.c.b16 %v6065, %v6061
      %v6282 = vpack.c.b16 %v6070, %v6066
      %v6283 = vpack.c.b16 %v6071, %v6067
      %v6284 = vpack.c.b16 %v6072, %v6068
      %v6285 = vpack.c.b16 %v6073, %v6069
      %v6286 = vpack.c.b16 %v6078, %v6074
      %v6287 = vpack.c.b16 %v6079, %v6075
      %v6288 = vpack.c.b16 %v6080, %v6076
      %v6289 = vpack.c.b16 %v6081, %v6077
      %v6290 = vpack.c.b16 %v6086, %v6082
      %v6291 = vpack.c.b16 %v6087, %v6083
      %v6292 = vpack.c.b16 %v6088, %v6084
      %v6293 = vpack.c.b16 %v6089, %v6085
      %v6294 = vpack.c.b16 %v6094, %v6090
      %v6295 = vpack.c.b16 %v6095, %v6091
      %v6296 = vpack.c.b16 %v6096, %v6092
      %v6297 = vpack.c.b16 %v6097, %v6093
      %v6298 = vpack.c.b16 %v6102, %v6098
      %v6299 = vpack.c.b16 %v6103, %v6099
      %v6300 = vpack.c.b16 %v6104, %v6100
      %v6301 = vpack.c.b16 %v6105, %v6101
      %v6302 = vpack.c.b16 %v6110, %v6106
      %v6303 = vpack.c.b16 %v6111, %v6107
      %v6304 = vpack.c.b16 %v6112, %v6108
      %v6305 = vpack.c.b16 %v6113, %v6109
      %v6306 = vpack.c.b16 %v6118, %v6114
      %v6307 = vpack.c.b16 %v6119, %v6115
      %v6308 = vpack.c.b16 %v6120, %v6116
      %v6309 = vpack.c.b16 %v6121, %v6117
      %v6310 = vpack.c.b16 %v6126, %v6122
      %v6311 = vpack.c.b16 %v6127, %v6123
      %v6312 = vpack.c.b16 %v6128, %v6124
      %v6313 = vpack.c.b16 %v6129, %v6125
      %v6314 = vpack.c.b16 %v6134, %v6130
      %v6315 = vpack.c.b16 %v6135, %v6131
      %v6316 = vpack.c.b16 %v6136, %v6132
      %v6317 = vpack.c.b16 %v6137, %v6133
      %v6318 = vpack.c.b16 %v6142, %v6138
      %v6319 = vpack.c.b16 %v6143, %v6139
      %v6320 = vpack.c.b16 %v6144, %v6140
      %v6321 = vpack.c.b16 %v6145, %v6141
      %v6322 = vpack.c.b16 %v6150, %v6146
      %v6323 = vpack.c.b16 %v6151, %v6147
      %v6324 = vpack.c.b16 %v6152, %v6148
      %v6325 = vpack.c.b16 %v6153, %v6149
      %v6326 = vpack.c.b16 %v6158, %v6154
      %v6327 = vpack.c.b16 %v6159, %v6155
      %v6328 = vpack.c.b16 %v6160, %v6156
      %v6329 = vpack.c.b16 %v6161, %v6157
      %v6330 = vpack.c.b16 %v6166, %v6162
      %v6331 = vpack.c.b16 %v6167, %v6163
      %v6332 = vpack.c.b16 %v6168, %v6164
      %v6333 = vpack.c.b16 %v6169, %v6165
      %v6334 = vpack.c.b16 %v6174, %v6170
      %v6335 = vpack.c.b16 %v6175, %v6171
      %v6336 = vpack.c.b16 %v6176, %v6172
      %v6337 = vpack.c.b16 %v6177, %v6173
      %v6338 = vpack.c.b16 %v6182, %v6178
      %v6339 = vpack.c.b16 %v6183, %v6179
      %v6340 = vpack.c.b16 %v6184, %v6180
      %v6341 = vpack.c.b16 %v6185, %v6181
      %v6342 = vpack.c.b16 %v6190, %v6186
      %v6343 = vpack.c.b16 %v6191, %v6187
      %v6344 = vpack.c.b16 %v6192, %v6188
      %v6345 = vpack.c.b16 %v6193, %v6189
      %v6346 = vpack.c.b16 %v6198, %v6194
      %v6347 = vpack.c.b16 %v6199, %v6195
      %v6348 = vpack.c.b16 %v6200, %v6196
      %v6349 = vpack.c.b16 %v6201, %v6197
      %v6350 = vpack.c.b16 %v6206, %v6202
      %v6351 = vpack.c.b16 %v6207, %v6203
      %v6352 = vpack.c.b16 %v6208, %v6204
      %v6353 = vpack.c.b16 %v6209, %v6205
      %v6354 = vpack.c.b16 %v6214, %v6210
      %v6355 = vpack.c.b16 %v6215, %v6211
      %v6356 = vpack.c.b16 %v6216, %v6212
      %v6357 = vpack.c.b16 %v6217, %v6213
      %v6358 = vpack.c.b16 %v6222, %v6218
      %v6359 = vpack.c.b16 %v6223, %v6219
      %v6360 = vpack.c.b16 %v6224, %v6220
      %v6361 = vpack.c.b16 %v6225, %v6221
      %v6362 = vpack.c.b16 %v6230, %v6226
      %v6363 = vpack.c.b16 %v6231, %v6227
      %v6364 = vpack.c.b16 %v6232, %v6228
      %v6365 = vpack.c.b16 %v6233, %v6229
      %v6366 = vpack.c.b16 %v6238, %v6234
      %v6367 = vpack.c.b16 %v6239, %v6235
      %v6368 = vpack.c.b16 %v6240, %v6236
      %v6369 = vpack.c.b16 %v6241, %v6237
      %6498 = vmatpush.bf16.msra.mxu0 %v6270
      %6499 = vmatpush.bf16.msra.mxu0 %v6266
      %6500 = vmatpush.bf16.msra.mxu0 %v6262
      %6501 = vmatpush.bf16.msra.mxu0 %v6258
      %6502 = vmatpush.bf16.msra.mxu0 %v6254
      %6503 = vmatpush.bf16.msra.mxu0 %v6250
      %6504 = vmatpush.bf16.msra.mxu0 %v6246
      %6505 = vmatpush.bf16.msra.mxu0 %v6242
      %6506 = vmatmul.bf16.gmra.mxu0 %v5844
      %v6507 = vpop.f32.mrf.mxu0
      %v6508 = vadd.f32 0.0, %v6507
      %v6509 = vpop.f32.mrf.mxu0
      %v6510 = vadd.f32 0.0, %v6509
      %6511 = vdwg.mxu0
      %6512 = vmatpush.bf16.msra.mxu0 %v6302
      %6513 = vmatpush.bf16.msra.mxu0 %v6298
      %6514 = vmatpush.bf16.msra.mxu0 %v6294
      %6515 = vmatpush.bf16.msra.mxu0 %v6290
      %6516 = vmatpush.bf16.msra.mxu0 %v6286
      %6517 = vmatpush.bf16.msra.mxu0 %v6282
      %6518 = vmatpush.bf16.msra.mxu0 %v6278
      %6519 = vmatpush.bf16.msra.mxu0 %v6274
      %6520 = vmatmul.bf16.gmra.mxu0 %v5847
      %v6521 = vpop.f32.mrf.mxu0
      %v6522 = vadd.f32 %v6508, %v6521
      %v6523 = vpop.f32.mrf.mxu0
      %v6524 = vadd.f32 %v6510, %v6523
      %6525 = vdwg.mxu0
      %6526 = vmatpush.bf16.msra.mxu0 %v6334
      %6527 = vmatpush.bf16.msra.mxu0 %v6330
      %6528 = vmatpush.bf16.msra.mxu0 %v6326
      %6529 = vmatpush.bf16.msra.mxu0 %v6322
      %6530 = vmatpush.bf16.msra.mxu0 %v6318
      %6531 = vmatpush.bf16.msra.mxu0 %v6314
      %6532 = vmatpush.bf16.msra.mxu0 %v6310
      %6533 = vmatpush.bf16.msra.mxu0 %v6306
      %6534 = vmatmul.bf16.gmra.mxu0 %v5850
      %v6535 = vpop.f32.mrf.mxu0
      %v6536 = vadd.f32 %v6522, %v6535
      %v6537 = vpop.f32.mrf.mxu0
      %v6538 = vadd.f32 %v6524, %v6537
      %6539 = vdwg.mxu0
      %6540 = vmatpush.bf16.msra.mxu0 %v6366
      %6541 = vmatpush.bf16.msra.mxu0 %v6362
      %6542 = vmatpush.bf16.msra.mxu0 %v6358
      %6543 = vmatpush.bf16.msra.mxu0 %v6354
      %6544 = vmatpush.bf16.msra.mxu0 %v6350
      %6545 = vmatpush.bf16.msra.mxu0 %v6346
      %6546 = vmatpush.bf16.msra.mxu0 %v6342
      %6547 = vmatpush.bf16.msra.mxu0 %v6338
      %6548 = vmatmul.bf16.gmra.mxu0 %v5853
      %v6549 = vpop.f32.mrf.mxu0
      %v6550 = vadd.f32 %v6536, %v6549
      %v6551 = vpop.f32.mrf.mxu0
      %v6552 = vadd.f32 %v6538, %v6551
      %6553 = vdwg.mxu0
      %6554 = vmatpush.bf16.msra.mxu0 %v6271
      %6555 = vmatpush.bf16.msra.mxu0 %v6267
      %6556 = vmatpush.bf16.msra.mxu0 %v6263
      %6557 = vmatpush.bf16.msra.mxu0 %v6259
      %6558 = vmatpush.bf16.msra.mxu0 %v6255
      %6559 = vmatpush.bf16.msra.mxu0 %v6251
      %6560 = vmatpush.bf16.msra.mxu0 %v6247
      %6561 = vmatpush.bf16.msra.mxu0 %v6243
      %6562 = vmatmul.bf16.gmra.mxu0 %v5844
      %v6563 = vpop.f32.mrf.mxu0
      %v6564 = vadd.f32 0.0, %v6563
      %v6565 = vpop.f32.mrf.mxu0
      %v6566 = vadd.f32 0.0, %v6565
      %6567 = vdwg.mxu0
      %6568 = vmatpush.bf16.msra.mxu0 %v6303
      %6569 = vmatpush.bf16.msra.mxu0 %v6299
      %6570 = vmatpush.bf16.msra.mxu0 %v6295
      %6571 = vmatpush.bf16.msra.mxu0 %v6291
      %6572 = vmatpush.bf16.msra.mxu0 %v6287
      %6573 = vmatpush.bf16.msra.mxu0 %v6283
      %6574 = vmatpush.bf16.msra.mxu0 %v6279
      %6575 = vmatpush.bf16.msra.mxu0 %v6275
      %6576 = vmatmul.bf16.gmra.mxu0 %v5847
      %v6577 = vpop.f32.mrf.mxu0
      %v6578 = vadd.f32 %v6564, %v6577
      %v6579 = vpop.f32.mrf.mxu0
      %v6580 = vadd.f32 %v6566, %v6579
      %6581 = vdwg.mxu0
      %6582 = vmatpush.bf16.msra.mxu0 %v6335
      %6583 = vmatpush.bf16.msra.mxu0 %v6331
      %6584 = vmatpush.bf16.msra.mxu0 %v6327
      %6585 = vmatpush.bf16.msra.mxu0 %v6323
      %6586 = vmatpush.bf16.msra.mxu0 %v6319
      %6587 = vmatpush.bf16.msra.mxu0 %v6315
      %6588 = vmatpush.bf16.msra.mxu0 %v6311
      %6589 = vmatpush.bf16.msra.mxu0 %v6307
      %6590 = vmatmul.bf16.gmra.mxu0 %v5850
      %v6591 = vpop.f32.mrf.mxu0
      %v6592 = vadd.f32 %v6578, %v6591
      %v6593 = vpop.f32.mrf.mxu0
      %v6594 = vadd.f32 %v6580, %v6593
      %6595 = vdwg.mxu0
      %6596 = vmatpush.bf16.msra.mxu0 %v6367
      %6597 = vmatpush.bf16.msra.mxu0 %v6363
      %6598 = vmatpush.bf16.msra.mxu0 %v6359
      %6599 = vmatpush.bf16.msra.mxu0 %v6355
      %6600 = vmatpush.bf16.msra.mxu0 %v6351
      %6601 = vmatpush.bf16.msra.mxu0 %v6347
      %6602 = vmatpush.bf16.msra.mxu0 %v6343
      %6603 = vmatpush.bf16.msra.mxu0 %v6339
      %6604 = vmatmul.bf16.gmra.mxu0 %v5853
      %v6605 = vpop.f32.mrf.mxu0
      %v6606 = vadd.f32 %v6592, %v6605
      %v6607 = vpop.f32.mrf.mxu0
      %v6608 = vadd.f32 %v6594, %v6607
      %6609 = vdwg.mxu0
      %6610 = vmatpush.bf16.msra.mxu0 %v6272
      %6611 = vmatpush.bf16.msra.mxu0 %v6268
      %6612 = vmatpush.bf16.msra.mxu0 %v6264
      %6613 = vmatpush.bf16.msra.mxu0 %v6260
      %6614 = vmatpush.bf16.msra.mxu0 %v6256
      %6615 = vmatpush.bf16.msra.mxu0 %v6252
      %6616 = vmatpush.bf16.msra.mxu0 %v6248
      %6617 = vmatpush.bf16.msra.mxu0 %v6244
      %6618 = vmatmul.bf16.gmra.mxu0 %v5844
      %v6619 = vpop.f32.mrf.mxu0
      %v6620 = vadd.f32 0.0, %v6619
      %v6621 = vpop.f32.mrf.mxu0
      %v6622 = vadd.f32 0.0, %v6621
      %6623 = vdwg.mxu0
      %6624 = vmatpush.bf16.msra.mxu0 %v6304
      %6625 = vmatpush.bf16.msra.mxu0 %v6300
      %6626 = vmatpush.bf16.msra.mxu0 %v6296
      %6627 = vmatpush.bf16.msra.mxu0 %v6292
      %6628 = vmatpush.bf16.msra.mxu0 %v6288
      %6629 = vmatpush.bf16.msra.mxu0 %v6284
      %6630 = vmatpush.bf16.msra.mxu0 %v6280
      %6631 = vmatpush.bf16.msra.mxu0 %v6276
      %6632 = vmatmul.bf16.gmra.mxu0 %v5847
      %v6633 = vpop.f32.mrf.mxu0
      %v6634 = vadd.f32 %v6620, %v6633
      %v6635 = vpop.f32.mrf.mxu0
      %v6636 = vadd.f32 %v6622, %v6635
      %6637 = vdwg.mxu0
      %6638 = vmatpush.bf16.msra.mxu0 %v6336
      %6639 = vmatpush.bf16.msra.mxu0 %v6332
      %6640 = vmatpush.bf16.msra.mxu0 %v6328
      %6641 = vmatpush.bf16.msra.mxu0 %v6324
      %6642 = vmatpush.bf16.msra.mxu0 %v6320
      %6643 = vmatpush.bf16.msra.mxu0 %v6316
      %6644 = vmatpush.bf16.msra.mxu0 %v6312
      %6645 = vmatpush.bf16.msra.mxu0 %v6308
      %6646 = vmatmul.bf16.gmra.mxu0 %v5850
      %v6647 = vpop.f32.mrf.mxu0
      %v6648 = vadd.f32 %v6634, %v6647
      %v6649 = vpop.f32.mrf.mxu0
      %v6650 = vadd.f32 %v6636, %v6649
      %6651 = vdwg.mxu0
      %6652 = vmatpush.bf16.msra.mxu0 %v6368
      %6653 = vmatpush.bf16.msra.mxu0 %v6364
      %6654 = vmatpush.bf16.msra.mxu0 %v6360
      %6655 = vmatpush.bf16.msra.mxu0 %v6356
      %6656 = vmatpush.bf16.msra.mxu0 %v6352
      %6657 = vmatpush.bf16.msra.mxu0 %v6348
      %6658 = vmatpush.bf16.msra.mxu0 %v6344
      %6659 = vmatpush.bf16.msra.mxu0 %v6340
      %6660 = vmatmul.bf16.gmra.mxu0 %v5853
      %v6661 = vpop.f32.mrf.mxu0
      %v6662 = vadd.f32 %v6648, %v6661
      %v6663 = vpop.f32.mrf.mxu0
      %v6664 = vadd.f32 %v6650, %v6663
      %6665 = vdwg.mxu0
      %6666 = vmatpush.bf16.msra.mxu0 %v6273
      %6667 = vmatpush.bf16.msra.mxu0 %v6269
      %6668 = vmatpush.bf16.msra.mxu0 %v6265
      %6669 = vmatpush.bf16.msra.mxu0 %v6261
      %6670 = vmatpush.bf16.msra.mxu0 %v6257
      %6671 = vmatpush.bf16.msra.mxu0 %v6253
      %6672 = vmatpush.bf16.msra.mxu0 %v6249
      %6673 = vmatpush.bf16.msra.mxu0 %v6245
      %6674 = vmatmul.bf16.gmra.mxu0 %v5844
      %v6675 = vpop.f32.mrf.mxu0
      %v6676 = vadd.f32 0.0, %v6675
      %v6677 = vpop.f32.mrf.mxu0
      %v6678 = vadd.f32 0.0, %v6677
      %6679 = vdwg.mxu0
      %6680 = vmatpush.bf16.msra.mxu0 %v6305
      %6681 = vmatpush.bf16.msra.mxu0 %v6301
      %6682 = vmatpush.bf16.msra.mxu0 %v6297
      %6683 = vmatpush.bf16.msra.mxu0 %v6293
      %6684 = vmatpush.bf16.msra.mxu0 %v6289
      %6685 = vmatpush.bf16.msra.mxu0 %v6285
      %6686 = vmatpush.bf16.msra.mxu0 %v6281
      %6687 = vmatpush.bf16.msra.mxu0 %v6277
      %6688 = vmatmul.bf16.gmra.mxu0 %v5847
      %v6689 = vpop.f32.mrf.mxu0
      %v6690 = vadd.f32 %v6676, %v6689
      %v6691 = vpop.f32.mrf.mxu0
      %v6692 = vadd.f32 %v6678, %v6691
      %6693 = vdwg.mxu0
      %6694 = vmatpush.bf16.msra.mxu0 %v6337
      %6695 = vmatpush.bf16.msra.mxu0 %v6333
      %6696 = vmatpush.bf16.msra.mxu0 %v6329
      %6697 = vmatpush.bf16.msra.mxu0 %v6325
      %6698 = vmatpush.bf16.msra.mxu0 %v6321
      %6699 = vmatpush.bf16.msra.mxu0 %v6317
      %6700 = vmatpush.bf16.msra.mxu0 %v6313
      %6701 = vmatpush.bf16.msra.mxu0 %v6309
      %6702 = vmatmul.bf16.gmra.mxu0 %v5850
      %v6703 = vpop.f32.mrf.mxu0
      %v6704 = vadd.f32 %v6690, %v6703
      %v6705 = vpop.f32.mrf.mxu0
      %v6706 = vadd.f32 %v6692, %v6705
      %6707 = vdwg.mxu0
      %6708 = vmatpush.bf16.msra.mxu0 %v6369
      %6709 = vmatpush.bf16.msra.mxu0 %v6365
      %6710 = vmatpush.bf16.msra.mxu0 %v6361
      %6711 = vmatpush.bf16.msra.mxu0 %v6357
      %6712 = vmatpush.bf16.msra.mxu0 %v6353
      %6713 = vmatpush.bf16.msra.mxu0 %v6349
      %6714 = vmatpush.bf16.msra.mxu0 %v6345
      %6715 = vmatpush.bf16.msra.mxu0 %v6341
      %6716 = vmatmul.bf16.gmra.mxu0 %v5853
      %v6717 = vpop.f32.mrf.mxu0
      %v6718 = vadd.f32 %v6704, %v6717
      %v6719 = vpop.f32.mrf.mxu0
      %v6720 = vadd.f32 %v6706, %v6719
      %6721 = vdwg.mxu0
      %v6722 = vadd.f32 %v5529, %v6550
      %v6723 = vadd.f32 %v5585, %v6606
      %v6724 = vadd.f32 %v5641, %v6662
      %v6725 = vadd.f32 %v5697, %v6718
      %v6726 = vadd.f32 %v5531, %v6552
      %v6727 = vadd.f32 %v5587, %v6608
      %v6728 = vadd.f32 %v5643, %v6664
      %v6729 = vadd.f32 %v5699, %v6720
      %v6730 = vld [vmem:[%s219] sm:$0xff]
      %v6731 = vld [vmem:[%s219 + $0x8] sm:$0xff]
      %v6732 = vld [vmem:[%s219 + $0x10] sm:$0xff]
      %v6733 = vld [vmem:[%s219 + $0x18] sm:$0xff]
      %v6734 = vld [vmem:[%s219 + $0x20] sm:$0xff]
      %v6735 = vld [vmem:[%s219 + $0x28] sm:$0xff]
      %v6736 = vld [vmem:[%s219 + $0x30] sm:$0xff]
      %v6737 = vld [vmem:[%s219 + $0x38] sm:$0xff]
      %v6738 = vadd.f32 %v6730, %v6722
      %v6739 = vadd.f32 %v6731, %v6723
      %v6740 = vadd.f32 %v6732, %v6724
      %v6741 = vadd.f32 %v6733, %v6725
      %v6742 = vadd.f32 %v6734, %v6726
      %v6743 = vadd.f32 %v6735, %v6727
      %v6744 = vadd.f32 %v6736, %v6728
      %v6745 = vadd.f32 %v6737, %v6729
      %6746 = vst [vmem:[%s224] sm:$0xff] %v6738
      %6747 = vst [vmem:[%s224 + $0x8] sm:$0xff] %v6739
      %6748 = vst [vmem:[%s224 + $0x10] sm:$0xff] %v6740
      %6749 = vst [vmem:[%s224 + $0x18] sm:$0xff] %v6741
      %6750 = vst [vmem:[%s224 + $0x20] sm:$0xff] %v6742
      %6751 = vst [vmem:[%s224 + $0x28] sm:$0xff] %v6743
      %6752 = vst [vmem:[%s224 + $0x30] sm:$0xff] %v6744
      %6753 = vst [vmem:[%s224 + $0x38] sm:$0xff] %v6745
      %p6754 = scmp.lt.s32.totalorder %s16, 1
      %s6755 = scalar_select %p6754, %s16, 1
      %s6756 = smul.addr %s6755, 8
      %s6757 = smul.addr %s6756, 8
      %s6758 = scalar_lea.vmem %s5, %s6757
      // Predicated region
      $region41: #{dualres_forward.1} parent=39 // pred_check
        %p6759 = pneg %p144
      $region42: #{dualres_forward.1} parent=39 // pred_check_branch
        %6761 = sbr.rel (%p6759) target = $region44
      $region43: #{dualres_forward.1} parent=39 // pred_region
        _
      $region44: #{dualres_forward.1} parent=39 // pred_fallthru
        _
    $region40: #{dualres_forward.1} parent=5 // pred_fallthru
      _
    %p6762 = scmp.le.s32.totalorder 2, %s11
    // Predicated region
    $region45: #{dualres_forward.1} parent=5 // pred_check
      %p6763 = pneg %p6762
    $region46: #{dualres_forward.1} parent=5 // pred_check_branch
      %6765 = sbr.rel (%p6763) target = $region48
    $region47: #{dualres_forward.1} parent=5 // pred_region
      %s6766 = ssub.s32 %s11, 2
      // Predicated region
      $region49: #{dualres_forward.1} parent=47 // pred_check
        %p6767 = pneg %p150
      $region50: #{dualres_forward.1} parent=47 // pred_check_branch
        %6769 = sbr.rel (%p6767) target = $region52
      $region51: #{dualres_forward.1} parent=47 // pred_region
        %p6770 = scmp.lt.s32.totalorder %s17, 1
        %s6771 = scalar_select %p6770, %s17, 1
        %s6772 = smul.addr %s6771, 8
        %s6773 = smul.addr %s6772, 8
        %s6774 = scalar_lea.vmem %s5, %s6773
      $region52: #{dualres_forward.1} parent=47 // pred_fallthru
        _
    $region48: #{dualres_forward.1} parent=5 // pred_fallthru
      _
  $region6: #{dualres_forward.1} parent=0 // loop_footer
    %s15 = sadd.s32 1, %s11
  $region7: #{dualres_forward.1} parent=0 // loop_footer_branch
    %10 = sbr.rel target = $region3
  $region8: #{dualres_forward.1} parent=0 // loop_exit
    _

</llo_original>
